<compile_context>
chip_gen: v6e
topology: v6e:2x2x1
jax: 0.10.0
libtpu: 0.0.40
codegen_flags: <defaults>
</compile_context>

<pallas_src>
import functools

import jax
import jax.numpy as jnp
from jax import lax
from jax.experimental import pallas as pl
from jax.experimental.pallas import tpu as pltpu


# ----------------------------------------------------------------------------
# Shared in-kernel helper: ReLU -> zero-padded VMEM copy -> im2col.
# ----------------------------------------------------------------------------
def _relu_pad_im2col(x_ref, pad_ref, col_ref, *, H, W, C_in, Ho, Wo,
                     KH, KW, stride, dilation, padding):
    Nb, Hp, Wp, _ = pad_ref.shape

    # Zero only the halo strips; the interior is fully overwritten below on
    # every grid step, so this is correct under ("parallel",) megacore
    # sharding (no pl.when(program_id == 0) gating on scratch state).
    if padding > 0:
        zrow = jnp.zeros((Nb, padding, Wp, C_in), pad_ref.dtype)
        pad_ref[:, 0:padding, :, :] = zrow
        pad_ref[:, Hp - padding:Hp, :, :] = zrow
        zcol = jnp.zeros((Nb, H, padding, C_in), pad_ref.dtype)
        pad_ref[:, padding:padding + H, 0:padding, :] = zcol
        pad_ref[:, padding:padding + H, Wp - padding:Wp, :] = zcol

    x = jnp.maximum(x_ref[...], 0.0)                       # ReLU in f32 (VPU)
    pad_ref[:, padding:padding + H, padding:padding + W, :] = x.astype(pad_ref.dtype)

    # im2col: tap k lands in lanes [k*C_in, (k+1)*C_in) of the col buffer.
    for kh in range(KH):
        for kw in range(KW):
            k = kh * KW + kw
            h0 = kh * dilation
            w0 = kw * dilation
            if stride == 1:
                tap = pad_ref[:, h0:h0 + Ho, w0:w0 + Wo, :]
            else:
                # Strided window read on the ref (not a value-level [::stride]).
                tap = pad_ref[:, pl.ds(h0, Ho, stride=stride),
                              pl.ds(w0, Wo, stride=stride), :]
            col_ref[:, :, :, k * C_in:(k + 1) * C_in] = tap


# ----------------------------------------------------------------------------
# Pass 1: BN partial statistics only (no conv output written to HBM).
# ----------------------------------------------------------------------------
def _dilconv_stats_kernel(x_ref, wfT_ref, stats_ref, pad_ref, col_ref, *,
                          H, W, C_in, C_out, Ho, Wo, KH, KW,
                          stride, dilation, padding):
    # x_ref    : (Nb, H, W, C_in)    f32 NHWC block
    # wfT_ref  : (C_out, Kd)         fused depthwise*pointwise weights, bf16
    # stats_ref: (C_out, 2)          [sum(z), sum(z*z)] over this block
    _relu_pad_im2col(x_ref, pad_ref, col_ref, H=H, W=W, C_in=C_in, Ho=Ho,
                     Wo=Wo, KH=KH, KW=KW, stride=stride, dilation=dilation,
                     padding=padding)
    Nb = x_ref.shape[0]
    M = Ho * Wo
    Kd = KH * KW * C_in
    wfT = wfT_ref[...]
    s = jnp.zeros((C_out, 1), jnp.float32)
    ss = jnp.zeros((C_out, 1), jnp.float32)
    for n in range(Nb):                                    # static, Nb small
        a = col_ref[n].reshape(M, Kd)                      # free when Wo % 8 == 0
        zT = lax.dot_general(wfT, a, (((1,), (1,)), ((), ())),
                             preferred_element_type=jnp.float32)   # (C_out, M)
        s = s + jnp.sum(zT, axis=1, keepdims=True)
        ss = ss + jnp.sum(zT * zT, axis=1, keepdims=True)
    stats_ref[:, 0:1] = s
    stats_ref[:, 1:2] = ss


# ----------------------------------------------------------------------------
# Pass 2: recompute conv, fuse BN FMA, store transposed (C_out, M) per image.
# ----------------------------------------------------------------------------
def _dilconv_apply_kernel(x_ref, wfT_ref, ss_ref, o_ref, pad_ref, col_ref, *,
                          H, W, C_in, C_out, Ho, Wo, KH, KW,
                          stride, dilation, padding):
    # ss_ref : (C_out, 2) packed [scale, shift]
    # o_ref  : (Nb, C_out, M) -> already NCHW after a wrapper reshape
    _relu_pad_im2col(x_ref, pad_ref, col_ref, H=H, W=W, C_in=C_in, Ho=Ho,
                     Wo=Wo, KH=KH, KW=KW, stride=stride, dilation=dilation,
                     padding=padding)
    Nb = x_ref.shape[0]
    M = Ho * Wo
    Kd = KH * KW * C_in
    wfT = wfT_ref[...]
    scale = ss_ref[:, 0:1]                                  # (C_out, 1)
    shift = ss_ref[:, 1:2]
    for n in range(Nb):
        a = col_ref[n].reshape(M, Kd)
        zT = lax.dot_general(wfT, a, (((1,), (1,)), ((), ())),
                             preferred_element_type=jnp.float32)   # (C_out, M)
        # Fused BN FMA; lane-dense store (M lanes), no channel padding.
        o_ref[n] = (zT * scale + shift).astype(o_ref.dtype)


# ----------------------------------------------------------------------------
# Wrapper
# ----------------------------------------------------------------------------
def dilconv_forward(x_nchw, w_dw, w_pw, gamma, beta, *,
                    kernel_size, stride, padding, dilation, eps=1e-5,
                    matmul_dtype=jnp.bfloat16):
    """x_nchw: (N, C_in, H, W); w_dw: (C_in,1,KH,KW); w_pw: (C_out,C_in,1,1)."""
    N, C_in, H, W = x_nchw.shape
    C_out = w_pw.shape[0]
    KH = KW = kernel_size
    Ho = (H + 2 * padding - dilation * (KH - 1) - 1) // stride + 1
    Wo = (W + 2 * padding - dilation * (KW - 1) - 1) // stride + 1
    M = Ho * Wo
    Kd = KH * KW * C_in
    Hp, Wp = H + 2 * padding, W + 2 * padding

    # NCHW -> NHWC so C_in sits in lanes for the im2col.
    x = jnp.transpose(x_nchw, (0, 2, 3, 1))

    # Fold depthwise weights into the pointwise weights (exact):
    #   wf[k*C_in + ci, co] = wdw[ci, 0, kh, kw] * wpw[co, ci]
    wdw = jnp.transpose(w_dw[:, 0, :, :], (1, 2, 0)).reshape(KH * KW, C_in)
    wpw = jnp.transpose(w_pw[:, :, 0, 0], (1, 0))                  # (C_in, C_out)
    wf = (wdw[:, :, None] * wpw[None, :, :]).reshape(Kd, C_out)
    wfT = jnp.transpose(wf).astype(matmul_dtype)                   # (C_out, Kd)

    # --- Nb images per grid step (amortize per-step overhead), VMEM-budgeted.
    dsz = jnp.dtype(matmul_dtype).itemsize
    per_img = (H * W * C_in * 4          # x block (f32)
               + Hp * Wp * C_in * dsz    # padded-input scratch
               + M * Kd * dsz            # im2col scratch
               + C_out * M * 4)          # output block
    budget = 8 << 20                     # block budget safe for v7x's 64 MiB VMEM
    Nb = 1
    for cand in range(1, min(N, 16) + 1):
        if N % cand == 0 and cand * per_img <= budget:
            Nb = cand
    G = N // Nb

    # VMEM limit derived from the actual buffers (x/out double-buffered by the
    # BlockSpec pipeline), capped below v7x's 64 MiB physical VMEM.
    vmem_need = (2 * Nb * (H * W * C_in * 4 + C_out * M * 4)
                 + Nb * (Hp * Wp * C_in + M * Kd) * dsz
                 + 2 * (C_out * Kd * dsz + C_out * 2 * 4))
    vmem_limit = int(min(48 << 20, max(16 << 20, 4 * vmem_need)))
    cparams = pltpu.CompilerParams(
        dimension_semantics=("parallel",),          # megacore sharding on v7x
        vmem_limit_bytes=vmem_limit)

    kw_static = dict(H=H, W=W, C_in=C_in, C_out=C_out, Ho=Ho, Wo=Wo, KH=KH,
                     KW=KW, stride=stride, dilation=dilation, padding=padding)
    scratch = [pltpu.VMEM((Nb, Hp, Wp, C_in), matmul_dtype),   # padded ReLU input
               pltpu.VMEM((Nb, Ho, Wo, Kd), matmul_dtype)]     # im2col buffer

    x_spec = pl.BlockSpec((Nb, H, W, C_in), lambda g: (g, 0, 0, 0))
    w_spec = pl.BlockSpec((C_out, Kd), lambda g: (0, 0))       # grid-invariant, tiny
    flops = 2 * N * M * Kd * C_out

    # Pass 1: BN partial statistics only (no conv intermediate through HBM).
    stats = pl.pallas_call(
        functools.partial(_dilconv_stats_kernel, **kw_static),
        out_shape=jax.ShapeDtypeStruct((G, C_out, 2), jnp.float32),
        grid_spec=pltpu.PrefetchScalarGridSpec(
            num_scalar_prefetch=0, grid=(G,),
            in_specs=[x_spec, w_spec],
            out_specs=pl.BlockSpec((None, C_out, 2), lambda g: (g, 0, 0)),
            scratch_shapes=scratch),
        compiler_params=cparams,
        cost_estimate=pl.CostEstimate(
            flops=flops, transcendentals=0,
            bytes_accessed=x.size * 4 + wfT.size * dsz + G * C_out * 2 * 4),
    )(x, wfT)

    # Tiny global reduction -> training-mode BN scale/shift (biased variance).
    # NOTE: one-pass var = E[z^2]-mean^2 in f32; switch to Welford/shifted if
    # strict PyTorch parity is required for large N*Ho*Wo.
    # TODO(synk): running_mean/running_var buffer updates not implemented.
    cnt = jnp.float32(N * M)
    tot = jnp.sum(stats, axis=0)                                   # (C_out, 2)
    mean = tot[:, 0] / cnt
    var = jnp.maximum(tot[:, 1] / cnt - mean * mean, 0.0)
    inv = lax.rsqrt(var + eps)
    scale = gamma.astype(jnp.float32) * inv
    shift = beta.astype(jnp.float32) - mean * scale
    ss = jnp.stack([scale, shift], axis=1)                         # (C_out, 2)

    # Pass 2: recompute conv, fuse BN, store transposed (C_out, M) per image.
    y = pl.pallas_call(
        functools.partial(_dilconv_apply_kernel, **kw_static),
        out_shape=jax.ShapeDtypeStruct((N, C_out, M), x_nchw.dtype),
        grid_spec=pltpu.PrefetchScalarGridSpec(
            num_scalar_prefetch=0, grid=(G,),
            in_specs=[x_spec, w_spec,
                      pl.BlockSpec((C_out, 2), lambda g: (0, 0))],
            out_specs=pl.BlockSpec((Nb, C_out, M), lambda g: (g, 0, 0)),
            scratch_shapes=scratch),
        compiler_params=cparams,
        cost_estimate=pl.CostEstimate(
            flops=flops, transcendentals=0,
            bytes_accessed=(x.size * 4 + wfT.size * dsz + C_out * 2 * 4
                            + N * C_out * M * 4)),
    )(x, wfT, ss)

    # Already channel-major: just split M back into (Ho, Wo). No transpose.
    return y.reshape(N, C_out, Ho, Wo)


# ----------------------------------------------------------------------------
# Spectral-norm weight reparametrization (plain-JAX glue / parameter setup)
# ----------------------------------------------------------------------------
def spectral_norm_fc_weight(w_pw, coeff, n_iter, key):
    """Power iteration on the (C_out, C_in) matrix of the 1x1 conv."""
    w_mat = w_pw[:, :, 0, 0]                                       # (C_out, C_in)
    u = jax.random.normal(key, (w_mat.shape[0],), jnp.float32)
    u = u / (jnp.linalg.norm(u) + 1e-12)
    v = jnp.zeros((w_mat.shape[1],), jnp.float32)
    for _ in range(n_iter):
        v = w_mat.T @ u
        v = v / (jnp.linalg.norm(v) + 1e-12)
        u = w_mat @ v
        u = u / (jnp.linalg.norm(u) + 1e-12)
    sigma = u @ (w_mat @ v)
    factor = jnp.maximum(1.0, sigma / coeff)
    return w_pw / factor


def spectral_norm_conv_weight(w_dw, coeff, n_iter, input_shape,
                              stride, padding, dilation, key):
    """Conv-based power iteration (Behrmann et al.) for the depthwise conv."""
    C_in, h, w = input_shape

    def conv_fn(v):
        return lax.conv_general_dilated(
            v, w_dw, window_strides=(stride, stride),
            padding=((padding, padding), (padding, padding)),
            rhs_dilation=(dilation, dilation),
            dimension_numbers=('NCHW', 'OIHW', 'NCHW'),
            feature_group_count=C_in)

    v = jax.random.normal(key, (1, C_in, h, w), jnp.float32)
    v = v / (jnp.linalg.norm(v) + 1e-12)
    u = conv_fn(v)
    u = u / (jnp.linalg.norm(u) + 1e-12)
    for _ in range(n_iter):
        _, vjp_fn = jax.vjp(conv_fn, v)
        (v,) = vjp_fn(u)
        v = v / (jnp.linalg.norm(v) + 1e-12)
        u = conv_fn(v)
        u = u / (jnp.linalg.norm(u) + 1e-12)
    sigma = jnp.vdot(u, conv_fn(v))
    factor = jnp.maximum(1.0, sigma / coeff)
    return w_dw / factor


# ----------------------------------------------------------------------------
# Pure-JAX reference (two separate convs + training-mode BN) for sanity check.
# ----------------------------------------------------------------------------
def reference_forward(x, w_dw, w_pw, gamma, beta, *, stride, padding, dilation,
                      eps=1e-5):
    C_in = x.shape[1]
    a = jnp.maximum(x, 0.0)
    z1 = lax.conv_general_dilated(
        a, w_dw, (stride, stride), ((padding, padding), (padding, padding)),
        rhs_dilation=(dilation, dilation),
        dimension_numbers=('NCHW', 'OIHW', 'NCHW'), feature_group_count=C_in)
    z2 = lax.conv_general_dilated(
        z1, w_pw, (1, 1), ((0, 0), (0, 0)),
        dimension_numbers=('NCHW', 'OIHW', 'NCHW'))
    mean = jnp.mean(z2, axis=(0, 2, 3), keepdims=True)
    var = jnp.mean((z2 - mean) ** 2, axis=(0, 2, 3), keepdims=True)
    return ((z2 - mean) * lax.rsqrt(var + eps) * gamma.reshape(1, -1, 1, 1)
            + beta.reshape(1, -1, 1, 1))


# ----------------------------------------------------------------------------
if __name__ == "__main__":
    # Typical DARTS dil_conv_3x3 config: C_in=4, C_out=8, k=3, stride=1,
    # padding=2, dilation=2, shape=(16,16), coeff=1.0, n_power_iter=5.
    N, C_in, C_out = 2, 4, 8
    H = W = 16
    kernel_size, stride, padding, dilation = 3, 1, 2, 2
    coeff, n_power_iter = 1.0, 5

    key = jax.random.PRNGKey(0)
    kx, kdw, kpw, ku1, ku2 = jax.random.split(key, 5)

    x = jax.random.normal(kx, (N, C_in, H, W), jnp.float32)
    w_dw = 0.1 * jax.random.normal(kdw, (C_in, 1, kernel_size, kernel_size),
                                   jnp.float32)
    w_pw = 0.1 * jax.random.normal(kpw, (C_out, C_in, 1, 1), jnp.float32)
    gamma = jnp.ones((C_out,), jnp.float32)      # BatchNorm affine init
    beta = jnp.zeros((C_out,), jnp.float32)

    # Spectral-norm reparametrization of the weights (parameter-setup glue).
    w_dw_sn = spectral_norm_conv_weight(
        w_dw, coeff, n_power_iter, (C_in, H, W), stride, padding, dilation, ku1)
    w_pw_sn = spectral_norm_fc_weight(w_pw, coeff, n_power_iter, ku2)

    y = dilconv_forward(x, w_dw_sn, w_pw_sn, gamma, beta,
                        kernel_size=kernel_size, stride=stride,
                        padding=padding, dilation=dilation)
    jax.block_until_ready(y)
    assert y.shape == (N, C_out, H, W), y.shape

    # Numerics sanity check against the pure-JAX reference (bf16 matmul path
    # vs f32 reference -> loose tolerance).
    y_ref = reference_forward(x, w_dw_sn, w_pw_sn, gamma, beta, stride=stride,
                              padding=padding, dilation=dilation)
    err = float(jnp.max(jnp.abs(y - y_ref)))
    assert err < 0.1, f"max abs err {err}"

    print("KERNEL_OK")
</pallas_src>

<mosaic_0001>
module attributes {stable_mosaic.version = 11 : i64} {
  func.func @_dilconv_stats_kernel(%arg0: i32, %arg1: memref<2x16x16x4xf32, #tpu.memory_space<vmem>>, %arg2: memref<8x36xbf16, #tpu.memory_space<vmem>>, %arg3: memref<1x8x2xf32, #tpu.memory_space<vmem>>, %arg4: memref<2x20x20x4xbf16, #tpu.memory_space<vmem>>, %arg5: memref<2x16x16x36xbf16, #tpu.memory_space<vmem>>) attributes {dimension_semantics = [#tpu.dimension_semantics<parallel>], iteration_bounds = array<i64: 1>, scalar_prefetch = 0 : i64, scratch_operands = 2 : i64, tpu.core_type = #tpu.core_type<tc>, window_params = [{transform_indices = @transform_0, window_bounds = array<i64: 2, 16, 16, 4>}, {pipeline_mode = #tpu.pipeline_mode<synchronous>, transform_indices = @transform_1, window_bounds = array<i64: 8, 36>}, {transform_indices = @transform_2, window_bounds = array<i64: 1, 8, 2>}]} {
    %cst = arith.constant 0.000000e+00 : bf16
    %0 = vector.broadcast %cst : bf16 to vector<2x2x20x4xbf16>
    %c0 = arith.constant 0 : index
    %c0_0 = arith.constant 0 : index
    %c0_1 = arith.constant 0 : index
    %c0_2 = arith.constant 0 : index
    %1 = vector.load %arg4[%c0, %c0_0, %c0_1, %c0_2] : memref<2x20x20x4xbf16, #tpu.memory_space<vmem>>, vector<2x2x20x4xbf16>
    tpu.vector_store %arg4[%c0, %c0_0, %c0_1, %c0_2], %0 {strides = array<i32>} : memref<2x20x20x4xbf16, #tpu.memory_space<vmem>>, vector<2x2x20x4xbf16>,
    %c0_3 = arith.constant 0 : index
    %c18 = arith.constant 18 : index
    %c0_4 = arith.constant 0 : index
    %c0_5 = arith.constant 0 : index
    %2 = vector.load %arg4[%c0_3, %c18, %c0_4, %c0_5] : memref<2x20x20x4xbf16, #tpu.memory_space<vmem>>, vector<2x2x20x4xbf16>
    tpu.vector_store %arg4[%c0_3, %c18, %c0_4, %c0_5], %0 {strides = array<i32>} : memref<2x20x20x4xbf16, #tpu.memory_space<vmem>>, vector<2x2x20x4xbf16>,
    %cst_6 = arith.constant 0.000000e+00 : bf16
    %3 = vector.broadcast %cst_6 : bf16 to vector<2x16x2x4xbf16>
    %c0_7 = arith.constant 0 : index
    %c2 = arith.constant 2 : index
    %c0_8 = arith.constant 0 : index
    %c0_9 = arith.constant 0 : index
    %4 = vector.load %arg4[%c0_7, %c2, %c0_8, %c0_9] : memref<2x20x20x4xbf16, #tpu.memory_space<vmem>>, vector<2x16x2x4xbf16>
    tpu.vector_store %arg4[%c0_7, %c2, %c0_8, %c0_9], %3 {strides = array<i32>} : memref<2x20x20x4xbf16, #tpu.memory_space<vmem>>, vector<2x16x2x4xbf16>,
    %c0_10 = arith.constant 0 : index
    %c2_11 = arith.constant 2 : index
    %c18_12 = arith.constant 18 : index
    %c0_13 = arith.constant 0 : index
    %5 = vector.load %arg4[%c0_10, %c2_11, %c18_12, %c0_13] : memref<2x20x20x4xbf16, #tpu.memory_space<vmem>>, vector<2x16x2x4xbf16>
    tpu.vector_store %arg4[%c0_10, %c2_11, %c18_12, %c0_13], %3 {strides = array<i32>} : memref<2x20x20x4xbf16, #tpu.memory_space<vmem>>, vector<2x16x2x4xbf16>,
    %c0_14 = arith.constant 0 : index
    %c0_15 = arith.constant 0 : index
    %c0_16 = arith.constant 0 : index
    %c0_17 = arith.constant 0 : index
    %6 = vector.load %arg1[%c0_14, %c0_15, %c0_16, %c0_17] : memref<2x16x16x4xf32, #tpu.memory_space<vmem>>, vector<2x16x16x4xf32>
    %cst_18 = arith.constant 0.000000e+00 : f32
    %7 = vector.broadcast %cst_18 : f32 to vector<2x16x16x4xf32>
    %8 = arith.maximumf %6, %7 : vector<2x16x16x4xf32>
    %9 = arith.truncf %8 : vector<2x16x16x4xf32> to vector<2x16x16x4xbf16>
    %c0_19 = arith.constant 0 : index
    %c2_20 = arith.constant 2 : index
    %c2_21 = arith.constant 2 : index
    %c0_22 = arith.constant 0 : index
    %10 = vector.load %arg4[%c0_19, %c2_20, %c2_21, %c0_22] : memref<2x20x20x4xbf16, #tpu.memory_space<vmem>>, vector<2x16x16x4xbf16>
    tpu.vector_store %arg4[%c0_19, %c2_20, %c2_21, %c0_22], %9 {strides = array<i32>} : memref<2x20x20x4xbf16, #tpu.memory_space<vmem>>, vector<2x16x16x4xbf16>,
    %c0_23 = arith.constant 0 : index
    %c0_24 = arith.constant 0 : index
    %c0_25 = arith.constant 0 : index
    %c0_26 = arith.constant 0 : index
    %11 = vector.load %arg4[%c0_23, %c0_24, %c0_25, %c0_26] : memref<2x20x20x4xbf16, #tpu.memory_space<vmem>>, vector<2x16x16x4xbf16>
    %c0_27 = arith.constant 0 : index
    %c0_28 = arith.constant 0 : index
    %c0_29 = arith.constant 0 : index
    %c0_30 = arith.constant 0 : index
    %12 = vector.load %arg5[%c0_27, %c0_28, %c0_29, %c0_30] : memref<2x16x16x36xbf16, #tpu.memory_space<vmem>>, vector<2x16x16x4xbf16>
    tpu.vector_store %arg5[%c0_27, %c0_28, %c0_29, %c0_30], %11 {strides = array<i32>} : memref<2x16x16x36xbf16, #tpu.memory_space<vmem>>, vector<2x16x16x4xbf16>,
    %c0_31 = arith.constant 0 : index
    %c0_32 = arith.constant 0 : index
    %c2_33 = arith.constant 2 : index
    %c0_34 = arith.constant 0 : index
    %13 = vector.load %arg4[%c0_31, %c0_32, %c2_33, %c0_34] : memref<2x20x20x4xbf16, #tpu.memory_space<vmem>>, vector<2x16x16x4xbf16>
    %c0_35 = arith.constant 0 : index
    %c0_36 = arith.constant 0 : index
    %c0_37 = arith.constant 0 : index
    %c4 = arith.constant 4 : index
    %14 = vector.load %arg5[%c0_35, %c0_36, %c0_37, %c4] : memref<2x16x16x36xbf16, #tpu.memory_space<vmem>>, vector<2x16x16x4xbf16>
    tpu.vector_store %arg5[%c0_35, %c0_36, %c0_37, %c4], %13 {strides = array<i32>} : memref<2x16x16x36xbf16, #tpu.memory_space<vmem>>, vector<2x16x16x4xbf16>,
    %c0_38 = arith.constant 0 : index
    %c0_39 = arith.constant 0 : index
    %c4_40 = arith.constant 4 : index
    %c0_41 = arith.constant 0 : index
    %15 = vector.load %arg4[%c0_38, %c0_39, %c4_40, %c0_41] : memref<2x20x20x4xbf16, #tpu.memory_space<vmem>>, vector<2x16x16x4xbf16>
    %c0_42 = arith.constant 0 : index
    %c0_43 = arith.constant 0 : index
    %c0_44 = arith.constant 0 : index
    %c8 = arith.constant 8 : index
    %16 = vector.load %arg5[%c0_42, %c0_43, %c0_44, %c8] : memref<2x16x16x36xbf16, #tpu.memory_space<vmem>>, vector<2x16x16x4xbf16>
    tpu.vector_store %arg5[%c0_42, %c0_43, %c0_44, %c8], %15 {strides = array<i32>} : memref<2x16x16x36xbf16, #tpu.memory_space<vmem>>, vector<2x16x16x4xbf16>,
    %c0_45 = arith.constant 0 : index
    %c2_46 = arith.constant 2 : index
    %c0_47 = arith.constant 0 : index
    %c0_48 = arith.constant 0 : index
    %17 = vector.load %arg4[%c0_45, %c2_46, %c0_47, %c0_48] : memref<2x20x20x4xbf16, #tpu.memory_space<vmem>>, vector<2x16x16x4xbf16>
    %c0_49 = arith.constant 0 : index
    %c0_50 = arith.constant 0 : index
    %c0_51 = arith.constant 0 : index
    %c12 = arith.constant 12 : index
    %18 = vector.load %arg5[%c0_49, %c0_50, %c0_51, %c12] : memref<2x16x16x36xbf16, #tpu.memory_space<vmem>>, vector<2x16x16x4xbf16>
    tpu.vector_store %arg5[%c0_49, %c0_50, %c0_51, %c12], %17 {strides = array<i32>} : memref<2x16x16x36xbf16, #tpu.memory_space<vmem>>, vector<2x16x16x4xbf16>,
    %c0_52 = arith.constant 0 : index
    %c2_53 = arith.constant 2 : index
    %c2_54 = arith.constant 2 : index
    %c0_55 = arith.constant 0 : index
    %19 = vector.load %arg4[%c0_52, %c2_53, %c2_54, %c0_55] : memref<2x20x20x4xbf16, #tpu.memory_space<vmem>>, vector<2x16x16x4xbf16>
    %c0_56 = arith.constant 0 : index
    %c0_57 = arith.constant 0 : index
    %c0_58 = arith.constant 0 : index
    %c16 = arith.constant 16 : index
    %20 = vector.load %arg5[%c0_56, %c0_57, %c0_58, %c16] : memref<2x16x16x36xbf16, #tpu.memory_space<vmem>>, vector<2x16x16x4xbf16>
    tpu.vector_store %arg5[%c0_56, %c0_57, %c0_58, %c16], %19 {strides = array<i32>} : memref<2x16x16x36xbf16, #tpu.memory_space<vmem>>, vector<2x16x16x4xbf16>,
    %c0_59 = arith.constant 0 : index
    %c2_60 = arith.constant 2 : index
    %c4_61 = arith.constant 4 : index
    %c0_62 = arith.constant 0 : index
    %21 = vector.load %arg4[%c0_59, %c2_60, %c4_61, %c0_62] : memref<2x20x20x4xbf16, #tpu.memory_space<vmem>>, vector<2x16x16x4xbf16>
    %c0_63 = arith.constant 0 : index
    %c0_64 = arith.constant 0 : index
    %c0_65 = arith.constant 0 : index
    %c20 = arith.constant 20 : index
    %22 = vector.load %arg5[%c0_63, %c0_64, %c0_65, %c20] : memref<2x16x16x36xbf16, #tpu.memory_space<vmem>>, vector<2x16x16x4xbf16>
    tpu.vector_store %arg5[%c0_63, %c0_64, %c0_65, %c20], %21 {strides = array<i32>} : memref<2x16x16x36xbf16, #tpu.memory_space<vmem>>, vector<2x16x16x4xbf16>,
    %c0_66 = arith.constant 0 : index
    %c4_67 = arith.constant 4 : index
    %c0_68 = arith.constant 0 : index
    %c0_69 = arith.constant 0 : index
    %23 = vector.load %arg4[%c0_66, %c4_67, %c0_68, %c0_69] : memref<2x20x20x4xbf16, #tpu.memory_space<vmem>>, vector<2x16x16x4xbf16>
    %c0_70 = arith.constant 0 : index
    %c0_71 = arith.constant 0 : index
    %c0_72 = arith.constant 0 : index
    %c24 = arith.constant 24 : index
    %24 = vector.load %arg5[%c0_70, %c0_71, %c0_72, %c24] : memref<2x16x16x36xbf16, #tpu.memory_space<vmem>>, vector<2x16x16x4xbf16>
    tpu.vector_store %arg5[%c0_70, %c0_71, %c0_72, %c24], %23 {strides = array<i32>} : memref<2x16x16x36xbf16, #tpu.memory_space<vmem>>, vector<2x16x16x4xbf16>,
    %c0_73 = arith.constant 0 : index
    %c4_74 = arith.constant 4 : index
    %c2_75 = arith.constant 2 : index
    %c0_76 = arith.constant 0 : index
    %25 = vector.load %arg4[%c0_73, %c4_74, %c2_75, %c0_76] : memref<2x20x20x4xbf16, #tpu.memory_space<vmem>>, vector<2x16x16x4xbf16>
    %c0_77 = arith.constant 0 : index
    %c0_78 = arith.constant 0 : index
    %c0_79 = arith.constant 0 : index
    %c28 = arith.constant 28 : index
    %26 = vector.load %arg5[%c0_77, %c0_78, %c0_79, %c28] : memref<2x16x16x36xbf16, #tpu.memory_space<vmem>>, vector<2x16x16x4xbf16>
    tpu.vector_store %arg5[%c0_77, %c0_78, %c0_79, %c28], %25 {strides = array<i32>} : memref<2x16x16x36xbf16, #tpu.memory_space<vmem>>, vector<2x16x16x4xbf16>,
    %c0_80 = arith.constant 0 : index
    %c4_81 = arith.constant 4 : index
    %c4_82 = arith.constant 4 : index
    %c0_83 = arith.constant 0 : index
    %27 = vector.load %arg4[%c0_80, %c4_81, %c4_82, %c0_83] : memref<2x20x20x4xbf16, #tpu.memory_space<vmem>>, vector<2x16x16x4xbf16>
    %c0_84 = arith.constant 0 : index
    %c0_85 = arith.constant 0 : index
    %c0_86 = arith.constant 0 : index
    %c32 = arith.constant 32 : index
    %28 = vector.load %arg5[%c0_84, %c0_85, %c0_86, %c32] : memref<2x16x16x36xbf16, #tpu.memory_space<vmem>>, vector<2x16x16x4xbf16>
    tpu.vector_store %arg5[%c0_84, %c0_85, %c0_86, %c32], %27 {strides = array<i32>} : memref<2x16x16x36xbf16, #tpu.memory_space<vmem>>, vector<2x16x16x4xbf16>,
    %c0_87 = arith.constant 0 : index
    %c0_88 = arith.constant 0 : index
    %29 = vector.load %arg2[%c0_87, %c0_88] : memref<8x36xbf16, #tpu.memory_space<vmem>>, vector<8x36xbf16>
    %cst_89 = arith.constant 0.000000e+00 : f32
    %30 = vector.broadcast %cst_89 : f32 to vector<8x1xf32>
    %cst_90 = arith.constant 0.000000e+00 : f32
    %31 = vector.broadcast %cst_90 : f32 to vector<8x1xf32>
    %c0_91 = arith.constant 0 : index
    %c0_92 = arith.constant 0 : index
    %c0_93 = arith.constant 0 : index
    %c0_94 = arith.constant 0 : index
    %32 = vector.load %arg5[%c0_91, %c0_92, %c0_93, %c0_94] : memref<2x16x16x36xbf16, #tpu.memory_space<vmem>>, vector<1x16x16x36xbf16>
    %33 = vector.shape_cast %32 : vector<1x16x16x36xbf16> to vector<16x16x36xbf16>
    %34 = vector.shape_cast %33 : vector<16x16x36xbf16> to vector<256x36xbf16>
    %cst_95 = arith.constant dense<0.000000e+00> : vector<8x256xf32>
    %35 = tpu.matmul %29, %34, %cst_95 {dimension_numbers = #tpu.dot_dimension_numbers<[1], [1], [0], [0], [0, 0, 1, 0], [], []>} : vector<8x36xbf16>, vector<256x36xbf16>, vector<8x256xf32> -> vector<8x256xf32>
    %cst_96 = arith.constant dense<0.000000e+00> : vector<8xf32>
    %36 = vector.multi_reduction <add>, %35, %cst_96 [1] : vector<8x256xf32> to vector<8xf32>
    %37 = vector.shape_cast %36 : vector<8xf32> to vector<8x1xf32>
    %38 = arith.addf %30, %37 : vector<8x1xf32>
    %39 = arith.mulf %35, %35 : vector<8x256xf32>
    %cst_97 = arith.constant dense<0.000000e+00> : vector<8xf32>
    %40 = vector.multi_reduction <add>, %39, %cst_97 [1] : vector<8x256xf32> to vector<8xf32>
    %41 = vector.shape_cast %40 : vector<8xf32> to vector<8x1xf32>
    %42 = arith.addf %31, %41 : vector<8x1xf32>
    %c1 = arith.constant 1 : index
    %c0_98 = arith.constant 0 : index
    %c0_99 = arith.constant 0 : index
    %c0_100 = arith.constant 0 : index
    %43 = vector.load %arg5[%c1, %c0_98, %c0_99, %c0_100] : memref<2x16x16x36xbf16, #tpu.memory_space<vmem>>, vector<1x16x16x36xbf16>
    %44 = vector.shape_cast %43 : vector<1x16x16x36xbf16> to vector<16x16x36xbf16>
    %45 = vector.shape_cast %44 : vector<16x16x36xbf16> to vector<256x36xbf16>
    %cst_101 = arith.constant dense<0.000000e+00> : vector<8x256xf32>
    %46 = tpu.matmul %29, %45, %cst_101 {dimension_numbers = #tpu.dot_dimension_numbers<[1], [1], [0], [0], [0, 0, 1, 0], [], []>} : vector<8x36xbf16>, vector<256x36xbf16>, vector<8x256xf32> -> vector<8x256xf32>
    %cst_102 = arith.constant dense<0.000000e+00> : vector<8xf32>
    %47 = vector.multi_reduction <add>, %46, %cst_102 [1] : vector<8x256xf32> to vector<8xf32>
    %48 = vector.shape_cast %47 : vector<8xf32> to vector<8x1xf32>
    %49 = arith.addf %38, %48 : vector<8x1xf32>
    %50 = arith.mulf %46, %46 : vector<8x256xf32>
    %cst_103 = arith.constant dense<0.000000e+00> : vector<8xf32>
    %51 = vector.multi_reduction <add>, %50, %cst_103 [1] : vector<8x256xf32> to vector<8xf32>
    %52 = vector.shape_cast %51 : vector<8xf32> to vector<8x1xf32>
    %53 = arith.addf %42, %52 : vector<8x1xf32>
    %c0_104 = arith.constant 0 : index
    %c0_105 = arith.constant 0 : index
    %c0_106 = arith.constant 0 : index
    %54 = vector.load %arg3[%c0_104, %c0_105, %c0_106] : memref<1x8x2xf32, #tpu.memory_space<vmem>>, vector<1x8x1xf32>
    %55 = vector.shape_cast %54 : vector<1x8x1xf32> to vector<8x1xf32>
    %56 = vector.shape_cast %49 : vector<8x1xf32> to vector<1x8x1xf32>
    tpu.vector_store %arg3[%c0_104, %c0_105, %c0_106], %56 {strides = array<i32>} : memref<1x8x2xf32, #tpu.memory_space<vmem>>, vector<1x8x1xf32>,
    %c0_107 = arith.constant 0 : index
    %c0_108 = arith.constant 0 : index
    %c1_109 = arith.constant 1 : index
    %57 = vector.load %arg3[%c0_107, %c0_108, %c1_109] : memref<1x8x2xf32, #tpu.memory_space<vmem>>, vector<1x8x1xf32>
    %58 = vector.shape_cast %57 : vector<1x8x1xf32> to vector<8x1xf32>
    %59 = vector.shape_cast %53 : vector<8x1xf32> to vector<1x8x1xf32>
    tpu.vector_store %arg3[%c0_107, %c0_108, %c1_109], %59 {strides = array<i32>} : memref<1x8x2xf32, #tpu.memory_space<vmem>>, vector<1x8x1xf32>,
    return
  }
  func.func @transform_0(%arg0: i32) -> (i32, i32, i32, i32) {
    %c0_i32 = arith.constant 0 : i32
    %c0_i32_0 = arith.constant 0 : i32
    %c0_i32_1 = arith.constant 0 : i32
    %c0_i32_2 = arith.constant 0 : i32
    return %arg0, %c0_i32, %c0_i32_0, %c0_i32_1 : i32, i32, i32, i32
  }
  func.func @transform_1(%arg0: i32) -> (i32, i32) {
    %c0_i32 = arith.constant 0 : i32
    %c0_i32_0 = arith.constant 0 : i32
    %c0_i32_1 = arith.constant 0 : i32
    return %c0_i32, %c0_i32_0 : i32, i32
  }
  func.func @transform_2(%arg0: i32) -> (i32, i32, i32) {
    %c0_i32 = arith.constant 0 : i32
    %c0_i32_0 = arith.constant 0 : i32
    %c0_i32_1 = arith.constant 0 : i32
    return %arg0, %c0_i32, %c0_i32_0 : i32, i32, i32
  }
}

</mosaic_0001>

<llo_original>
// kernel: tpu_custom_call.1
$region0: #{tpu_custom_call.1}
  #allocation0 [shape = 'u32[]', space=smem, size = 0x4, offset = 0x4, fixed_abs, tag = 'smem constant byte address 0x4 - core index']
  #allocation1 [shape = 'u32[144,128]{1,0:T(1,128)}', space=vmem, size = 0x12000, scoped, tag = 'internal scratch']
  #allocation2 [shape = 'bf16[2,20,20,4]{3,2,1,0:T(8,128)(2,1)}', space=vmem, size = 0x3c000, scoped, tag = 'scratch operand']
  #allocation3 [shape = 'bf16[2,16,16,36]{3,2,1,0:T(8,128)(2,1)}', space=vmem, size = 0x20000, scoped, tag = 'scratch operand']
  %s0 = inlined_call_operand.vmem [shape: f32[2,16,16,4], index: 0, kind: input, shape index: {}]
  %s1 = inlined_call_operand.vmem [shape: bf16[8,36], index: 1, kind: input, shape index: {}]
  %s2 = inlined_call_operand.vmem [shape: f32[1,8,2], index: 2, kind: output, shape index: {}]
  %s3 = sld [smem:[#allocation0]]
  $region18: #{tpu_custom_call.1} parent=0
    _
  %s5 = ssub.s32 1, %s3
  %s6 = scalar_select 0, %s5, %s3
  // Predicated region
  $region2: #{tpu_custom_call.1} parent=0 // pred_check
    _
  $region3: #{tpu_custom_call.1} parent=0 // pred_check_branch
    %8 = sbr.rel (0) target = $region5
  $region4: #{tpu_custom_call.1} parent=0 // pred_region
    _
  $region5: #{tpu_custom_call.1} parent=0 // pred_fallthru
    _
  // Predicated region
  $region6: #{tpu_custom_call.1} parent=0 // pred_check
    _
  $region7: #{tpu_custom_call.1} parent=0 // pred_check_branch
    %10 = sbr.rel (0) target = $region9
  $region8: #{tpu_custom_call.1} parent=0 // pred_region
    _
  $region9: #{tpu_custom_call.1} parent=0 // pred_fallthru
    _
  %vm12 = vcmask 27648
  %13 = vst.msk [vmem:[#allocation2] sm:$0xf] %vm12, 0
  %14 = vst.msk [vmem:[#allocation2 + $0x4] sm:$0xf] %vm12, 0
  %vm15 = vcmask 25600
  %16 = vst.msk [vmem:[#allocation2 + $0x8] sm:$0x3] %vm15, 0
  %17 = vst.msk [vmem:[#allocation2 + $0xc] sm:$0xf] %vm12, 0
  %18 = vst.msk [vmem:[#allocation2 + $0x10] sm:$0xf] %vm12, 0
  %19 = vst.msk [vmem:[#allocation2 + $0x14] sm:$0x3] %vm15, 0
  %20 = vst.msk [vmem:[#allocation2 + $0xf0] sm:$0xf] %vm12, 0
  %21 = vst.msk [vmem:[#allocation2 + $0xf4] sm:$0xf] %vm12, 0
  %22 = vst.msk [vmem:[#allocation2 + $0xf8] sm:$0x3] %vm15, 0
  %23 = vst.msk [vmem:[#allocation2 + $0xfc] sm:$0xf] %vm12, 0
  %24 = vst.msk [vmem:[#allocation2 + $0x100] sm:$0xf] %vm12, 0
  %25 = vst.msk [vmem:[#allocation2 + $0x104] sm:$0x3] %vm15, 0
  %s26 = scalar_lea.vmem [#allocation2], 216
  %27 = vst.msk [vmem:[%s26] sm:$0xf] %vm12, 0
  %28 = vst.msk [vmem:[%s26 + $0x4] sm:$0xf] %vm12, 0
  %29 = vst.msk [vmem:[%s26 + $0x8] sm:$0x3] %vm15, 0
  %30 = vst.msk [vmem:[%s26 + $0xc] sm:$0xf] %vm12, 0
  %31 = vst.msk [vmem:[%s26 + $0x10] sm:$0xf] %vm12, 0
  %32 = vst.msk [vmem:[%s26 + $0x14] sm:$0x3] %vm15, 0
  %33 = vst.msk [vmem:[%s26 + $0xf0] sm:$0xf] %vm12, 0
  %34 = vst.msk [vmem:[%s26 + $0xf4] sm:$0xf] %vm12, 0
  %35 = vst.msk [vmem:[%s26 + $0xf8] sm:$0x3] %vm15, 0
  %36 = vst.msk [vmem:[%s26 + $0xfc] sm:$0xf] %vm12, 0
  %37 = vst.msk [vmem:[%s26 + $0x100] sm:$0xf] %vm12, 0
  %38 = vst.msk [vmem:[%s26 + $0x104] sm:$0x3] %vm15, 0
  %s39 = scalar_lea.vmem [#allocation2], 24
  %vm40 = vcmask 24576
  %41 = vst.msk [vmem:[%s39] sm:$0x1] %vm40, 0
  %42 = vst.msk [vmem:[%s39 + $0xc] sm:$0x1] %vm40, 0
  %43 = vst.msk [vmem:[%s39 + $0x18] sm:$0x1] %vm40, 0
  %44 = vst.msk [vmem:[%s39 + $0x24] sm:$0x1] %vm40, 0
  %45 = vst.msk [vmem:[%s39 + $0x30] sm:$0x1] %vm40, 0
  %46 = vst.msk [vmem:[%s39 + $0x3c] sm:$0x1] %vm40, 0
  %47 = vst.msk [vmem:[%s39 + $0x48] sm:$0x1] %vm40, 0
  %48 = vst.msk [vmem:[%s39 + $0x54] sm:$0x1] %vm40, 0
  %49 = vst.msk [vmem:[%s39 + $0x60] sm:$0x1] %vm40, 0
  %50 = vst.msk [vmem:[%s39 + $0x6c] sm:$0x1] %vm40, 0
  %51 = vst.msk [vmem:[%s39 + $0x78] sm:$0x1] %vm40, 0
  %52 = vst.msk [vmem:[%s39 + $0x84] sm:$0x1] %vm40, 0
  %53 = vst.msk [vmem:[%s39 + $0x90] sm:$0x1] %vm40, 0
  %54 = vst.msk [vmem:[%s39 + $0x9c] sm:$0x1] %vm40, 0
  %55 = vst.msk [vmem:[%s39 + $0xa8] sm:$0x1] %vm40, 0
  %56 = vst.msk [vmem:[%s39 + $0xb4] sm:$0x1] %vm40, 0
  %57 = vst.msk [vmem:[%s39 + $0xf0] sm:$0x1] %vm40, 0
  %58 = vst.msk [vmem:[%s39 + $0xfc] sm:$0x1] %vm40, 0
  %59 = vst.msk [vmem:[%s39 + $0x108] sm:$0x1] %vm40, 0
  %60 = vst.msk [vmem:[%s39 + $0x114] sm:$0x1] %vm40, 0
  %61 = vst.msk [vmem:[%s39 + $0x120] sm:$0x1] %vm40, 0
  %62 = vst.msk [vmem:[%s39 + $0x12c] sm:$0x1] %vm40, 0
  %63 = vst.msk [vmem:[%s39 + $0x138] sm:$0x1] %vm40, 0
  %64 = vst.msk [vmem:[%s39 + $0x144] sm:$0x1] %vm40, 0
  %65 = vst.msk [vmem:[%s39 + $0x150] sm:$0x1] %vm40, 0
  %66 = vst.msk [vmem:[%s39 + $0x15c] sm:$0x1] %vm40, 0
  %67 = vst.msk [vmem:[%s39 + $0x168] sm:$0x1] %vm40, 0
  %68 = vst.msk [vmem:[%s39 + $0x174] sm:$0x1] %vm40, 0
  %69 = vst.msk [vmem:[%s39 + $0x180] sm:$0x1] %vm40, 0
  %70 = vst.msk [vmem:[%s39 + $0x18c] sm:$0x1] %vm40, 0
  %71 = vst.msk [vmem:[%s39 + $0x198] sm:$0x1] %vm40, 0
  %72 = vst.msk [vmem:[%s39 + $0x1a4] sm:$0x1] %vm40, 0
  %vm73 = vcmask 25601
  %74 = vst.msk [vmem:[%s39 + $0x8] sm:$0x2] %vm73, 0
  %75 = vst.msk [vmem:[%s39 + $0x14] sm:$0x2] %vm73, 0
  %76 = vst.msk [vmem:[%s39 + $0x20] sm:$0x2] %vm73, 0
  %77 = vst.msk [vmem:[%s39 + $0x2c] sm:$0x2] %vm73, 0
  %78 = vst.msk [vmem:[%s39 + $0x38] sm:$0x2] %vm73, 0
  %79 = vst.msk [vmem:[%s39 + $0x44] sm:$0x2] %vm73, 0
  %80 = vst.msk [vmem:[%s39 + $0x50] sm:$0x2] %vm73, 0
  %81 = vst.msk [vmem:[%s39 + $0x5c] sm:$0x2] %vm73, 0
  %82 = vst.msk [vmem:[%s39 + $0x68] sm:$0x2] %vm73, 0
  %83 = vst.msk [vmem:[%s39 + $0x74] sm:$0x2] %vm73, 0
  %84 = vst.msk [vmem:[%s39 + $0x80] sm:$0x2] %vm73, 0
  %85 = vst.msk [vmem:[%s39 + $0x8c] sm:$0x2] %vm73, 0
  %86 = vst.msk [vmem:[%s39 + $0x98] sm:$0x2] %vm73, 0
  %87 = vst.msk [vmem:[%s39 + $0xa4] sm:$0x2] %vm73, 0
  %88 = vst.msk [vmem:[%s39 + $0xb0] sm:$0x2] %vm73, 0
  %89 = vst.msk [vmem:[%s39 + $0xbc] sm:$0x2] %vm73, 0
  %90 = vst.msk [vmem:[%s39 + $0xf8] sm:$0x2] %vm73, 0
  %91 = vst.msk [vmem:[%s39 + $0x104] sm:$0x2] %vm73, 0
  %92 = vst.msk [vmem:[%s39 + $0x110] sm:$0x2] %vm73, 0
  %93 = vst.msk [vmem:[%s39 + $0x11c] sm:$0x2] %vm73, 0
  %94 = vst.msk [vmem:[%s39 + $0x128] sm:$0x2] %vm73, 0
  %95 = vst.msk [vmem:[%s39 + $0x134] sm:$0x2] %vm73, 0
  %96 = vst.msk [vmem:[%s39 + $0x140] sm:$0x2] %vm73, 0
  %97 = vst.msk [vmem:[%s39 + $0x14c] sm:$0x2] %vm73, 0
  %98 = vst.msk [vmem:[%s39 + $0x158] sm:$0x2] %vm73, 0
  %99 = vst.msk [vmem:[%s39 + $0x164] sm:$0x2] %vm73, 0
  %100 = vst.msk [vmem:[%s39 + $0x170] sm:$0x2] %vm73, 0
  %101 = vst.msk [vmem:[%s39 + $0x17c] sm:$0x2] %vm73, 0
  %102 = vst.msk [vmem:[%s39 + $0x188] sm:$0x2] %vm73, 0
  %103 = vst.msk [vmem:[%s39 + $0x194] sm:$0x2] %vm73, 0
  %104 = vst.msk [vmem:[%s39 + $0x1a0] sm:$0x2] %vm73, 0
  %105 = vst.msk [vmem:[%s39 + $0x1ac] sm:$0x2] %vm73, 0
  %v106 = vld [vmem:[%s0] sm:$0xff]
  %v107 = vld [vmem:[%s0 + $0x8] sm:$0xff]
  %v108 = vld [vmem:[%s0 + $0x10] sm:$0xff]
  %v109 = vld [vmem:[%s0 + $0x18] sm:$0xff]
  %v110 = vld [vmem:[%s0 + $0x20] sm:$0xff]
  %v111 = vld [vmem:[%s0 + $0x28] sm:$0xff]
  %v112 = vld [vmem:[%s0 + $0x30] sm:$0xff]
  %v113 = vld [vmem:[%s0 + $0x38] sm:$0xff]
  %v114 = vld [vmem:[%s0 + $0x40] sm:$0xff]
  %v115 = vld [vmem:[%s0 + $0x48] sm:$0xff]
  %v116 = vld [vmem:[%s0 + $0x50] sm:$0xff]
  %v117 = vld [vmem:[%s0 + $0x58] sm:$0xff]
  %v118 = vld [vmem:[%s0 + $0x60] sm:$0xff]
  %v119 = vld [vmem:[%s0 + $0x68] sm:$0xff]
  %v120 = vld [vmem:[%s0 + $0x70] sm:$0xff]
  %v121 = vld [vmem:[%s0 + $0x78] sm:$0xff]
  %v122 = vld [vmem:[%s0 + $0x80] sm:$0xff]
  %v123 = vld [vmem:[%s0 + $0x88] sm:$0xff]
  %v124 = vld [vmem:[%s0 + $0x90] sm:$0xff]
  %v125 = vld [vmem:[%s0 + $0x98] sm:$0xff]
  %v126 = vld [vmem:[%s0 + $0xa0] sm:$0xff]
  %v127 = vld [vmem:[%s0 + $0xa8] sm:$0xff]
  %v128 = vld [vmem:[%s0 + $0xb0] sm:$0xff]
  %v129 = vld [vmem:[%s0 + $0xb8] sm:$0xff]
  %v130 = vld [vmem:[%s0 + $0xc0] sm:$0xff]
  %v131 = vld [vmem:[%s0 + $0xc8] sm:$0xff]
  %v132 = vld [vmem:[%s0 + $0xd0] sm:$0xff]
  %v133 = vld [vmem:[%s0 + $0xd8] sm:$0xff]
  %v134 = vld [vmem:[%s0 + $0xe0] sm:$0xff]
  %v135 = vld [vmem:[%s0 + $0xe8] sm:$0xff]
  %v136 = vld [vmem:[%s0 + $0xf0] sm:$0xff]
  %v137 = vld [vmem:[%s0 + $0xf8] sm:$0xff]
  %v138 = vld [vmem:[%s0 + $0x100] sm:$0xff]
  %v139 = vld [vmem:[%s0 + $0x108] sm:$0xff]
  %v140 = vld [vmem:[%s0 + $0x110] sm:$0xff]
  %v141 = vld [vmem:[%s0 + $0x118] sm:$0xff]
  %v142 = vld [vmem:[%s0 + $0x120] sm:$0xff]
  %v143 = vld [vmem:[%s0 + $0x128] sm:$0xff]
  %v144 = vld [vmem:[%s0 + $0x130] sm:$0xff]
  %v145 = vld [vmem:[%s0 + $0x138] sm:$0xff]
  %v146 = vld [vmem:[%s0 + $0x140] sm:$0xff]
  %v147 = vld [vmem:[%s0 + $0x148] sm:$0xff]
  %v148 = vld [vmem:[%s0 + $0x150] sm:$0xff]
  %v149 = vld [vmem:[%s0 + $0x158] sm:$0xff]
  %v150 = vld [vmem:[%s0 + $0x160] sm:$0xff]
  %v151 = vld [vmem:[%s0 + $0x168] sm:$0xff]
  %v152 = vld [vmem:[%s0 + $0x170] sm:$0xff]
  %v153 = vld [vmem:[%s0 + $0x178] sm:$0xff]
  %v154 = vld [vmem:[%s0 + $0x180] sm:$0xff]
  %v155 = vld [vmem:[%s0 + $0x188] sm:$0xff]
  %v156 = vld [vmem:[%s0 + $0x190] sm:$0xff]
  %v157 = vld [vmem:[%s0 + $0x198] sm:$0xff]
  %v158 = vld [vmem:[%s0 + $0x1a0] sm:$0xff]
  %v159 = vld [vmem:[%s0 + $0x1a8] sm:$0xff]
  %v160 = vld [vmem:[%s0 + $0x1b0] sm:$0xff]
  %v161 = vld [vmem:[%s0 + $0x1b8] sm:$0xff]
  %v162 = vld [vmem:[%s0 + $0x1c0] sm:$0xff]
  %v163 = vld [vmem:[%s0 + $0x1c8] sm:$0xff]
  %v164 = vld [vmem:[%s0 + $0x1d0] sm:$0xff]
  %v165 = vld [vmem:[%s0 + $0x1d8] sm:$0xff]
  %v166 = vld [vmem:[%s0 + $0x1e0] sm:$0xff]
  %v167 = vld [vmem:[%s0 + $0x1e8] sm:$0xff]
  %v168 = vld [vmem:[%s0 + $0x1f0] sm:$0xff]
  %v169 = vld [vmem:[%s0 + $0x1f8] sm:$0xff]
  %v170 = vmax.f32 %v106, 0.0
  %v171 = vmax.f32 %v107, 0.0
  %v172 = vmax.f32 %v108, 0.0
  %v173 = vmax.f32 %v109, 0.0
  %v174 = vmax.f32 %v110, 0.0
  %v175 = vmax.f32 %v111, 0.0
  %v176 = vmax.f32 %v112, 0.0
  %v177 = vmax.f32 %v113, 0.0
  %v178 = vmax.f32 %v114, 0.0
  %v179 = vmax.f32 %v115, 0.0
  %v180 = vmax.f32 %v116, 0.0
  %v181 = vmax.f32 %v117, 0.0
  %v182 = vmax.f32 %v118, 0.0
  %v183 = vmax.f32 %v119, 0.0
  %v184 = vmax.f32 %v120, 0.0
  %v185 = vmax.f32 %v121, 0.0
  %v186 = vmax.f32 %v122, 0.0
  %v187 = vmax.f32 %v123, 0.0
  %v188 = vmax.f32 %v124, 0.0
  %v189 = vmax.f32 %v125, 0.0
  %v190 = vmax.f32 %v126, 0.0
  %v191 = vmax.f32 %v127, 0.0
  %v192 = vmax.f32 %v128, 0.0
  %v193 = vmax.f32 %v129, 0.0
  %v194 = vmax.f32 %v130, 0.0
  %v195 = vmax.f32 %v131, 0.0
  %v196 = vmax.f32 %v132, 0.0
  %v197 = vmax.f32 %v133, 0.0
  %v198 = vmax.f32 %v134, 0.0
  %v199 = vmax.f32 %v135, 0.0
  %v200 = vmax.f32 %v136, 0.0
  %v201 = vmax.f32 %v137, 0.0
  %v202 = vmax.f32 %v138, 0.0
  %v203 = vmax.f32 %v139, 0.0
  %v204 = vmax.f32 %v140, 0.0
  %v205 = vmax.f32 %v141, 0.0
  %v206 = vmax.f32 %v142, 0.0
  %v207 = vmax.f32 %v143, 0.0
  %v208 = vmax.f32 %v144, 0.0
  %v209 = vmax.f32 %v145, 0.0
  %v210 = vmax.f32 %v146, 0.0
  %v211 = vmax.f32 %v147, 0.0
  %v212 = vmax.f32 %v148, 0.0
  %v213 = vmax.f32 %v149, 0.0
  %v214 = vmax.f32 %v150, 0.0
  %v215 = vmax.f32 %v151, 0.0
  %v216 = vmax.f32 %v152, 0.0
  %v217 = vmax.f32 %v153, 0.0
  %v218 = vmax.f32 %v154, 0.0
  %v219 = vmax.f32 %v155, 0.0
  %v220 = vmax.f32 %v156, 0.0
  %v221 = vmax.f32 %v157, 0.0
  %v222 = vmax.f32 %v158, 0.0
  %v223 = vmax.f32 %v159, 0.0
  %v224 = vmax.f32 %v160, 0.0
  %v225 = vmax.f32 %v161, 0.0
  %v226 = vmax.f32 %v162, 0.0
  %v227 = vmax.f32 %v163, 0.0
  %v228 = vmax.f32 %v164, 0.0
  %v229 = vmax.f32 %v165, 0.0
  %v230 = vmax.f32 %v166, 0.0
  %v231 = vmax.f32 %v167, 0.0
  %v232 = vmax.f32 %v168, 0.0
  %v233 = vmax.f32 %v169, 0.0
  %v234 = vpack.c.bf16 %v171, %v170
  %v235 = vpack.c.bf16 %v173, %v172
  %v236 = vpack.c.bf16 %v175, %v174
  %v237 = vpack.c.bf16 %v177, %v176
  %v238 = vpack.c.bf16 %v179, %v178
  %v239 = vpack.c.bf16 %v181, %v180
  %v240 = vpack.c.bf16 %v183, %v182
  %v241 = vpack.c.bf16 %v185, %v184
  %v242 = vpack.c.bf16 %v187, %v186
  %v243 = vpack.c.bf16 %v189, %v188
  %v244 = vpack.c.bf16 %v191, %v190
  %v245 = vpack.c.bf16 %v193, %v192
  %v246 = vpack.c.bf16 %v195, %v194
  %v247 = vpack.c.bf16 %v197, %v196
  %v248 = vpack.c.bf16 %v199, %v198
  %v249 = vpack.c.bf16 %v201, %v200
  %v250 = vpack.c.bf16 %v203, %v202
  %v251 = vpack.c.bf16 %v205, %v204
  %v252 = vpack.c.bf16 %v207, %v206
  %v253 = vpack.c.bf16 %v209, %v208
  %v254 = vpack.c.bf16 %v211, %v210
  %v255 = vpack.c.bf16 %v213, %v212
  %v256 = vpack.c.bf16 %v215, %v214
  %v257 = vpack.c.bf16 %v217, %v216
  %v258 = vpack.c.bf16 %v219, %v218
  %v259 = vpack.c.bf16 %v221, %v220
  %v260 = vpack.c.bf16 %v223, %v222
  %v261 = vpack.c.bf16 %v225, %v224
  %v262 = vpack.c.bf16 %v227, %v226
  %v263 = vpack.c.bf16 %v229, %v228
  %v264 = vpack.c.bf16 %v231, %v230
  %v265 = vpack.c.bf16 %v233, %v232
  %v298 = vunpack.c.l.b16 %v234
  %v299 = vunpack.c.h.b16 %v234
  %v300 = vunpack.c.l.b16 %v235
  %v301 = vunpack.c.h.b16 %v235
  %v302 = vunpack.c.l.b16 %v236
  %v303 = vunpack.c.h.b16 %v236
  %v304 = vunpack.c.l.b16 %v237
  %v305 = vunpack.c.h.b16 %v237
  %v306 = vunpack.c.l.b16 %v238
  %v307 = vunpack.c.h.b16 %v238
  %v308 = vunpack.c.l.b16 %v239
  %v309 = vunpack.c.h.b16 %v239
  %v310 = vunpack.c.l.b16 %v240
  %v311 = vunpack.c.h.b16 %v240
  %v312 = vunpack.c.l.b16 %v241
  %v313 = vunpack.c.h.b16 %v241
  %v314 = vunpack.c.l.b16 %v242
  %v315 = vunpack.c.h.b16 %v242
  %v316 = vunpack.c.l.b16 %v243
  %v317 = vunpack.c.h.b16 %v243
  %v318 = vunpack.c.l.b16 %v244
  %v319 = vunpack.c.h.b16 %v244
  %v320 = vunpack.c.l.b16 %v245
  %v321 = vunpack.c.h.b16 %v245
  %v322 = vunpack.c.l.b16 %v246
  %v323 = vunpack.c.h.b16 %v246
  %v324 = vunpack.c.l.b16 %v247
  %v325 = vunpack.c.h.b16 %v247
  %v326 = vunpack.c.l.b16 %v248
  %v327 = vunpack.c.h.b16 %v248
  %v328 = vunpack.c.l.b16 %v249
  %v329 = vunpack.c.h.b16 %v249
  %v330 = vunpack.c.l.b16 %v250
  %v331 = vunpack.c.h.b16 %v250
  %v332 = vunpack.c.l.b16 %v251
  %v333 = vunpack.c.h.b16 %v251
  %v334 = vunpack.c.l.b16 %v252
  %v335 = vunpack.c.h.b16 %v252
  %v336 = vunpack.c.l.b16 %v253
  %v337 = vunpack.c.h.b16 %v253
  %v338 = vunpack.c.l.b16 %v254
  %v339 = vunpack.c.h.b16 %v254
  %v340 = vunpack.c.l.b16 %v255
  %v341 = vunpack.c.h.b16 %v255
  %v342 = vunpack.c.l.b16 %v256
  %v343 = vunpack.c.h.b16 %v256
  %v344 = vunpack.c.l.b16 %v257
  %v345 = vunpack.c.h.b16 %v257
  %v346 = vunpack.c.l.b16 %v258
  %v347 = vunpack.c.h.b16 %v258
  %v348 = vunpack.c.l.b16 %v259
  %v349 = vunpack.c.h.b16 %v259
  %v350 = vunpack.c.l.b16 %v260
  %v351 = vunpack.c.h.b16 %v260
  %v352 = vunpack.c.l.b16 %v261
  %v353 = vunpack.c.h.b16 %v261
  %v354 = vunpack.c.l.b16 %v262
  %v355 = vunpack.c.h.b16 %v262
  %v356 = vunpack.c.l.b16 %v263
  %v357 = vunpack.c.h.b16 %v263
  %v358 = vunpack.c.l.b16 %v264
  %v359 = vunpack.c.h.b16 %v264
  %v360 = vunpack.c.l.b16 %v265
  %v361 = vunpack.c.h.b16 %v265
  %v362 = vpack.c.b16 %v298, %v298
  %v363 = vpack.c.b16 %v299, %v299
  %v364 = vpack.c.b16 %v300, %v300
  %v365 = vpack.c.b16 %v301, %v301
  %v366 = vpack.c.b16 %v302, %v302
  %v367 = vpack.c.b16 %v303, %v303
  %v368 = vpack.c.b16 %v304, %v304
  %v369 = vpack.c.b16 %v305, %v305
  %v370 = vpack.c.b16 %v306, %v306
  %v371 = vpack.c.b16 %v307, %v307
  %v372 = vpack.c.b16 %v308, %v308
  %v373 = vpack.c.b16 %v309, %v309
  %v374 = vpack.c.b16 %v310, %v310
  %v375 = vpack.c.b16 %v311, %v311
  %v376 = vpack.c.b16 %v312, %v312
  %v377 = vpack.c.b16 %v313, %v313
  %v378 = vpack.c.b16 %v314, %v314
  %v379 = vpack.c.b16 %v315, %v315
  %v380 = vpack.c.b16 %v316, %v316
  %v381 = vpack.c.b16 %v317, %v317
  %v382 = vpack.c.b16 %v318, %v318
  %v383 = vpack.c.b16 %v319, %v319
  %v384 = vpack.c.b16 %v320, %v320
  %v385 = vpack.c.b16 %v321, %v321
  %v386 = vpack.c.b16 %v322, %v322
  %v387 = vpack.c.b16 %v323, %v323
  %v388 = vpack.c.b16 %v324, %v324
  %v389 = vpack.c.b16 %v325, %v325
  %v390 = vpack.c.b16 %v326, %v326
  %v391 = vpack.c.b16 %v327, %v327
  %v392 = vpack.c.b16 %v328, %v328
  %v393 = vpack.c.b16 %v329, %v329
  %v394 = vpack.c.b16 %v330, %v330
  %v395 = vpack.c.b16 %v331, %v331
  %v396 = vpack.c.b16 %v332, %v332
  %v397 = vpack.c.b16 %v333, %v333
  %v398 = vpack.c.b16 %v334, %v334
  %v399 = vpack.c.b16 %v335, %v335
  %v400 = vpack.c.b16 %v336, %v336
  %v401 = vpack.c.b16 %v337, %v337
  %v402 = vpack.c.b16 %v338, %v338
  %v403 = vpack.c.b16 %v339, %v339
  %v404 = vpack.c.b16 %v340, %v340
  %v405 = vpack.c.b16 %v341, %v341
  %v406 = vpack.c.b16 %v342, %v342
  %v407 = vpack.c.b16 %v343, %v343
  %v408 = vpack.c.b16 %v344, %v344
  %v409 = vpack.c.b16 %v345, %v345
  %v410 = vpack.c.b16 %v346, %v346
  %v411 = vpack.c.b16 %v347, %v347
  %v412 = vpack.c.b16 %v348, %v348
  %v413 = vpack.c.b16 %v349, %v349
  %v414 = vpack.c.b16 %v350, %v350
  %v415 = vpack.c.b16 %v351, %v351
  %v416 = vpack.c.b16 %v352, %v352
  %v417 = vpack.c.b16 %v353, %v353
  %v418 = vpack.c.b16 %v354, %v354
  %v419 = vpack.c.b16 %v355, %v355
  %v420 = vpack.c.b16 %v356, %v356
  %v421 = vpack.c.b16 %v357, %v357
  %v422 = vpack.c.b16 %v358, %v358
  %v423 = vpack.c.b16 %v359, %v359
  %v424 = vpack.c.b16 %v360, %v360
  %v425 = vpack.c.b16 %v361, %v361
  %vm426 = vcmask 1040384
  %vm427 = vcmask 1044484
  %vm428 = vmor %vm426, %vm427
  %v429 = vrot.slane %v362, 7
  %v430 = vrot.slane %v429, 4
  %v431 = vrot.slane %v363, 7
  %v432 = vsel %vm428, %v430, %v431
  %v433 = vrot.slane %v431, 4
  %v434 = vrot.slane %v364, 7
  %v435 = vrot.slane %v434, 4
  %v436 = vrot.slane %v365, 7
  %v437 = vsel %vm428, %v435, %v436
  %v438 = vrot.slane %v436, 4
  %v439 = vrot.slane %v366, 7
  %v440 = vrot.slane %v439, 4
  %v441 = vrot.slane %v367, 7
  %v442 = vsel %vm428, %v440, %v441
  %v443 = vrot.slane %v441, 4
  %v444 = vrot.slane %v368, 7
  %v445 = vrot.slane %v444, 4
  %v446 = vrot.slane %v369, 7
  %v447 = vsel %vm428, %v445, %v446
  %v448 = vrot.slane %v446, 4
  %v449 = vrot.slane %v370, 7
  %v450 = vrot.slane %v449, 4
  %v451 = vrot.slane %v371, 7
  %v452 = vsel %vm428, %v450, %v451
  %v453 = vrot.slane %v451, 4
  %v454 = vrot.slane %v372, 7
  %v455 = vrot.slane %v454, 4
  %v456 = vrot.slane %v373, 7
  %v457 = vsel %vm428, %v455, %v456
  %v458 = vrot.slane %v456, 4
  %v459 = vrot.slane %v374, 7
  %v460 = vrot.slane %v459, 4
  %v461 = vrot.slane %v375, 7
  %v462 = vsel %vm428, %v460, %v461
  %v463 = vrot.slane %v461, 4
  %v464 = vrot.slane %v376, 7
  %v465 = vrot.slane %v464, 4
  %v466 = vrot.slane %v377, 7
  %v467 = vsel %vm428, %v465, %v466
  %v468 = vrot.slane %v466, 4
  %v469 = vrot.slane %v378, 7
  %v470 = vrot.slane %v469, 4
  %v471 = vrot.slane %v379, 7
  %v472 = vsel %vm428, %v470, %v471
  %v473 = vrot.slane %v471, 4
  %v474 = vrot.slane %v380, 7
  %v475 = vrot.slane %v474, 4
  %v476 = vrot.slane %v381, 7
  %v477 = vsel %vm428, %v475, %v476
  %v478 = vrot.slane %v476, 4
  %v479 = vrot.slane %v382, 7
  %v480 = vrot.slane %v479, 4
  %v481 = vrot.slane %v383, 7
  %v482 = vsel %vm428, %v480, %v481
  %v483 = vrot.slane %v481, 4
  %v484 = vrot.slane %v384, 7
  %v485 = vrot.slane %v484, 4
  %v486 = vrot.slane %v385, 7
  %v487 = vsel %vm428, %v485, %v486
  %v488 = vrot.slane %v486, 4
  %v489 = vrot.slane %v386, 7
  %v490 = vrot.slane %v489, 4
  %v491 = vrot.slane %v387, 7
  %v492 = vsel %vm428, %v490, %v491
  %v493 = vrot.slane %v491, 4
  %v494 = vrot.slane %v388, 7
  %v495 = vrot.slane %v494, 4
  %v496 = vrot.slane %v389, 7
  %v497 = vsel %vm428, %v495, %v496
  %v498 = vrot.slane %v496, 4
  %v499 = vrot.slane %v390, 7
  %v500 = vrot.slane %v499, 4
  %v501 = vrot.slane %v391, 7
  %v502 = vsel %vm428, %v500, %v501
  %v503 = vrot.slane %v501, 4
  %v504 = vrot.slane %v392, 7
  %v505 = vrot.slane %v504, 4
  %v506 = vrot.slane %v393, 7
  %v507 = vsel %vm428, %v505, %v506
  %v508 = vrot.slane %v506, 4
  %v509 = vrot.slane %v394, 7
  %v510 = vrot.slane %v509, 4
  %v511 = vrot.slane %v395, 7
  %v512 = vsel %vm428, %v510, %v511
  %v513 = vrot.slane %v511, 4
  %v514 = vrot.slane %v396, 7
  %v515 = vrot.slane %v514, 4
  %v516 = vrot.slane %v397, 7
  %v517 = vsel %vm428, %v515, %v516
  %v518 = vrot.slane %v516, 4
  %v519 = vrot.slane %v398, 7
  %v520 = vrot.slane %v519, 4
  %v521 = vrot.slane %v399, 7
  %v522 = vsel %vm428, %v520, %v521
  %v523 = vrot.slane %v521, 4
  %v524 = vrot.slane %v400, 7
  %v525 = vrot.slane %v524, 4
  %v526 = vrot.slane %v401, 7
  %v527 = vsel %vm428, %v525, %v526
  %v528 = vrot.slane %v526, 4
  %v529 = vrot.slane %v402, 7
  %v530 = vrot.slane %v529, 4
  %v531 = vrot.slane %v403, 7
  %v532 = vsel %vm428, %v530, %v531
  %v533 = vrot.slane %v531, 4
  %v534 = vrot.slane %v404, 7
  %v535 = vrot.slane %v534, 4
  %v536 = vrot.slane %v405, 7
  %v537 = vsel %vm428, %v535, %v536
  %v538 = vrot.slane %v536, 4
  %v539 = vrot.slane %v406, 7
  %v540 = vrot.slane %v539, 4
  %v541 = vrot.slane %v407, 7
  %v542 = vsel %vm428, %v540, %v541
  %v543 = vrot.slane %v541, 4
  %v544 = vrot.slane %v408, 7
  %v545 = vrot.slane %v544, 4
  %v546 = vrot.slane %v409, 7
  %v547 = vsel %vm428, %v545, %v546
  %v548 = vrot.slane %v546, 4
  %v549 = vrot.slane %v410, 7
  %v550 = vrot.slane %v549, 4
  %v551 = vrot.slane %v411, 7
  %v552 = vsel %vm428, %v550, %v551
  %v553 = vrot.slane %v551, 4
  %v554 = vrot.slane %v412, 7
  %v555 = vrot.slane %v554, 4
  %v556 = vrot.slane %v413, 7
  %v557 = vsel %vm428, %v555, %v556
  %v558 = vrot.slane %v556, 4
  %v559 = vrot.slane %v414, 7
  %v560 = vrot.slane %v559, 4
  %v561 = vrot.slane %v415, 7
  %v562 = vsel %vm428, %v560, %v561
  %v563 = vrot.slane %v561, 4
  %v564 = vrot.slane %v416, 7
  %v565 = vrot.slane %v564, 4
  %v566 = vrot.slane %v417, 7
  %v567 = vsel %vm428, %v565, %v566
  %v568 = vrot.slane %v566, 4
  %v569 = vrot.slane %v418, 7
  %v570 = vrot.slane %v569, 4
  %v571 = vrot.slane %v419, 7
  %v572 = vsel %vm428, %v570, %v571
  %v573 = vrot.slane %v571, 4
  %v574 = vrot.slane %v420, 7
  %v575 = vrot.slane %v574, 4
  %v576 = vrot.slane %v421, 7
  %v577 = vsel %vm428, %v575, %v576
  %v578 = vrot.slane %v576, 4
  %v579 = vrot.slane %v422, 7
  %v580 = vrot.slane %v579, 4
  %v581 = vrot.slane %v423, 7
  %v582 = vsel %vm428, %v580, %v581
  %v583 = vrot.slane %v581, 4
  %v584 = vrot.slane %v424, 7
  %v585 = vrot.slane %v584, 4
  %v586 = vrot.slane %v425, 7
  %v587 = vsel %vm428, %v585, %v586
  %v588 = vrot.slane %v586, 4
  %vm685 = vcmask 27649
  %686 = vst.msk [vmem:[%s39] sm:$0xe] %vm685, %v429
  %687 = vst.msk [vmem:[%s39 + $0x4] sm:$0xf] %vm12, %v432
  %688 = vst.msk [vmem:[%s39 + $0x8] sm:$0x1] %vm40, %v433
  %689 = vst.msk [vmem:[%s39 + $0xc] sm:$0xe] %vm685, %v434
  %690 = vst.msk [vmem:[%s39 + $0x10] sm:$0xf] %vm12, %v437
  %691 = vst.msk [vmem:[%s39 + $0x14] sm:$0x1] %vm40, %v438
  %692 = vst.msk [vmem:[%s39 + $0x18] sm:$0xe] %vm685, %v439
  %693 = vst.msk [vmem:[%s39 + $0x1c] sm:$0xf] %vm12, %v442
  %694 = vst.msk [vmem:[%s39 + $0x20] sm:$0x1] %vm40, %v443
  %695 = vst.msk [vmem:[%s39 + $0x24] sm:$0xe] %vm685, %v444
  %696 = vst.msk [vmem:[%s39 + $0x28] sm:$0xf] %vm12, %v447
  %697 = vst.msk [vmem:[%s39 + $0x2c] sm:$0x1] %vm40, %v448
  %698 = vst.msk [vmem:[%s39 + $0x30] sm:$0xe] %vm685, %v449
  %699 = vst.msk [vmem:[%s39 + $0x34] sm:$0xf] %vm12, %v452
  %700 = vst.msk [vmem:[%s39 + $0x38] sm:$0x1] %vm40, %v453
  %701 = vst.msk [vmem:[%s39 + $0x3c] sm:$0xe] %vm685, %v454
  %702 = vst.msk [vmem:[%s39 + $0x40] sm:$0xf] %vm12, %v457
  %703 = vst.msk [vmem:[%s39 + $0x44] sm:$0x1] %vm40, %v458
  %704 = vst.msk [vmem:[%s39 + $0x48] sm:$0xe] %vm685, %v459
  %705 = vst.msk [vmem:[%s39 + $0x4c] sm:$0xf] %vm12, %v462
  %706 = vst.msk [vmem:[%s39 + $0x50] sm:$0x1] %vm40, %v463
  %707 = vst.msk [vmem:[%s39 + $0x54] sm:$0xe] %vm685, %v464
  %708 = vst.msk [vmem:[%s39 + $0x58] sm:$0xf] %vm12, %v467
  %709 = vst.msk [vmem:[%s39 + $0x5c] sm:$0x1] %vm40, %v468
  %710 = vst.msk [vmem:[%s39 + $0x60] sm:$0xe] %vm685, %v469
  %711 = vst.msk [vmem:[%s39 + $0x64] sm:$0xf] %vm12, %v472
  %712 = vst.msk [vmem:[%s39 + $0x68] sm:$0x1] %vm40, %v473
  %713 = vst.msk [vmem:[%s39 + $0x6c] sm:$0xe] %vm685, %v474
  %714 = vst.msk [vmem:[%s39 + $0x70] sm:$0xf] %vm12, %v477
  %715 = vst.msk [vmem:[%s39 + $0x74] sm:$0x1] %vm40, %v478
  %716 = vst.msk [vmem:[%s39 + $0x78] sm:$0xe] %vm685, %v479
  %717 = vst.msk [vmem:[%s39 + $0x7c] sm:$0xf] %vm12, %v482
  %718 = vst.msk [vmem:[%s39 + $0x80] sm:$0x1] %vm40, %v483
  %719 = vst.msk [vmem:[%s39 + $0x84] sm:$0xe] %vm685, %v484
  %720 = vst.msk [vmem:[%s39 + $0x88] sm:$0xf] %vm12, %v487
  %721 = vst.msk [vmem:[%s39 + $0x8c] sm:$0x1] %vm40, %v488
  %722 = vst.msk [vmem:[%s39 + $0x90] sm:$0xe] %vm685, %v489
  %723 = vst.msk [vmem:[%s39 + $0x94] sm:$0xf] %vm12, %v492
  %724 = vst.msk [vmem:[%s39 + $0x98] sm:$0x1] %vm40, %v493
  %725 = vst.msk [vmem:[%s39 + $0x9c] sm:$0xe] %vm685, %v494
  %726 = vst.msk [vmem:[%s39 + $0xa0] sm:$0xf] %vm12, %v497
  %727 = vst.msk [vmem:[%s39 + $0xa4] sm:$0x1] %vm40, %v498
  %728 = vst.msk [vmem:[%s39 + $0xa8] sm:$0xe] %vm685, %v499
  %729 = vst.msk [vmem:[%s39 + $0xac] sm:$0xf] %vm12, %v502
  %730 = vst.msk [vmem:[%s39 + $0xb0] sm:$0x1] %vm40, %v503
  %731 = vst.msk [vmem:[%s39 + $0xb4] sm:$0xe] %vm685, %v504
  %732 = vst.msk [vmem:[%s39 + $0xb8] sm:$0xf] %vm12, %v507
  %733 = vst.msk [vmem:[%s39 + $0xbc] sm:$0x1] %vm40, %v508
  %734 = vst.msk [vmem:[%s39 + $0xf0] sm:$0xe] %vm685, %v509
  %735 = vst.msk [vmem:[%s39 + $0xf4] sm:$0xf] %vm12, %v512
  %736 = vst.msk [vmem:[%s39 + $0xf8] sm:$0x1] %vm40, %v513
  %737 = vst.msk [vmem:[%s39 + $0xfc] sm:$0xe] %vm685, %v514
  %738 = vst.msk [vmem:[%s39 + $0x100] sm:$0xf] %vm12, %v517
  %739 = vst.msk [vmem:[%s39 + $0x104] sm:$0x1] %vm40, %v518
  %740 = vst.msk [vmem:[%s39 + $0x108] sm:$0xe] %vm685, %v519
  %741 = vst.msk [vmem:[%s39 + $0x10c] sm:$0xf] %vm12, %v522
  %742 = vst.msk [vmem:[%s39 + $0x110] sm:$0x1] %vm40, %v523
  %743 = vst.msk [vmem:[%s39 + $0x114] sm:$0xe] %vm685, %v524
  %744 = vst.msk [vmem:[%s39 + $0x118] sm:$0xf] %vm12, %v527
  %745 = vst.msk [vmem:[%s39 + $0x11c] sm:$0x1] %vm40, %v528
  %746 = vst.msk [vmem:[%s39 + $0x120] sm:$0xe] %vm685, %v529
  %747 = vst.msk [vmem:[%s39 + $0x124] sm:$0xf] %vm12, %v532
  %748 = vst.msk [vmem:[%s39 + $0x128] sm:$0x1] %vm40, %v533
  %749 = vst.msk [vmem:[%s39 + $0x12c] sm:$0xe] %vm685, %v534
  %750 = vst.msk [vmem:[%s39 + $0x130] sm:$0xf] %vm12, %v537
  %751 = vst.msk [vmem:[%s39 + $0x134] sm:$0x1] %vm40, %v538
  %752 = vst.msk [vmem:[%s39 + $0x138] sm:$0xe] %vm685, %v539
  %753 = vst.msk [vmem:[%s39 + $0x13c] sm:$0xf] %vm12, %v542
  %754 = vst.msk [vmem:[%s39 + $0x140] sm:$0x1] %vm40, %v543
  %755 = vst.msk [vmem:[%s39 + $0x144] sm:$0xe] %vm685, %v544
  %756 = vst.msk [vmem:[%s39 + $0x148] sm:$0xf] %vm12, %v547
  %757 = vst.msk [vmem:[%s39 + $0x14c] sm:$0x1] %vm40, %v548
  %758 = vst.msk [vmem:[%s39 + $0x150] sm:$0xe] %vm685, %v549
  %759 = vst.msk [vmem:[%s39 + $0x154] sm:$0xf] %vm12, %v552
  %760 = vst.msk [vmem:[%s39 + $0x158] sm:$0x1] %vm40, %v553
  %761 = vst.msk [vmem:[%s39 + $0x15c] sm:$0xe] %vm685, %v554
  %762 = vst.msk [vmem:[%s39 + $0x160] sm:$0xf] %vm12, %v557
  %763 = vst.msk [vmem:[%s39 + $0x164] sm:$0x1] %vm40, %v558
  %764 = vst.msk [vmem:[%s39 + $0x168] sm:$0xe] %vm685, %v559
  %765 = vst.msk [vmem:[%s39 + $0x16c] sm:$0xf] %vm12, %v562
  %766 = vst.msk [vmem:[%s39 + $0x170] sm:$0x1] %vm40, %v563
  %767 = vst.msk [vmem:[%s39 + $0x174] sm:$0xe] %vm685, %v564
  %768 = vst.msk [vmem:[%s39 + $0x178] sm:$0xf] %vm12, %v567
  %769 = vst.msk [vmem:[%s39 + $0x17c] sm:$0x1] %vm40, %v568
  %770 = vst.msk [vmem:[%s39 + $0x180] sm:$0xe] %vm685, %v569
  %771 = vst.msk [vmem:[%s39 + $0x184] sm:$0xf] %vm12, %v572
  %772 = vst.msk [vmem:[%s39 + $0x188] sm:$0x1] %vm40, %v573
  %773 = vst.msk [vmem:[%s39 + $0x18c] sm:$0xe] %vm685, %v574
  %774 = vst.msk [vmem:[%s39 + $0x190] sm:$0xf] %vm12, %v577
  %775 = vst.msk [vmem:[%s39 + $0x194] sm:$0x1] %vm40, %v578
  %776 = vst.msk [vmem:[%s39 + $0x198] sm:$0xe] %vm685, %v579
  %777 = vst.msk [vmem:[%s39 + $0x19c] sm:$0xf] %vm12, %v582
  %778 = vst.msk [vmem:[%s39 + $0x1a0] sm:$0x1] %vm40, %v583
  %779 = vst.msk [vmem:[%s39 + $0x1a4] sm:$0xe] %vm685, %v584
  %780 = vst.msk [vmem:[%s39 + $0x1a8] sm:$0xf] %vm12, %v587
  %781 = vst.msk [vmem:[%s39 + $0x1ac] sm:$0x1] %vm40, %v588
  %v782 = vld [vmem:[#allocation2] sm:$0xf]
  %v783 = vld [vmem:[#allocation2 + $0x4] sm:$0xf]
  %v784 = vld [vmem:[#allocation2 + $0xc] sm:$0xf]
  %v785 = vld [vmem:[#allocation2 + $0x10] sm:$0xf]
  %v786 = vld [vmem:[#allocation2 + $0x18] sm:$0xf]
  %v787 = vld [vmem:[#allocation2 + $0x1c] sm:$0xf]
  %v788 = vld [vmem:[#allocation2 + $0x24] sm:$0xf]
  %v789 = vld [vmem:[#allocation2 + $0x28] sm:$0xf]
  %v790 = vld [vmem:[#allocation2 + $0x30] sm:$0xf]
  %v791 = vld [vmem:[#allocation2 + $0x34] sm:$0xf]
  %v792 = vld [vmem:[#allocation2 + $0x3c] sm:$0xf]
  %v793 = vld [vmem:[#allocation2 + $0x40] sm:$0xf]
  %v794 = vld [vmem:[#allocation2 + $0x48] sm:$0xf]
  %v795 = vld [vmem:[#allocation2 + $0x4c] sm:$0xf]
  %v796 = vld [vmem:[#allocation2 + $0x54] sm:$0xf]
  %v797 = vld [vmem:[#allocation2 + $0x58] sm:$0xf]
  %v798 = vld [vmem:[#allocation2 + $0x60] sm:$0xf]
  %v799 = vld [vmem:[#allocation2 + $0x64] sm:$0xf]
  %v800 = vld [vmem:[#allocation2 + $0x6c] sm:$0xf]
  %v801 = vld [vmem:[#allocation2 + $0x70] sm:$0xf]
  %v802 = vld [vmem:[#allocation2 + $0x78] sm:$0xf]
  %v803 = vld [vmem:[#allocation2 + $0x7c] sm:$0xf]
  %v804 = vld [vmem:[#allocation2 + $0x84] sm:$0xf]
  %v805 = vld [vmem:[#allocation2 + $0x88] sm:$0xf]
  %v806 = vld [vmem:[#allocation2 + $0x90] sm:$0xf]
  %v807 = vld [vmem:[#allocation2 + $0x94] sm:$0xf]
  %v808 = vld [vmem:[#allocation2 + $0x9c] sm:$0xf]
  %v809 = vld [vmem:[#allocation2 + $0xa0] sm:$0xf]
  %v810 = vld [vmem:[#allocation2 + $0xa8] sm:$0xf]
  %v811 = vld [vmem:[#allocation2 + $0xac] sm:$0xf]
  %v812 = vld [vmem:[#allocation2 + $0xb4] sm:$0xf]
  %v813 = vld [vmem:[#allocation2 + $0xb8] sm:$0xf]
  %v814 = vld [vmem:[#allocation2 + $0xf0] sm:$0xf]
  %v815 = vld [vmem:[#allocation2 + $0xf4] sm:$0xf]
  %v816 = vld [vmem:[#allocation2 + $0xfc] sm:$0xf]
  %v817 = vld [vmem:[#allocation2 + $0x100] sm:$0xf]
  %v818 = vld [vmem:[#allocation2 + $0x108] sm:$0xf]
  %v819 = vld [vmem:[#allocation2 + $0x10c] sm:$0xf]
  %v820 = vld [vmem:[#allocation2 + $0x114] sm:$0xf]
  %v821 = vld [vmem:[#allocation2 + $0x118] sm:$0xf]
  %v822 = vld [vmem:[#allocation2 + $0x120] sm:$0xf]
  %v823 = vld [vmem:[#allocation2 + $0x124] sm:$0xf]
  %v824 = vld [vmem:[#allocation2 + $0x12c] sm:$0xf]
  %v825 = vld [vmem:[#allocation2 + $0x130] sm:$0xf]
  %v826 = vld [vmem:[#allocation2 + $0x138] sm:$0xf]
  %v827 = vld [vmem:[#allocation2 + $0x13c] sm:$0xf]
  %v828 = vld [vmem:[#allocation2 + $0x144] sm:$0xf]
  %v829 = vld [vmem:[#allocation2 + $0x148] sm:$0xf]
  %v830 = vld [vmem:[#allocation2 + $0x150] sm:$0xf]
  %v831 = vld [vmem:[#allocation2 + $0x154] sm:$0xf]
  %v832 = vld [vmem:[#allocation2 + $0x15c] sm:$0xf]
  %v833 = vld [vmem:[#allocation2 + $0x160] sm:$0xf]
  %v834 = vld [vmem:[#allocation2 + $0x168] sm:$0xf]
  %v835 = vld [vmem:[#allocation2 + $0x16c] sm:$0xf]
  %v836 = vld [vmem:[#allocation2 + $0x174] sm:$0xf]
  %v837 = vld [vmem:[#allocation2 + $0x178] sm:$0xf]
  %v838 = vld [vmem:[#allocation2 + $0x180] sm:$0xf]
  %v839 = vld [vmem:[#allocation2 + $0x184] sm:$0xf]
  %v840 = vld [vmem:[#allocation2 + $0x18c] sm:$0xf]
  %v841 = vld [vmem:[#allocation2 + $0x190] sm:$0xf]
  %v842 = vld [vmem:[#allocation2 + $0x198] sm:$0xf]
  %v843 = vld [vmem:[#allocation2 + $0x19c] sm:$0xf]
  %v844 = vld [vmem:[#allocation2 + $0x1a4] sm:$0xf]
  %v845 = vld [vmem:[#allocation2 + $0x1a8] sm:$0xf]
  %846 = vst.msk [vmem:[#allocation3] sm:$0xf] %vm12, %v782
  %847 = vst.msk [vmem:[#allocation3 + $0x4] sm:$0xf] %vm12, %v783
  %848 = vst.msk [vmem:[#allocation3 + $0x8] sm:$0xf] %vm12, %v784
  %849 = vst.msk [vmem:[#allocation3 + $0xc] sm:$0xf] %vm12, %v785
  %850 = vst.msk [vmem:[#allocation3 + $0x10] sm:$0xf] %vm12, %v786
  %851 = vst.msk [vmem:[#allocation3 + $0x14] sm:$0xf] %vm12, %v787
  %852 = vst.msk [vmem:[#allocation3 + $0x18] sm:$0xf] %vm12, %v788
  %853 = vst.msk [vmem:[#allocation3 + $0x1c] sm:$0xf] %vm12, %v789
  %854 = vst.msk [vmem:[#allocation3 + $0x20] sm:$0xf] %vm12, %v790
  %855 = vst.msk [vmem:[#allocation3 + $0x24] sm:$0xf] %vm12, %v791
  %856 = vst.msk [vmem:[#allocation3 + $0x28] sm:$0xf] %vm12, %v792
  %857 = vst.msk [vmem:[#allocation3 + $0x2c] sm:$0xf] %vm12, %v793
  %858 = vst.msk [vmem:[#allocation3 + $0x30] sm:$0xf] %vm12, %v794
  %859 = vst.msk [vmem:[#allocation3 + $0x34] sm:$0xf] %vm12, %v795
  %860 = vst.msk [vmem:[#allocation3 + $0x38] sm:$0xf] %vm12, %v796
  %861 = vst.msk [vmem:[#allocation3 + $0x3c] sm:$0xf] %vm12, %v797
  %862 = vst.msk [vmem:[#allocation3 + $0x40] sm:$0xf] %vm12, %v798
  %863 = vst.msk [vmem:[#allocation3 + $0x44] sm:$0xf] %vm12, %v799
  %864 = vst.msk [vmem:[#allocation3 + $0x48] sm:$0xf] %vm12, %v800
  %865 = vst.msk [vmem:[#allocation3 + $0x4c] sm:$0xf] %vm12, %v801
  %866 = vst.msk [vmem:[#allocation3 + $0x50] sm:$0xf] %vm12, %v802
  %867 = vst.msk [vmem:[#allocation3 + $0x54] sm:$0xf] %vm12, %v803
  %868 = vst.msk [vmem:[#allocation3 + $0x58] sm:$0xf] %vm12, %v804
  %869 = vst.msk [vmem:[#allocation3 + $0x5c] sm:$0xf] %vm12, %v805
  %870 = vst.msk [vmem:[#allocation3 + $0x60] sm:$0xf] %vm12, %v806
  %871 = vst.msk [vmem:[#allocation3 + $0x64] sm:$0xf] %vm12, %v807
  %872 = vst.msk [vmem:[#allocation3 + $0x68] sm:$0xf] %vm12, %v808
  %873 = vst.msk [vmem:[#allocation3 + $0x6c] sm:$0xf] %vm12, %v809
  %874 = vst.msk [vmem:[#allocation3 + $0x70] sm:$0xf] %vm12, %v810
  %875 = vst.msk [vmem:[#allocation3 + $0x74] sm:$0xf] %vm12, %v811
  %876 = vst.msk [vmem:[#allocation3 + $0x78] sm:$0xf] %vm12, %v812
  %877 = vst.msk [vmem:[#allocation3 + $0x7c] sm:$0xf] %vm12, %v813
  %878 = vst.msk [vmem:[#allocation3 + $0x80] sm:$0xf] %vm12, %v814
  %879 = vst.msk [vmem:[#allocation3 + $0x84] sm:$0xf] %vm12, %v815
  %880 = vst.msk [vmem:[#allocation3 + $0x88] sm:$0xf] %vm12, %v816
  %881 = vst.msk [vmem:[#allocation3 + $0x8c] sm:$0xf] %vm12, %v817
  %882 = vst.msk [vmem:[#allocation3 + $0x90] sm:$0xf] %vm12, %v818
  %883 = vst.msk [vmem:[#allocation3 + $0x94] sm:$0xf] %vm12, %v819
  %884 = vst.msk [vmem:[#allocation3 + $0x98] sm:$0xf] %vm12, %v820
  %885 = vst.msk [vmem:[#allocation3 + $0x9c] sm:$0xf] %vm12, %v821
  %886 = vst.msk [vmem:[#allocation3 + $0xa0] sm:$0xf] %vm12, %v822
  %887 = vst.msk [vmem:[#allocation3 + $0xa4] sm:$0xf] %vm12, %v823
  %888 = vst.msk [vmem:[#allocation3 + $0xa8] sm:$0xf] %vm12, %v824
  %889 = vst.msk [vmem:[#allocation3 + $0xac] sm:$0xf] %vm12, %v825
  %890 = vst.msk [vmem:[#allocation3 + $0xb0] sm:$0xf] %vm12, %v826
  %891 = vst.msk [vmem:[#allocation3 + $0xb4] sm:$0xf] %vm12, %v827
  %892 = vst.msk [vmem:[#allocation3 + $0xb8] sm:$0xf] %vm12, %v828
  %893 = vst.msk [vmem:[#allocation3 + $0xbc] sm:$0xf] %vm12, %v829
  %894 = vst.msk [vmem:[#allocation3 + $0xc0] sm:$0xf] %vm12, %v830
  %895 = vst.msk [vmem:[#allocation3 + $0xc4] sm:$0xf] %vm12, %v831
  %896 = vst.msk [vmem:[#allocation3 + $0xc8] sm:$0xf] %vm12, %v832
  %897 = vst.msk [vmem:[#allocation3 + $0xcc] sm:$0xf] %vm12, %v833
  %898 = vst.msk [vmem:[#allocation3 + $0xd0] sm:$0xf] %vm12, %v834
  %899 = vst.msk [vmem:[#allocation3 + $0xd4] sm:$0xf] %vm12, %v835
  %900 = vst.msk [vmem:[#allocation3 + $0xd8] sm:$0xf] %vm12, %v836
  %901 = vst.msk [vmem:[#allocation3 + $0xdc] sm:$0xf] %vm12, %v837
  %902 = vst.msk [vmem:[#allocation3 + $0xe0] sm:$0xf] %vm12, %v838
  %903 = vst.msk [vmem:[#allocation3 + $0xe4] sm:$0xf] %vm12, %v839
  %904 = vst.msk [vmem:[#allocation3 + $0xe8] sm:$0xf] %vm12, %v840
  %905 = vst.msk [vmem:[#allocation3 + $0xec] sm:$0xf] %vm12, %v841
  %906 = vst.msk [vmem:[#allocation3 + $0xf0] sm:$0xf] %vm12, %v842
  %907 = vst.msk [vmem:[#allocation3 + $0xf4] sm:$0xf] %vm12, %v843
  %908 = vst.msk [vmem:[#allocation3 + $0xf8] sm:$0xf] %vm12, %v844
  %909 = vst.msk [vmem:[#allocation3 + $0xfc] sm:$0xf] %vm12, %v845
  %v910 = vld [vmem:[#allocation2] sm:$0xe]
  %v911 = vld [vmem:[#allocation2 + $0x4] sm:$0xf]
  %v912 = vld [vmem:[#allocation2 + $0x8] sm:$0x1]
  %v913 = vld [vmem:[#allocation2 + $0xc] sm:$0xe]
  %v914 = vld [vmem:[#allocation2 + $0x10] sm:$0xf]
  %v915 = vld [vmem:[#allocation2 + $0x14] sm:$0x1]
  %v916 = vld [vmem:[#allocation2 + $0x18] sm:$0xe]
  %v917 = vld [vmem:[#allocation2 + $0x1c] sm:$0xf]
  %v918 = vld [vmem:[#allocation2 + $0x20] sm:$0x1]
  %v919 = vld [vmem:[#allocation2 + $0x24] sm:$0xe]
  %v920 = vld [vmem:[#allocation2 + $0x28] sm:$0xf]
  %v921 = vld [vmem:[#allocation2 + $0x2c] sm:$0x1]
  %v922 = vld [vmem:[#allocation2 + $0x30] sm:$0xe]
  %v923 = vld [vmem:[#allocation2 + $0x34] sm:$0xf]
  %v924 = vld [vmem:[#allocation2 + $0x38] sm:$0x1]
  %v925 = vld [vmem:[#allocation2 + $0x3c] sm:$0xe]
  %v926 = vld [vmem:[#allocation2 + $0x40] sm:$0xf]
  %v927 = vld [vmem:[#allocation2 + $0x44] sm:$0x1]
  %v928 = vld [vmem:[#allocation2 + $0x48] sm:$0xe]
  %v929 = vld [vmem:[#allocation2 + $0x4c] sm:$0xf]
  %v930 = vld [vmem:[#allocation2 + $0x50] sm:$0x1]
  %v931 = vld [vmem:[#allocation2 + $0x54] sm:$0xe]
  %v932 = vld [vmem:[#allocation2 + $0x58] sm:$0xf]
  %v933 = vld [vmem:[#allocation2 + $0x5c] sm:$0x1]
  %v934 = vld [vmem:[#allocation2 + $0x60] sm:$0xe]
  %v935 = vld [vmem:[#allocation2 + $0x64] sm:$0xf]
  %v936 = vld [vmem:[#allocation2 + $0x68] sm:$0x1]
  %v937 = vld [vmem:[#allocation2 + $0x6c] sm:$0xe]
  %v938 = vld [vmem:[#allocation2 + $0x70] sm:$0xf]
  %v939 = vld [vmem:[#allocation2 + $0x74] sm:$0x1]
  %v940 = vld [vmem:[#allocation2 + $0x78] sm:$0xe]
  %v941 = vld [vmem:[#allocation2 + $0x7c] sm:$0xf]
  %v942 = vld [vmem:[#allocation2 + $0x80] sm:$0x1]
  %v943 = vld [vmem:[#allocation2 + $0x84] sm:$0xe]
  %v944 = vld [vmem:[#allocation2 + $0x88] sm:$0xf]
  %v945 = vld [vmem:[#allocation2 + $0x8c] sm:$0x1]
  %v946 = vld [vmem:[#allocation2 + $0x90] sm:$0xe]
  %v947 = vld [vmem:[#allocation2 + $0x94] sm:$0xf]
  %v948 = vld [vmem:[#allocation2 + $0x98] sm:$0x1]
  %v949 = vld [vmem:[#allocation2 + $0x9c] sm:$0xe]
  %v950 = vld [vmem:[#allocation2 + $0xa0] sm:$0xf]
  %v951 = vld [vmem:[#allocation2 + $0xa4] sm:$0x1]
  %v952 = vld [vmem:[#allocation2 + $0xa8] sm:$0xe]
  %v953 = vld [vmem:[#allocation2 + $0xac] sm:$0xf]
  %v954 = vld [vmem:[#allocation2 + $0xb0] sm:$0x1]
  %v955 = vld [vmem:[#allocation2 + $0xb4] sm:$0xe]
  %v956 = vld [vmem:[#allocation2 + $0xb8] sm:$0xf]
  %v957 = vld [vmem:[#allocation2 + $0xbc] sm:$0x1]
  %v958 = vld [vmem:[#allocation2 + $0xf0] sm:$0xe]
  %v959 = vld [vmem:[#allocation2 + $0xf4] sm:$0xf]
  %v960 = vld [vmem:[#allocation2 + $0xf8] sm:$0x1]
  %v961 = vld [vmem:[#allocation2 + $0xfc] sm:$0xe]
  %v962 = vld [vmem:[#allocation2 + $0x100] sm:$0xf]
  %v963 = vld [vmem:[#allocation2 + $0x104] sm:$0x1]
  %v964 = vld [vmem:[#allocation2 + $0x108] sm:$0xe]
  %v965 = vld [vmem:[#allocation2 + $0x10c] sm:$0xf]
  %v966 = vld [vmem:[#allocation2 + $0x110] sm:$0x1]
  %v967 = vld [vmem:[#allocation2 + $0x114] sm:$0xe]
  %v968 = vld [vmem:[#allocation2 + $0x118] sm:$0xf]
  %v969 = vld [vmem:[#allocation2 + $0x11c] sm:$0x1]
  %v970 = vld [vmem:[#allocation2 + $0x120] sm:$0xe]
  %v971 = vld [vmem:[#allocation2 + $0x124] sm:$0xf]
  %v972 = vld [vmem:[#allocation2 + $0x128] sm:$0x1]
  %v973 = vld [vmem:[#allocation2 + $0x12c] sm:$0xe]
  %v974 = vld [vmem:[#allocation2 + $0x130] sm:$0xf]
  %v975 = vld [vmem:[#allocation2 + $0x134] sm:$0x1]
  %v976 = vld [vmem:[#allocation2 + $0x138] sm:$0xe]
  %v977 = vld [vmem:[#allocation2 + $0x13c] sm:$0xf]
  %v978 = vld [vmem:[#allocation2 + $0x140] sm:$0x1]
  %v979 = vld [vmem:[#allocation2 + $0x144] sm:$0xe]
  %v980 = vld [vmem:[#allocation2 + $0x148] sm:$0xf]
  %v981 = vld [vmem:[#allocation2 + $0x14c] sm:$0x1]
  %v982 = vld [vmem:[#allocation2 + $0x150] sm:$0xe]
  %v983 = vld [vmem:[#allocation2 + $0x154] sm:$0xf]
  %v984 = vld [vmem:[#allocation2 + $0x158] sm:$0x1]
  %v985 = vld [vmem:[#allocation2 + $0x15c] sm:$0xe]
  %v986 = vld [vmem:[#allocation2 + $0x160] sm:$0xf]
  %v987 = vld [vmem:[#allocation2 + $0x164] sm:$0x1]
  %v988 = vld [vmem:[#allocation2 + $0x168] sm:$0xe]
  %v989 = vld [vmem:[#allocation2 + $0x16c] sm:$0xf]
  %v990 = vld [vmem:[#allocation2 + $0x170] sm:$0x1]
  %v991 = vld [vmem:[#allocation2 + $0x174] sm:$0xe]
  %v992 = vld [vmem:[#allocation2 + $0x178] sm:$0xf]
  %v993 = vld [vmem:[#allocation2 + $0x17c] sm:$0x1]
  %v994 = vld [vmem:[#allocation2 + $0x180] sm:$0xe]
  %v995 = vld [vmem:[#allocation2 + $0x184] sm:$0xf]
  %v996 = vld [vmem:[#allocation2 + $0x188] sm:$0x1]
  %v997 = vld [vmem:[#allocation2 + $0x18c] sm:$0xe]
  %v998 = vld [vmem:[#allocation2 + $0x190] sm:$0xf]
  %v999 = vld [vmem:[#allocation2 + $0x194] sm:$0x1]
  %v1000 = vld [vmem:[#allocation2 + $0x198] sm:$0xe]
  %v1001 = vld [vmem:[#allocation2 + $0x19c] sm:$0xf]
  %v1002 = vld [vmem:[#allocation2 + $0x1a0] sm:$0x1]
  %v1003 = vld [vmem:[#allocation2 + $0x1a4] sm:$0xe]
  %v1004 = vld [vmem:[#allocation2 + $0x1a8] sm:$0xf]
  %v1005 = vld [vmem:[#allocation2 + $0x1ac] sm:$0x1]
  %vm1102 = vcmask 1042432
  %vm1103 = vcmask 1046532
  %vm1104 = vmor %vm1102, %vm1103
  %v1105 = vrot.slane %v910, 5
  %v1106 = vrot.slane %v1105, 4
  %v1107 = vrot.slane %v911, 5
  %v1108 = vsel %vm1104, %v1106, %v1107
  %v1109 = vrot.slane %v1107, 4
  %v1110 = vrot.slane %v912, 5
  %v1111 = vsel %vm1104, %v1109, %v1110
  %v1112 = vrot.slane %v913, 5
  %v1113 = vrot.slane %v1112, 4
  %v1114 = vrot.slane %v914, 5
  %v1115 = vsel %vm1104, %v1113, %v1114
  %v1116 = vrot.slane %v1114, 4
  %v1117 = vrot.slane %v915, 5
  %v1118 = vsel %vm1104, %v1116, %v1117
  %v1119 = vrot.slane %v916, 5
  %v1120 = vrot.slane %v1119, 4
  %v1121 = vrot.slane %v917, 5
  %v1122 = vsel %vm1104, %v1120, %v1121
  %v1123 = vrot.slane %v1121, 4
  %v1124 = vrot.slane %v918, 5
  %v1125 = vsel %vm1104, %v1123, %v1124
  %v1126 = vrot.slane %v919, 5
  %v1127 = vrot.slane %v1126, 4
  %v1128 = vrot.slane %v920, 5
  %v1129 = vsel %vm1104, %v1127, %v1128
  %v1130 = vrot.slane %v1128, 4
  %v1131 = vrot.slane %v921, 5
  %v1132 = vsel %vm1104, %v1130, %v1131
  %v1133 = vrot.slane %v922, 5
  %v1134 = vrot.slane %v1133, 4
  %v1135 = vrot.slane %v923, 5
  %v1136 = vsel %vm1104, %v1134, %v1135
  %v1137 = vrot.slane %v1135, 4
  %v1138 = vrot.slane %v924, 5
  %v1139 = vsel %vm1104, %v1137, %v1138
  %v1140 = vrot.slane %v925, 5
  %v1141 = vrot.slane %v1140, 4
  %v1142 = vrot.slane %v926, 5
  %v1143 = vsel %vm1104, %v1141, %v1142
  %v1144 = vrot.slane %v1142, 4
  %v1145 = vrot.slane %v927, 5
  %v1146 = vsel %vm1104, %v1144, %v1145
  %v1147 = vrot.slane %v928, 5
  %v1148 = vrot.slane %v1147, 4
  %v1149 = vrot.slane %v929, 5
  %v1150 = vsel %vm1104, %v1148, %v1149
  %v1151 = vrot.slane %v1149, 4
  %v1152 = vrot.slane %v930, 5
  %v1153 = vsel %vm1104, %v1151, %v1152
  %v1154 = vrot.slane %v931, 5
  %v1155 = vrot.slane %v1154, 4
  %v1156 = vrot.slane %v932, 5
  %v1157 = vsel %vm1104, %v1155, %v1156
  %v1158 = vrot.slane %v1156, 4
  %v1159 = vrot.slane %v933, 5
  %v1160 = vsel %vm1104, %v1158, %v1159
  %v1161 = vrot.slane %v934, 5
  %v1162 = vrot.slane %v1161, 4
  %v1163 = vrot.slane %v935, 5
  %v1164 = vsel %vm1104, %v1162, %v1163
  %v1165 = vrot.slane %v1163, 4
  %v1166 = vrot.slane %v936, 5
  %v1167 = vsel %vm1104, %v1165, %v1166
  %v1168 = vrot.slane %v937, 5
  %v1169 = vrot.slane %v1168, 4
  %v1170 = vrot.slane %v938, 5
  %v1171 = vsel %vm1104, %v1169, %v1170
  %v1172 = vrot.slane %v1170, 4
  %v1173 = vrot.slane %v939, 5
  %v1174 = vsel %vm1104, %v1172, %v1173
  %v1175 = vrot.slane %v940, 5
  %v1176 = vrot.slane %v1175, 4
  %v1177 = vrot.slane %v941, 5
  %v1178 = vsel %vm1104, %v1176, %v1177
  %v1179 = vrot.slane %v1177, 4
  %v1180 = vrot.slane %v942, 5
  %v1181 = vsel %vm1104, %v1179, %v1180
  %v1182 = vrot.slane %v943, 5
  %v1183 = vrot.slane %v1182, 4
  %v1184 = vrot.slane %v944, 5
  %v1185 = vsel %vm1104, %v1183, %v1184
  %v1186 = vrot.slane %v1184, 4
  %v1187 = vrot.slane %v945, 5
  %v1188 = vsel %vm1104, %v1186, %v1187
  %v1189 = vrot.slane %v946, 5
  %v1190 = vrot.slane %v1189, 4
  %v1191 = vrot.slane %v947, 5
  %v1192 = vsel %vm1104, %v1190, %v1191
  %v1193 = vrot.slane %v1191, 4
  %v1194 = vrot.slane %v948, 5
  %v1195 = vsel %vm1104, %v1193, %v1194
  %v1196 = vrot.slane %v949, 5
  %v1197 = vrot.slane %v1196, 4
  %v1198 = vrot.slane %v950, 5
  %v1199 = vsel %vm1104, %v1197, %v1198
  %v1200 = vrot.slane %v1198, 4
  %v1201 = vrot.slane %v951, 5
  %v1202 = vsel %vm1104, %v1200, %v1201
  %v1203 = vrot.slane %v952, 5
  %v1204 = vrot.slane %v1203, 4
  %v1205 = vrot.slane %v953, 5
  %v1206 = vsel %vm1104, %v1204, %v1205
  %v1207 = vrot.slane %v1205, 4
  %v1208 = vrot.slane %v954, 5
  %v1209 = vsel %vm1104, %v1207, %v1208
  %v1210 = vrot.slane %v955, 5
  %v1211 = vrot.slane %v1210, 4
  %v1212 = vrot.slane %v956, 5
  %v1213 = vsel %vm1104, %v1211, %v1212
  %v1214 = vrot.slane %v1212, 4
  %v1215 = vrot.slane %v957, 5
  %v1216 = vsel %vm1104, %v1214, %v1215
  %v1217 = vrot.slane %v958, 5
  %v1218 = vrot.slane %v1217, 4
  %v1219 = vrot.slane %v959, 5
  %v1220 = vsel %vm1104, %v1218, %v1219
  %v1221 = vrot.slane %v1219, 4
  %v1222 = vrot.slane %v960, 5
  %v1223 = vsel %vm1104, %v1221, %v1222
  %v1224 = vrot.slane %v961, 5
  %v1225 = vrot.slane %v1224, 4
  %v1226 = vrot.slane %v962, 5
  %v1227 = vsel %vm1104, %v1225, %v1226
  %v1228 = vrot.slane %v1226, 4
  %v1229 = vrot.slane %v963, 5
  %v1230 = vsel %vm1104, %v1228, %v1229
  %v1231 = vrot.slane %v964, 5
  %v1232 = vrot.slane %v1231, 4
  %v1233 = vrot.slane %v965, 5
  %v1234 = vsel %vm1104, %v1232, %v1233
  %v1235 = vrot.slane %v1233, 4
  %v1236 = vrot.slane %v966, 5
  %v1237 = vsel %vm1104, %v1235, %v1236
  %v1238 = vrot.slane %v967, 5
  %v1239 = vrot.slane %v1238, 4
  %v1240 = vrot.slane %v968, 5
  %v1241 = vsel %vm1104, %v1239, %v1240
  %v1242 = vrot.slane %v1240, 4
  %v1243 = vrot.slane %v969, 5
  %v1244 = vsel %vm1104, %v1242, %v1243
  %v1245 = vrot.slane %v970, 5
  %v1246 = vrot.slane %v1245, 4
  %v1247 = vrot.slane %v971, 5
  %v1248 = vsel %vm1104, %v1246, %v1247
  %v1249 = vrot.slane %v1247, 4
  %v1250 = vrot.slane %v972, 5
  %v1251 = vsel %vm1104, %v1249, %v1250
  %v1252 = vrot.slane %v973, 5
  %v1253 = vrot.slane %v1252, 4
  %v1254 = vrot.slane %v974, 5
  %v1255 = vsel %vm1104, %v1253, %v1254
  %v1256 = vrot.slane %v1254, 4
  %v1257 = vrot.slane %v975, 5
  %v1258 = vsel %vm1104, %v1256, %v1257
  %v1259 = vrot.slane %v976, 5
  %v1260 = vrot.slane %v1259, 4
  %v1261 = vrot.slane %v977, 5
  %v1262 = vsel %vm1104, %v1260, %v1261
  %v1263 = vrot.slane %v1261, 4
  %v1264 = vrot.slane %v978, 5
  %v1265 = vsel %vm1104, %v1263, %v1264
  %v1266 = vrot.slane %v979, 5
  %v1267 = vrot.slane %v1266, 4
  %v1268 = vrot.slane %v980, 5
  %v1269 = vsel %vm1104, %v1267, %v1268
  %v1270 = vrot.slane %v1268, 4
  %v1271 = vrot.slane %v981, 5
  %v1272 = vsel %vm1104, %v1270, %v1271
  %v1273 = vrot.slane %v982, 5
  %v1274 = vrot.slane %v1273, 4
  %v1275 = vrot.slane %v983, 5
  %v1276 = vsel %vm1104, %v1274, %v1275
  %v1277 = vrot.slane %v1275, 4
  %v1278 = vrot.slane %v984, 5
  %v1279 = vsel %vm1104, %v1277, %v1278
  %v1280 = vrot.slane %v985, 5
  %v1281 = vrot.slane %v1280, 4
  %v1282 = vrot.slane %v986, 5
  %v1283 = vsel %vm1104, %v1281, %v1282
  %v1284 = vrot.slane %v1282, 4
  %v1285 = vrot.slane %v987, 5
  %v1286 = vsel %vm1104, %v1284, %v1285
  %v1287 = vrot.slane %v988, 5
  %v1288 = vrot.slane %v1287, 4
  %v1289 = vrot.slane %v989, 5
  %v1290 = vsel %vm1104, %v1288, %v1289
  %v1291 = vrot.slane %v1289, 4
  %v1292 = vrot.slane %v990, 5
  %v1293 = vsel %vm1104, %v1291, %v1292
  %v1294 = vrot.slane %v991, 5
  %v1295 = vrot.slane %v1294, 4
  %v1296 = vrot.slane %v992, 5
  %v1297 = vsel %vm1104, %v1295, %v1296
  %v1298 = vrot.slane %v1296, 4
  %v1299 = vrot.slane %v993, 5
  %v1300 = vsel %vm1104, %v1298, %v1299
  %v1301 = vrot.slane %v994, 5
  %v1302 = vrot.slane %v1301, 4
  %v1303 = vrot.slane %v995, 5
  %v1304 = vsel %vm1104, %v1302, %v1303
  %v1305 = vrot.slane %v1303, 4
  %v1306 = vrot.slane %v996, 5
  %v1307 = vsel %vm1104, %v1305, %v1306
  %v1308 = vrot.slane %v997, 5
  %v1309 = vrot.slane %v1308, 4
  %v1310 = vrot.slane %v998, 5
  %v1311 = vsel %vm1104, %v1309, %v1310
  %v1312 = vrot.slane %v1310, 4
  %v1313 = vrot.slane %v999, 5
  %v1314 = vsel %vm1104, %v1312, %v1313
  %v1315 = vrot.slane %v1000, 5
  %v1316 = vrot.slane %v1315, 4
  %v1317 = vrot.slane %v1001, 5
  %v1318 = vsel %vm1104, %v1316, %v1317
  %v1319 = vrot.slane %v1317, 4
  %v1320 = vrot.slane %v1002, 5
  %v1321 = vsel %vm1104, %v1319, %v1320
  %v1322 = vrot.slane %v1003, 5
  %v1323 = vrot.slane %v1322, 4
  %v1324 = vrot.slane %v1004, 5
  %v1325 = vsel %vm1104, %v1323, %v1324
  %v1326 = vrot.slane %v1324, 4
  %v1327 = vrot.slane %v1005, 5
  %v1328 = vsel %vm1104, %v1326, %v1327
  %1329 = vrot.lane.b32.xlu0 %v1108, 4
  %v1330 = vpop.permute.xlu0 %1329
  %1331 = vrot.lane.b32.xlu0 %v1111, 4
  %v1332 = vpop.permute.xlu0 %1331
  %1333 = vrot.lane.b32.xlu0 %v1115, 4
  %v1334 = vpop.permute.xlu0 %1333
  %1335 = vrot.lane.b32.xlu0 %v1118, 4
  %v1336 = vpop.permute.xlu0 %1335
  %1337 = vrot.lane.b32.xlu0 %v1122, 4
  %v1338 = vpop.permute.xlu0 %1337
  %1339 = vrot.lane.b32.xlu0 %v1125, 4
  %v1340 = vpop.permute.xlu0 %1339
  %1341 = vrot.lane.b32.xlu0 %v1129, 4
  %v1342 = vpop.permute.xlu0 %1341
  %1343 = vrot.lane.b32.xlu0 %v1132, 4
  %v1344 = vpop.permute.xlu0 %1343
  %1345 = vrot.lane.b32.xlu0 %v1136, 4
  %v1346 = vpop.permute.xlu0 %1345
  %1347 = vrot.lane.b32.xlu0 %v1139, 4
  %v1348 = vpop.permute.xlu0 %1347
  %1349 = vrot.lane.b32.xlu0 %v1143, 4
  %v1350 = vpop.permute.xlu0 %1349
  %1351 = vrot.lane.b32.xlu0 %v1146, 4
  %v1352 = vpop.permute.xlu0 %1351
  %1353 = vrot.lane.b32.xlu0 %v1150, 4
  %v1354 = vpop.permute.xlu0 %1353
  %1355 = vrot.lane.b32.xlu0 %v1153, 4
  %v1356 = vpop.permute.xlu0 %1355
  %1357 = vrot.lane.b32.xlu0 %v1157, 4
  %v1358 = vpop.permute.xlu0 %1357
  %1359 = vrot.lane.b32.xlu0 %v1160, 4
  %v1360 = vpop.permute.xlu0 %1359
  %1361 = vrot.lane.b32.xlu0 %v1164, 4
  %v1362 = vpop.permute.xlu0 %1361
  %1363 = vrot.lane.b32.xlu0 %v1167, 4
  %v1364 = vpop.permute.xlu0 %1363
  %1365 = vrot.lane.b32.xlu0 %v1171, 4
  %v1366 = vpop.permute.xlu0 %1365
  %1367 = vrot.lane.b32.xlu0 %v1174, 4
  %v1368 = vpop.permute.xlu0 %1367
  %1369 = vrot.lane.b32.xlu0 %v1178, 4
  %v1370 = vpop.permute.xlu0 %1369
  %1371 = vrot.lane.b32.xlu0 %v1181, 4
  %v1372 = vpop.permute.xlu0 %1371
  %1373 = vrot.lane.b32.xlu0 %v1185, 4
  %v1374 = vpop.permute.xlu0 %1373
  %1375 = vrot.lane.b32.xlu0 %v1188, 4
  %v1376 = vpop.permute.xlu0 %1375
  %1377 = vrot.lane.b32.xlu0 %v1192, 4
  %v1378 = vpop.permute.xlu0 %1377
  %1379 = vrot.lane.b32.xlu0 %v1195, 4
  %v1380 = vpop.permute.xlu0 %1379
  %1381 = vrot.lane.b32.xlu0 %v1199, 4
  %v1382 = vpop.permute.xlu0 %1381
  %1383 = vrot.lane.b32.xlu0 %v1202, 4
  %v1384 = vpop.permute.xlu0 %1383
  %1385 = vrot.lane.b32.xlu0 %v1206, 4
  %v1386 = vpop.permute.xlu0 %1385
  %1387 = vrot.lane.b32.xlu0 %v1209, 4
  %v1388 = vpop.permute.xlu0 %1387
  %1389 = vrot.lane.b32.xlu0 %v1213, 4
  %v1390 = vpop.permute.xlu0 %1389
  %1391 = vrot.lane.b32.xlu0 %v1216, 4
  %v1392 = vpop.permute.xlu0 %1391
  %1393 = vrot.lane.b32.xlu0 %v1220, 4
  %v1394 = vpop.permute.xlu0 %1393
  %1395 = vrot.lane.b32.xlu0 %v1223, 4
  %v1396 = vpop.permute.xlu0 %1395
  %1397 = vrot.lane.b32.xlu0 %v1227, 4
  %v1398 = vpop.permute.xlu0 %1397
  %1399 = vrot.lane.b32.xlu0 %v1230, 4
  %v1400 = vpop.permute.xlu0 %1399
  %1401 = vrot.lane.b32.xlu0 %v1234, 4
  %v1402 = vpop.permute.xlu0 %1401
  %1403 = vrot.lane.b32.xlu0 %v1237, 4
  %v1404 = vpop.permute.xlu0 %1403
  %1405 = vrot.lane.b32.xlu0 %v1241, 4
  %v1406 = vpop.permute.xlu0 %1405
  %1407 = vrot.lane.b32.xlu0 %v1244, 4
  %v1408 = vpop.permute.xlu0 %1407
  %1409 = vrot.lane.b32.xlu0 %v1248, 4
  %v1410 = vpop.permute.xlu0 %1409
  %1411 = vrot.lane.b32.xlu0 %v1251, 4
  %v1412 = vpop.permute.xlu0 %1411
  %1413 = vrot.lane.b32.xlu0 %v1255, 4
  %v1414 = vpop.permute.xlu0 %1413
  %1415 = vrot.lane.b32.xlu0 %v1258, 4
  %v1416 = vpop.permute.xlu0 %1415
  %1417 = vrot.lane.b32.xlu0 %v1262, 4
  %v1418 = vpop.permute.xlu0 %1417
  %1419 = vrot.lane.b32.xlu0 %v1265, 4
  %v1420 = vpop.permute.xlu0 %1419
  %1421 = vrot.lane.b32.xlu0 %v1269, 4
  %v1422 = vpop.permute.xlu0 %1421
  %1423 = vrot.lane.b32.xlu0 %v1272, 4
  %v1424 = vpop.permute.xlu0 %1423
  %1425 = vrot.lane.b32.xlu0 %v1276, 4
  %v1426 = vpop.permute.xlu0 %1425
  %1427 = vrot.lane.b32.xlu0 %v1279, 4
  %v1428 = vpop.permute.xlu0 %1427
  %1429 = vrot.lane.b32.xlu0 %v1283, 4
  %v1430 = vpop.permute.xlu0 %1429
  %1431 = vrot.lane.b32.xlu0 %v1286, 4
  %v1432 = vpop.permute.xlu0 %1431
  %1433 = vrot.lane.b32.xlu0 %v1290, 4
  %v1434 = vpop.permute.xlu0 %1433
  %1435 = vrot.lane.b32.xlu0 %v1293, 4
  %v1436 = vpop.permute.xlu0 %1435
  %1437 = vrot.lane.b32.xlu0 %v1297, 4
  %v1438 = vpop.permute.xlu0 %1437
  %1439 = vrot.lane.b32.xlu0 %v1300, 4
  %v1440 = vpop.permute.xlu0 %1439
  %1441 = vrot.lane.b32.xlu0 %v1304, 4
  %v1442 = vpop.permute.xlu0 %1441
  %1443 = vrot.lane.b32.xlu0 %v1307, 4
  %v1444 = vpop.permute.xlu0 %1443
  %1445 = vrot.lane.b32.xlu0 %v1311, 4
  %v1446 = vpop.permute.xlu0 %1445
  %1447 = vrot.lane.b32.xlu0 %v1314, 4
  %v1448 = vpop.permute.xlu0 %1447
  %1449 = vrot.lane.b32.xlu0 %v1318, 4
  %v1450 = vpop.permute.xlu0 %1449
  %1451 = vrot.lane.b32.xlu0 %v1321, 4
  %v1452 = vpop.permute.xlu0 %1451
  %1453 = vrot.lane.b32.xlu0 %v1325, 4
  %v1454 = vpop.permute.xlu0 %1453
  %1455 = vrot.lane.b32.xlu0 %v1328, 4
  %v1456 = vpop.permute.xlu0 %1455
  %vm1521 = vcmask 60448
  %1522 = vst.msk [vmem:[#allocation3] sm:$0xf] %vm1521, %v1330
  %1523 = vst.msk [vmem:[#allocation3 + $0x4] sm:$0xf] %vm1521, %v1332
  %1524 = vst.msk [vmem:[#allocation3 + $0x8] sm:$0xf] %vm1521, %v1334
  %1525 = vst.msk [vmem:[#allocation3 + $0xc] sm:$0xf] %vm1521, %v1336
  %1526 = vst.msk [vmem:[#allocation3 + $0x10] sm:$0xf] %vm1521, %v1338
  %1527 = vst.msk [vmem:[#allocation3 + $0x14] sm:$0xf] %vm1521, %v1340
  %1528 = vst.msk [vmem:[#allocation3 + $0x18] sm:$0xf] %vm1521, %v1342
  %1529 = vst.msk [vmem:[#allocation3 + $0x1c] sm:$0xf] %vm1521, %v1344
  %1530 = vst.msk [vmem:[#allocation3 + $0x20] sm:$0xf] %vm1521, %v1346
  %1531 = vst.msk [vmem:[#allocation3 + $0x24] sm:$0xf] %vm1521, %v1348
  %1532 = vst.msk [vmem:[#allocation3 + $0x28] sm:$0xf] %vm1521, %v1350
  %1533 = vst.msk [vmem:[#allocation3 + $0x2c] sm:$0xf] %vm1521, %v1352
  %1534 = vst.msk [vmem:[#allocation3 + $0x30] sm:$0xf] %vm1521, %v1354
  %1535 = vst.msk [vmem:[#allocation3 + $0x34] sm:$0xf] %vm1521, %v1356
  %1536 = vst.msk [vmem:[#allocation3 + $0x38] sm:$0xf] %vm1521, %v1358
  %1537 = vst.msk [vmem:[#allocation3 + $0x3c] sm:$0xf] %vm1521, %v1360
  %1538 = vst.msk [vmem:[#allocation3 + $0x40] sm:$0xf] %vm1521, %v1362
  %1539 = vst.msk [vmem:[#allocation3 + $0x44] sm:$0xf] %vm1521, %v1364
  %1540 = vst.msk [vmem:[#allocation3 + $0x48] sm:$0xf] %vm1521, %v1366
  %1541 = vst.msk [vmem:[#allocation3 + $0x4c] sm:$0xf] %vm1521, %v1368
  %1542 = vst.msk [vmem:[#allocation3 + $0x50] sm:$0xf] %vm1521, %v1370
  %1543 = vst.msk [vmem:[#allocation3 + $0x54] sm:$0xf] %vm1521, %v1372
  %1544 = vst.msk [vmem:[#allocation3 + $0x58] sm:$0xf] %vm1521, %v1374
  %1545 = vst.msk [vmem:[#allocation3 + $0x5c] sm:$0xf] %vm1521, %v1376
  %1546 = vst.msk [vmem:[#allocation3 + $0x60] sm:$0xf] %vm1521, %v1378
  %1547 = vst.msk [vmem:[#allocation3 + $0x64] sm:$0xf] %vm1521, %v1380
  %1548 = vst.msk [vmem:[#allocation3 + $0x68] sm:$0xf] %vm1521, %v1382
  %1549 = vst.msk [vmem:[#allocation3 + $0x6c] sm:$0xf] %vm1521, %v1384
  %1550 = vst.msk [vmem:[#allocation3 + $0x70] sm:$0xf] %vm1521, %v1386
  %1551 = vst.msk [vmem:[#allocation3 + $0x74] sm:$0xf] %vm1521, %v1388
  %1552 = vst.msk [vmem:[#allocation3 + $0x78] sm:$0xf] %vm1521, %v1390
  %1553 = vst.msk [vmem:[#allocation3 + $0x7c] sm:$0xf] %vm1521, %v1392
  %1554 = vst.msk [vmem:[#allocation3 + $0x80] sm:$0xf] %vm1521, %v1394
  %1555 = vst.msk [vmem:[#allocation3 + $0x84] sm:$0xf] %vm1521, %v1396
  %1556 = vst.msk [vmem:[#allocation3 + $0x88] sm:$0xf] %vm1521, %v1398
  %1557 = vst.msk [vmem:[#allocation3 + $0x8c] sm:$0xf] %vm1521, %v1400
  %1558 = vst.msk [vmem:[#allocation3 + $0x90] sm:$0xf] %vm1521, %v1402
  %1559 = vst.msk [vmem:[#allocation3 + $0x94] sm:$0xf] %vm1521, %v1404
  %1560 = vst.msk [vmem:[#allocation3 + $0x98] sm:$0xf] %vm1521, %v1406
  %1561 = vst.msk [vmem:[#allocation3 + $0x9c] sm:$0xf] %vm1521, %v1408
  %1562 = vst.msk [vmem:[#allocation3 + $0xa0] sm:$0xf] %vm1521, %v1410
  %1563 = vst.msk [vmem:[#allocation3 + $0xa4] sm:$0xf] %vm1521, %v1412
  %1564 = vst.msk [vmem:[#allocation3 + $0xa8] sm:$0xf] %vm1521, %v1414
  %1565 = vst.msk [vmem:[#allocation3 + $0xac] sm:$0xf] %vm1521, %v1416
  %1566 = vst.msk [vmem:[#allocation3 + $0xb0] sm:$0xf] %vm1521, %v1418
  %1567 = vst.msk [vmem:[#allocation3 + $0xb4] sm:$0xf] %vm1521, %v1420
  %1568 = vst.msk [vmem:[#allocation3 + $0xb8] sm:$0xf] %vm1521, %v1422
  %1569 = vst.msk [vmem:[#allocation3 + $0xbc] sm:$0xf] %vm1521, %v1424
  %1570 = vst.msk [vmem:[#allocation3 + $0xc0] sm:$0xf] %vm1521, %v1426
  %1571 = vst.msk [vmem:[#allocation3 + $0xc4] sm:$0xf] %vm1521, %v1428
  %1572 = vst.msk [vmem:[#allocation3 + $0xc8] sm:$0xf] %vm1521, %v1430
  %1573 = vst.msk [vmem:[#allocation3 + $0xcc] sm:$0xf] %vm1521, %v1432
  %1574 = vst.msk [vmem:[#allocation3 + $0xd0] sm:$0xf] %vm1521, %v1434
  %1575 = vst.msk [vmem:[#allocation3 + $0xd4] sm:$0xf] %vm1521, %v1436
  %1576 = vst.msk [vmem:[#allocation3 + $0xd8] sm:$0xf] %vm1521, %v1438
  %1577 = vst.msk [vmem:[#allocation3 + $0xdc] sm:$0xf] %vm1521, %v1440
  %1578 = vst.msk [vmem:[#allocation3 + $0xe0] sm:$0xf] %vm1521, %v1442
  %1579 = vst.msk [vmem:[#allocation3 + $0xe4] sm:$0xf] %vm1521, %v1444
  %1580 = vst.msk [vmem:[#allocation3 + $0xe8] sm:$0xf] %vm1521, %v1446
  %1581 = vst.msk [vmem:[#allocation3 + $0xec] sm:$0xf] %vm1521, %v1448
  %1582 = vst.msk [vmem:[#allocation3 + $0xf0] sm:$0xf] %vm1521, %v1450
  %1583 = vst.msk [vmem:[#allocation3 + $0xf4] sm:$0xf] %vm1521, %v1452
  %1584 = vst.msk [vmem:[#allocation3 + $0xf8] sm:$0xf] %vm1521, %v1454
  %1585 = vst.msk [vmem:[#allocation3 + $0xfc] sm:$0xf] %vm1521, %v1456
  %v1586 = vld [vmem:[#allocation2] sm:$0xc]
  %v1587 = vld [vmem:[#allocation2 + $0x4] sm:$0xf]
  %v1588 = vld [vmem:[#allocation2 + $0x8] sm:$0x3]
  %v1589 = vld [vmem:[#allocation2 + $0xc] sm:$0xc]
  %v1590 = vld [vmem:[#allocation2 + $0x10] sm:$0xf]
  %v1591 = vld [vmem:[#allocation2 + $0x14] sm:$0x3]
  %v1592 = vld [vmem:[#allocation2 + $0x18] sm:$0xc]
  %v1593 = vld [vmem:[#allocation2 + $0x1c] sm:$0xf]
  %v1594 = vld [vmem:[#allocation2 + $0x20] sm:$0x3]
  %v1595 = vld [vmem:[#allocation2 + $0x24] sm:$0xc]
  %v1596 = vld [vmem:[#allocation2 + $0x28] sm:$0xf]
  %v1597 = vld [vmem:[#allocation2 + $0x2c] sm:$0x3]
  %v1598 = vld [vmem:[#allocation2 + $0x30] sm:$0xc]
  %v1599 = vld [vmem:[#allocation2 + $0x34] sm:$0xf]
  %v1600 = vld [vmem:[#allocation2 + $0x38] sm:$0x3]
  %v1601 = vld [vmem:[#allocation2 + $0x3c] sm:$0xc]
  %v1602 = vld [vmem:[#allocation2 + $0x40] sm:$0xf]
  %v1603 = vld [vmem:[#allocation2 + $0x44] sm:$0x3]
  %v1604 = vld [vmem:[#allocation2 + $0x48] sm:$0xc]
  %v1605 = vld [vmem:[#allocation2 + $0x4c] sm:$0xf]
  %v1606 = vld [vmem:[#allocation2 + $0x50] sm:$0x3]
  %v1607 = vld [vmem:[#allocation2 + $0x54] sm:$0xc]
  %v1608 = vld [vmem:[#allocation2 + $0x58] sm:$0xf]
  %v1609 = vld [vmem:[#allocation2 + $0x5c] sm:$0x3]
  %v1610 = vld [vmem:[#allocation2 + $0x60] sm:$0xc]
  %v1611 = vld [vmem:[#allocation2 + $0x64] sm:$0xf]
  %v1612 = vld [vmem:[#allocation2 + $0x68] sm:$0x3]
  %v1613 = vld [vmem:[#allocation2 + $0x6c] sm:$0xc]
  %v1614 = vld [vmem:[#allocation2 + $0x70] sm:$0xf]
  %v1615 = vld [vmem:[#allocation2 + $0x74] sm:$0x3]
  %v1616 = vld [vmem:[#allocation2 + $0x78] sm:$0xc]
  %v1617 = vld [vmem:[#allocation2 + $0x7c] sm:$0xf]
  %v1618 = vld [vmem:[#allocation2 + $0x80] sm:$0x3]
  %v1619 = vld [vmem:[#allocation2 + $0x84] sm:$0xc]
  %v1620 = vld [vmem:[#allocation2 + $0x88] sm:$0xf]
  %v1621 = vld [vmem:[#allocation2 + $0x8c] sm:$0x3]
  %v1622 = vld [vmem:[#allocation2 + $0x90] sm:$0xc]
  %v1623 = vld [vmem:[#allocation2 + $0x94] sm:$0xf]
  %v1624 = vld [vmem:[#allocation2 + $0x98] sm:$0x3]
  %v1625 = vld [vmem:[#allocation2 + $0x9c] sm:$0xc]
  %v1626 = vld [vmem:[#allocation2 + $0xa0] sm:$0xf]
  %v1627 = vld [vmem:[#allocation2 + $0xa4] sm:$0x3]
  %v1628 = vld [vmem:[#allocation2 + $0xa8] sm:$0xc]
  %v1629 = vld [vmem:[#allocation2 + $0xac] sm:$0xf]
  %v1630 = vld [vmem:[#allocation2 + $0xb0] sm:$0x3]
  %v1631 = vld [vmem:[#allocation2 + $0xb4] sm:$0xc]
  %v1632 = vld [vmem:[#allocation2 + $0xb8] sm:$0xf]
  %v1633 = vld [vmem:[#allocation2 + $0xbc] sm:$0x3]
  %v1634 = vld [vmem:[#allocation2 + $0xf0] sm:$0xc]
  %v1635 = vld [vmem:[#allocation2 + $0xf4] sm:$0xf]
  %v1636 = vld [vmem:[#allocation2 + $0xf8] sm:$0x3]
  %v1637 = vld [vmem:[#allocation2 + $0xfc] sm:$0xc]
  %v1638 = vld [vmem:[#allocation2 + $0x100] sm:$0xf]
  %v1639 = vld [vmem:[#allocation2 + $0x104] sm:$0x3]
  %v1640 = vld [vmem:[#allocation2 + $0x108] sm:$0xc]
  %v1641 = vld [vmem:[#allocation2 + $0x10c] sm:$0xf]
  %v1642 = vld [vmem:[#allocation2 + $0x110] sm:$0x3]
  %v1643 = vld [vmem:[#allocation2 + $0x114] sm:$0xc]
  %v1644 = vld [vmem:[#allocation2 + $0x118] sm:$0xf]
  %v1645 = vld [vmem:[#allocation2 + $0x11c] sm:$0x3]
  %v1646 = vld [vmem:[#allocation2 + $0x120] sm:$0xc]
  %v1647 = vld [vmem:[#allocation2 + $0x124] sm:$0xf]
  %v1648 = vld [vmem:[#allocation2 + $0x128] sm:$0x3]
  %v1649 = vld [vmem:[#allocation2 + $0x12c] sm:$0xc]
  %v1650 = vld [vmem:[#allocation2 + $0x130] sm:$0xf]
  %v1651 = vld [vmem:[#allocation2 + $0x134] sm:$0x3]
  %v1652 = vld [vmem:[#allocation2 + $0x138] sm:$0xc]
  %v1653 = vld [vmem:[#allocation2 + $0x13c] sm:$0xf]
  %v1654 = vld [vmem:[#allocation2 + $0x140] sm:$0x3]
  %v1655 = vld [vmem:[#allocation2 + $0x144] sm:$0xc]
  %v1656 = vld [vmem:[#allocation2 + $0x148] sm:$0xf]
  %v1657 = vld [vmem:[#allocation2 + $0x14c] sm:$0x3]
  %v1658 = vld [vmem:[#allocation2 + $0x150] sm:$0xc]
  %v1659 = vld [vmem:[#allocation2 + $0x154] sm:$0xf]
  %v1660 = vld [vmem:[#allocation2 + $0x158] sm:$0x3]
  %v1661 = vld [vmem:[#allocation2 + $0x15c] sm:$0xc]
  %v1662 = vld [vmem:[#allocation2 + $0x160] sm:$0xf]
  %v1663 = vld [vmem:[#allocation2 + $0x164] sm:$0x3]
  %v1664 = vld [vmem:[#allocation2 + $0x168] sm:$0xc]
  %v1665 = vld [vmem:[#allocation2 + $0x16c] sm:$0xf]
  %v1666 = vld [vmem:[#allocation2 + $0x170] sm:$0x3]
  %v1667 = vld [vmem:[#allocation2 + $0x174] sm:$0xc]
  %v1668 = vld [vmem:[#allocation2 + $0x178] sm:$0xf]
  %v1669 = vld [vmem:[#allocation2 + $0x17c] sm:$0x3]
  %v1670 = vld [vmem:[#allocation2 + $0x180] sm:$0xc]
  %v1671 = vld [vmem:[#allocation2 + $0x184] sm:$0xf]
  %v1672 = vld [vmem:[#allocation2 + $0x188] sm:$0x3]
  %v1673 = vld [vmem:[#allocation2 + $0x18c] sm:$0xc]
  %v1674 = vld [vmem:[#allocation2 + $0x190] sm:$0xf]
  %v1675 = vld [vmem:[#allocation2 + $0x194] sm:$0x3]
  %v1676 = vld [vmem:[#allocation2 + $0x198] sm:$0xc]
  %v1677 = vld [vmem:[#allocation2 + $0x19c] sm:$0xf]
  %v1678 = vld [vmem:[#allocation2 + $0x1a0] sm:$0x3]
  %v1679 = vld [vmem:[#allocation2 + $0x1a4] sm:$0xc]
  %v1680 = vld [vmem:[#allocation2 + $0x1a8] sm:$0xf]
  %v1681 = vld [vmem:[#allocation2 + $0x1ac] sm:$0x3]
  %vm1778 = vcmask 1041408
  %vm1779 = vcmask 1045508
  %vm1780 = vmor %vm1778, %vm1779
  %v1781 = vrot.slane %v1586, 6
  %v1782 = vrot.slane %v1781, 4
  %v1783 = vrot.slane %v1587, 6
  %v1784 = vsel %vm1780, %v1782, %v1783
  %v1785 = vrot.slane %v1783, 4
  %v1786 = vrot.slane %v1588, 6
  %v1787 = vsel %vm1780, %v1785, %v1786
  %v1788 = vrot.slane %v1589, 6
  %v1789 = vrot.slane %v1788, 4
  %v1790 = vrot.slane %v1590, 6
  %v1791 = vsel %vm1780, %v1789, %v1790
  %v1792 = vrot.slane %v1790, 4
  %v1793 = vrot.slane %v1591, 6
  %v1794 = vsel %vm1780, %v1792, %v1793
  %v1795 = vrot.slane %v1592, 6
  %v1796 = vrot.slane %v1795, 4
  %v1797 = vrot.slane %v1593, 6
  %v1798 = vsel %vm1780, %v1796, %v1797
  %v1799 = vrot.slane %v1797, 4
  %v1800 = vrot.slane %v1594, 6
  %v1801 = vsel %vm1780, %v1799, %v1800
  %v1802 = vrot.slane %v1595, 6
  %v1803 = vrot.slane %v1802, 4
  %v1804 = vrot.slane %v1596, 6
  %v1805 = vsel %vm1780, %v1803, %v1804
  %v1806 = vrot.slane %v1804, 4
  %v1807 = vrot.slane %v1597, 6
  %v1808 = vsel %vm1780, %v1806, %v1807
  %v1809 = vrot.slane %v1598, 6
  %v1810 = vrot.slane %v1809, 4
  %v1811 = vrot.slane %v1599, 6
  %v1812 = vsel %vm1780, %v1810, %v1811
  %v1813 = vrot.slane %v1811, 4
  %v1814 = vrot.slane %v1600, 6
  %v1815 = vsel %vm1780, %v1813, %v1814
  %v1816 = vrot.slane %v1601, 6
  %v1817 = vrot.slane %v1816, 4
  %v1818 = vrot.slane %v1602, 6
  %v1819 = vsel %vm1780, %v1817, %v1818
  %v1820 = vrot.slane %v1818, 4
  %v1821 = vrot.slane %v1603, 6
  %v1822 = vsel %vm1780, %v1820, %v1821
  %v1823 = vrot.slane %v1604, 6
  %v1824 = vrot.slane %v1823, 4
  %v1825 = vrot.slane %v1605, 6
  %v1826 = vsel %vm1780, %v1824, %v1825
  %v1827 = vrot.slane %v1825, 4
  %v1828 = vrot.slane %v1606, 6
  %v1829 = vsel %vm1780, %v1827, %v1828
  %v1830 = vrot.slane %v1607, 6
  %v1831 = vrot.slane %v1830, 4
  %v1832 = vrot.slane %v1608, 6
  %v1833 = vsel %vm1780, %v1831, %v1832
  %v1834 = vrot.slane %v1832, 4
  %v1835 = vrot.slane %v1609, 6
  %v1836 = vsel %vm1780, %v1834, %v1835
  %v1837 = vrot.slane %v1610, 6
  %v1838 = vrot.slane %v1837, 4
  %v1839 = vrot.slane %v1611, 6
  %v1840 = vsel %vm1780, %v1838, %v1839
  %v1841 = vrot.slane %v1839, 4
  %v1842 = vrot.slane %v1612, 6
  %v1843 = vsel %vm1780, %v1841, %v1842
  %v1844 = vrot.slane %v1613, 6
  %v1845 = vrot.slane %v1844, 4
  %v1846 = vrot.slane %v1614, 6
  %v1847 = vsel %vm1780, %v1845, %v1846
  %v1848 = vrot.slane %v1846, 4
  %v1849 = vrot.slane %v1615, 6
  %v1850 = vsel %vm1780, %v1848, %v1849
  %v1851 = vrot.slane %v1616, 6
  %v1852 = vrot.slane %v1851, 4
  %v1853 = vrot.slane %v1617, 6
  %v1854 = vsel %vm1780, %v1852, %v1853
  %v1855 = vrot.slane %v1853, 4
  %v1856 = vrot.slane %v1618, 6
  %v1857 = vsel %vm1780, %v1855, %v1856
  %v1858 = vrot.slane %v1619, 6
  %v1859 = vrot.slane %v1858, 4
  %v1860 = vrot.slane %v1620, 6
  %v1861 = vsel %vm1780, %v1859, %v1860
  %v1862 = vrot.slane %v1860, 4
  %v1863 = vrot.slane %v1621, 6
  %v1864 = vsel %vm1780, %v1862, %v1863
  %v1865 = vrot.slane %v1622, 6
  %v1866 = vrot.slane %v1865, 4
  %v1867 = vrot.slane %v1623, 6
  %v1868 = vsel %vm1780, %v1866, %v1867
  %v1869 = vrot.slane %v1867, 4
  %v1870 = vrot.slane %v1624, 6
  %v1871 = vsel %vm1780, %v1869, %v1870
  %v1872 = vrot.slane %v1625, 6
  %v1873 = vrot.slane %v1872, 4
  %v1874 = vrot.slane %v1626, 6
  %v1875 = vsel %vm1780, %v1873, %v1874
  %v1876 = vrot.slane %v1874, 4
  %v1877 = vrot.slane %v1627, 6
  %v1878 = vsel %vm1780, %v1876, %v1877
  %v1879 = vrot.slane %v1628, 6
  %v1880 = vrot.slane %v1879, 4
  %v1881 = vrot.slane %v1629, 6
  %v1882 = vsel %vm1780, %v1880, %v1881
  %v1883 = vrot.slane %v1881, 4
  %v1884 = vrot.slane %v1630, 6
  %v1885 = vsel %vm1780, %v1883, %v1884
  %v1886 = vrot.slane %v1631, 6
  %v1887 = vrot.slane %v1886, 4
  %v1888 = vrot.slane %v1632, 6
  %v1889 = vsel %vm1780, %v1887, %v1888
  %v1890 = vrot.slane %v1888, 4
  %v1891 = vrot.slane %v1633, 6
  %v1892 = vsel %vm1780, %v1890, %v1891
  %v1893 = vrot.slane %v1634, 6
  %v1894 = vrot.slane %v1893, 4
  %v1895 = vrot.slane %v1635, 6
  %v1896 = vsel %vm1780, %v1894, %v1895
  %v1897 = vrot.slane %v1895, 4
  %v1898 = vrot.slane %v1636, 6
  %v1899 = vsel %vm1780, %v1897, %v1898
  %v1900 = vrot.slane %v1637, 6
  %v1901 = vrot.slane %v1900, 4
  %v1902 = vrot.slane %v1638, 6
  %v1903 = vsel %vm1780, %v1901, %v1902
  %v1904 = vrot.slane %v1902, 4
  %v1905 = vrot.slane %v1639, 6
  %v1906 = vsel %vm1780, %v1904, %v1905
  %v1907 = vrot.slane %v1640, 6
  %v1908 = vrot.slane %v1907, 4
  %v1909 = vrot.slane %v1641, 6
  %v1910 = vsel %vm1780, %v1908, %v1909
  %v1911 = vrot.slane %v1909, 4
  %v1912 = vrot.slane %v1642, 6
  %v1913 = vsel %vm1780, %v1911, %v1912
  %v1914 = vrot.slane %v1643, 6
  %v1915 = vrot.slane %v1914, 4
  %v1916 = vrot.slane %v1644, 6
  %v1917 = vsel %vm1780, %v1915, %v1916
  %v1918 = vrot.slane %v1916, 4
  %v1919 = vrot.slane %v1645, 6
  %v1920 = vsel %vm1780, %v1918, %v1919
  %v1921 = vrot.slane %v1646, 6
  %v1922 = vrot.slane %v1921, 4
  %v1923 = vrot.slane %v1647, 6
  %v1924 = vsel %vm1780, %v1922, %v1923
  %v1925 = vrot.slane %v1923, 4
  %v1926 = vrot.slane %v1648, 6
  %v1927 = vsel %vm1780, %v1925, %v1926
  %v1928 = vrot.slane %v1649, 6
  %v1929 = vrot.slane %v1928, 4
  %v1930 = vrot.slane %v1650, 6
  %v1931 = vsel %vm1780, %v1929, %v1930
  %v1932 = vrot.slane %v1930, 4
  %v1933 = vrot.slane %v1651, 6
  %v1934 = vsel %vm1780, %v1932, %v1933
  %v1935 = vrot.slane %v1652, 6
  %v1936 = vrot.slane %v1935, 4
  %v1937 = vrot.slane %v1653, 6
  %v1938 = vsel %vm1780, %v1936, %v1937
  %v1939 = vrot.slane %v1937, 4
  %v1940 = vrot.slane %v1654, 6
  %v1941 = vsel %vm1780, %v1939, %v1940
  %v1942 = vrot.slane %v1655, 6
  %v1943 = vrot.slane %v1942, 4
  %v1944 = vrot.slane %v1656, 6
  %v1945 = vsel %vm1780, %v1943, %v1944
  %v1946 = vrot.slane %v1944, 4
  %v1947 = vrot.slane %v1657, 6
  %v1948 = vsel %vm1780, %v1946, %v1947
  %v1949 = vrot.slane %v1658, 6
  %v1950 = vrot.slane %v1949, 4
  %v1951 = vrot.slane %v1659, 6
  %v1952 = vsel %vm1780, %v1950, %v1951
  %v1953 = vrot.slane %v1951, 4
  %v1954 = vrot.slane %v1660, 6
  %v1955 = vsel %vm1780, %v1953, %v1954
  %v1956 = vrot.slane %v1661, 6
  %v1957 = vrot.slane %v1956, 4
  %v1958 = vrot.slane %v1662, 6
  %v1959 = vsel %vm1780, %v1957, %v1958
  %v1960 = vrot.slane %v1958, 4
  %v1961 = vrot.slane %v1663, 6
  %v1962 = vsel %vm1780, %v1960, %v1961
  %v1963 = vrot.slane %v1664, 6
  %v1964 = vrot.slane %v1963, 4
  %v1965 = vrot.slane %v1665, 6
  %v1966 = vsel %vm1780, %v1964, %v1965
  %v1967 = vrot.slane %v1965, 4
  %v1968 = vrot.slane %v1666, 6
  %v1969 = vsel %vm1780, %v1967, %v1968
  %v1970 = vrot.slane %v1667, 6
  %v1971 = vrot.slane %v1970, 4
  %v1972 = vrot.slane %v1668, 6
  %v1973 = vsel %vm1780, %v1971, %v1972
  %v1974 = vrot.slane %v1972, 4
  %v1975 = vrot.slane %v1669, 6
  %v1976 = vsel %vm1780, %v1974, %v1975
  %v1977 = vrot.slane %v1670, 6
  %v1978 = vrot.slane %v1977, 4
  %v1979 = vrot.slane %v1671, 6
  %v1980 = vsel %vm1780, %v1978, %v1979
  %v1981 = vrot.slane %v1979, 4
  %v1982 = vrot.slane %v1672, 6
  %v1983 = vsel %vm1780, %v1981, %v1982
  %v1984 = vrot.slane %v1673, 6
  %v1985 = vrot.slane %v1984, 4
  %v1986 = vrot.slane %v1674, 6
  %v1987 = vsel %vm1780, %v1985, %v1986
  %v1988 = vrot.slane %v1986, 4
  %v1989 = vrot.slane %v1675, 6
  %v1990 = vsel %vm1780, %v1988, %v1989
  %v1991 = vrot.slane %v1676, 6
  %v1992 = vrot.slane %v1991, 4
  %v1993 = vrot.slane %v1677, 6
  %v1994 = vsel %vm1780, %v1992, %v1993
  %v1995 = vrot.slane %v1993, 4
  %v1996 = vrot.slane %v1678, 6
  %v1997 = vsel %vm1780, %v1995, %v1996
  %v1998 = vrot.slane %v1679, 6
  %v1999 = vrot.slane %v1998, 4
  %v2000 = vrot.slane %v1680, 6
  %v2001 = vsel %vm1780, %v1999, %v2000
  %v2002 = vrot.slane %v2000, 4
  %v2003 = vrot.slane %v1681, 6
  %v2004 = vsel %vm1780, %v2002, %v2003
  %2005 = vrot.lane.b32.xlu0 %v1784, 8
  %v2006 = vpop.permute.xlu0 %2005
  %2007 = vrot.lane.b32.xlu0 %v1787, 8
  %v2008 = vpop.permute.xlu0 %2007
  %2009 = vrot.lane.b32.xlu0 %v1791, 8
  %v2010 = vpop.permute.xlu0 %2009
  %2011 = vrot.lane.b32.xlu0 %v1794, 8
  %v2012 = vpop.permute.xlu0 %2011
  %2013 = vrot.lane.b32.xlu0 %v1798, 8
  %v2014 = vpop.permute.xlu0 %2013
  %2015 = vrot.lane.b32.xlu0 %v1801, 8
  %v2016 = vpop.permute.xlu0 %2015
  %2017 = vrot.lane.b32.xlu0 %v1805, 8
  %v2018 = vpop.permute.xlu0 %2017
  %2019 = vrot.lane.b32.xlu0 %v1808, 8
  %v2020 = vpop.permute.xlu0 %2019
  %2021 = vrot.lane.b32.xlu0 %v1812, 8
  %v2022 = vpop.permute.xlu0 %2021
  %2023 = vrot.lane.b32.xlu0 %v1815, 8
  %v2024 = vpop.permute.xlu0 %2023
  %2025 = vrot.lane.b32.xlu0 %v1819, 8
  %v2026 = vpop.permute.xlu0 %2025
  %2027 = vrot.lane.b32.xlu0 %v1822, 8
  %v2028 = vpop.permute.xlu0 %2027
  %2029 = vrot.lane.b32.xlu0 %v1826, 8
  %v2030 = vpop.permute.xlu0 %2029
  %2031 = vrot.lane.b32.xlu0 %v1829, 8
  %v2032 = vpop.permute.xlu0 %2031
  %2033 = vrot.lane.b32.xlu0 %v1833, 8
  %v2034 = vpop.permute.xlu0 %2033
  %2035 = vrot.lane.b32.xlu0 %v1836, 8
  %v2036 = vpop.permute.xlu0 %2035
  %2037 = vrot.lane.b32.xlu0 %v1840, 8
  %v2038 = vpop.permute.xlu0 %2037
  %2039 = vrot.lane.b32.xlu0 %v1843, 8
  %v2040 = vpop.permute.xlu0 %2039
  %2041 = vrot.lane.b32.xlu0 %v1847, 8
  %v2042 = vpop.permute.xlu0 %2041
  %2043 = vrot.lane.b32.xlu0 %v1850, 8
  %v2044 = vpop.permute.xlu0 %2043
  %2045 = vrot.lane.b32.xlu0 %v1854, 8
  %v2046 = vpop.permute.xlu0 %2045
  %2047 = vrot.lane.b32.xlu0 %v1857, 8
  %v2048 = vpop.permute.xlu0 %2047
  %2049 = vrot.lane.b32.xlu0 %v1861, 8
  %v2050 = vpop.permute.xlu0 %2049
  %2051 = vrot.lane.b32.xlu0 %v1864, 8
  %v2052 = vpop.permute.xlu0 %2051
  %2053 = vrot.lane.b32.xlu0 %v1868, 8
  %v2054 = vpop.permute.xlu0 %2053
  %2055 = vrot.lane.b32.xlu0 %v1871, 8
  %v2056 = vpop.permute.xlu0 %2055
  %2057 = vrot.lane.b32.xlu0 %v1875, 8
  %v2058 = vpop.permute.xlu0 %2057
  %2059 = vrot.lane.b32.xlu0 %v1878, 8
  %v2060 = vpop.permute.xlu0 %2059
  %2061 = vrot.lane.b32.xlu0 %v1882, 8
  %v2062 = vpop.permute.xlu0 %2061
  %2063 = vrot.lane.b32.xlu0 %v1885, 8
  %v2064 = vpop.permute.xlu0 %2063
  %2065 = vrot.lane.b32.xlu0 %v1889, 8
  %v2066 = vpop.permute.xlu0 %2065
  %2067 = vrot.lane.b32.xlu0 %v1892, 8
  %v2068 = vpop.permute.xlu0 %2067
  %2069 = vrot.lane.b32.xlu0 %v1896, 8
  %v2070 = vpop.permute.xlu0 %2069
  %2071 = vrot.lane.b32.xlu0 %v1899, 8
  %v2072 = vpop.permute.xlu0 %2071
  %2073 = vrot.lane.b32.xlu0 %v1903, 8
  %v2074 = vpop.permute.xlu0 %2073
  %2075 = vrot.lane.b32.xlu0 %v1906, 8
  %v2076 = vpop.permute.xlu0 %2075
  %2077 = vrot.lane.b32.xlu0 %v1910, 8
  %v2078 = vpop.permute.xlu0 %2077
  %2079 = vrot.lane.b32.xlu0 %v1913, 8
  %v2080 = vpop.permute.xlu0 %2079
  %2081 = vrot.lane.b32.xlu0 %v1917, 8
  %v2082 = vpop.permute.xlu0 %2081
  %2083 = vrot.lane.b32.xlu0 %v1920, 8
  %v2084 = vpop.permute.xlu0 %2083
  %2085 = vrot.lane.b32.xlu0 %v1924, 8
  %v2086 = vpop.permute.xlu0 %2085
  %2087 = vrot.lane.b32.xlu0 %v1927, 8
  %v2088 = vpop.permute.xlu0 %2087
  %2089 = vrot.lane.b32.xlu0 %v1931, 8
  %v2090 = vpop.permute.xlu0 %2089
  %2091 = vrot.lane.b32.xlu0 %v1934, 8
  %v2092 = vpop.permute.xlu0 %2091
  %2093 = vrot.lane.b32.xlu0 %v1938, 8
  %v2094 = vpop.permute.xlu0 %2093
  %2095 = vrot.lane.b32.xlu0 %v1941, 8
  %v2096 = vpop.permute.xlu0 %2095
  %2097 = vrot.lane.b32.xlu0 %v1945, 8
  %v2098 = vpop.permute.xlu0 %2097
  %2099 = vrot.lane.b32.xlu0 %v1948, 8
  %v2100 = vpop.permute.xlu0 %2099
  %2101 = vrot.lane.b32.xlu0 %v1952, 8
  %v2102 = vpop.permute.xlu0 %2101
  %2103 = vrot.lane.b32.xlu0 %v1955, 8
  %v2104 = vpop.permute.xlu0 %2103
  %2105 = vrot.lane.b32.xlu0 %v1959, 8
  %v2106 = vpop.permute.xlu0 %2105
  %2107 = vrot.lane.b32.xlu0 %v1962, 8
  %v2108 = vpop.permute.xlu0 %2107
  %2109 = vrot.lane.b32.xlu0 %v1966, 8
  %v2110 = vpop.permute.xlu0 %2109
  %2111 = vrot.lane.b32.xlu0 %v1969, 8
  %v2112 = vpop.permute.xlu0 %2111
  %2113 = vrot.lane.b32.xlu0 %v1973, 8
  %v2114 = vpop.permute.xlu0 %2113
  %2115 = vrot.lane.b32.xlu0 %v1976, 8
  %v2116 = vpop.permute.xlu0 %2115
  %2117 = vrot.lane.b32.xlu0 %v1980, 8
  %v2118 = vpop.permute.xlu0 %2117
  %2119 = vrot.lane.b32.xlu0 %v1983, 8
  %v2120 = vpop.permute.xlu0 %2119
  %2121 = vrot.lane.b32.xlu0 %v1987, 8
  %v2122 = vpop.permute.xlu0 %2121
  %2123 = vrot.lane.b32.xlu0 %v1990, 8
  %v2124 = vpop.permute.xlu0 %2123
  %2125 = vrot.lane.b32.xlu0 %v1994, 8
  %v2126 = vpop.permute.xlu0 %2125
  %2127 = vrot.lane.b32.xlu0 %v1997, 8
  %v2128 = vpop.permute.xlu0 %2127
  %2129 = vrot.lane.b32.xlu0 %v2001, 8
  %v2130 = vpop.permute.xlu0 %2129
  %2131 = vrot.lane.b32.xlu0 %v2004, 8
  %v2132 = vpop.permute.xlu0 %2131
  %vm2197 = vcmask 93248
  %2198 = vst.msk [vmem:[#allocation3] sm:$0xf] %vm2197, %v2006
  %2199 = vst.msk [vmem:[#allocation3 + $0x4] sm:$0xf] %vm2197, %v2008
  %2200 = vst.msk [vmem:[#allocation3 + $0x8] sm:$0xf] %vm2197, %v2010
  %2201 = vst.msk [vmem:[#allocation3 + $0xc] sm:$0xf] %vm2197, %v2012
  %2202 = vst.msk [vmem:[#allocation3 + $0x10] sm:$0xf] %vm2197, %v2014
  %2203 = vst.msk [vmem:[#allocation3 + $0x14] sm:$0xf] %vm2197, %v2016
  %2204 = vst.msk [vmem:[#allocation3 + $0x18] sm:$0xf] %vm2197, %v2018
  %2205 = vst.msk [vmem:[#allocation3 + $0x1c] sm:$0xf] %vm2197, %v2020
  %2206 = vst.msk [vmem:[#allocation3 + $0x20] sm:$0xf] %vm2197, %v2022
  %2207 = vst.msk [vmem:[#allocation3 + $0x24] sm:$0xf] %vm2197, %v2024
  %2208 = vst.msk [vmem:[#allocation3 + $0x28] sm:$0xf] %vm2197, %v2026
  %2209 = vst.msk [vmem:[#allocation3 + $0x2c] sm:$0xf] %vm2197, %v2028
  %2210 = vst.msk [vmem:[#allocation3 + $0x30] sm:$0xf] %vm2197, %v2030
  %2211 = vst.msk [vmem:[#allocation3 + $0x34] sm:$0xf] %vm2197, %v2032
  %2212 = vst.msk [vmem:[#allocation3 + $0x38] sm:$0xf] %vm2197, %v2034
  %2213 = vst.msk [vmem:[#allocation3 + $0x3c] sm:$0xf] %vm2197, %v2036
  %2214 = vst.msk [vmem:[#allocation3 + $0x40] sm:$0xf] %vm2197, %v2038
  %2215 = vst.msk [vmem:[#allocation3 + $0x44] sm:$0xf] %vm2197, %v2040
  %2216 = vst.msk [vmem:[#allocation3 + $0x48] sm:$0xf] %vm2197, %v2042
  %2217 = vst.msk [vmem:[#allocation3 + $0x4c] sm:$0xf] %vm2197, %v2044
  %2218 = vst.msk [vmem:[#allocation3 + $0x50] sm:$0xf] %vm2197, %v2046
  %2219 = vst.msk [vmem:[#allocation3 + $0x54] sm:$0xf] %vm2197, %v2048
  %2220 = vst.msk [vmem:[#allocation3 + $0x58] sm:$0xf] %vm2197, %v2050
  %2221 = vst.msk [vmem:[#allocation3 + $0x5c] sm:$0xf] %vm2197, %v2052
  %2222 = vst.msk [vmem:[#allocation3 + $0x60] sm:$0xf] %vm2197, %v2054
  %2223 = vst.msk [vmem:[#allocation3 + $0x64] sm:$0xf] %vm2197, %v2056
  %2224 = vst.msk [vmem:[#allocation3 + $0x68] sm:$0xf] %vm2197, %v2058
  %2225 = vst.msk [vmem:[#allocation3 + $0x6c] sm:$0xf] %vm2197, %v2060
  %2226 = vst.msk [vmem:[#allocation3 + $0x70] sm:$0xf] %vm2197, %v2062
  %2227 = vst.msk [vmem:[#allocation3 + $0x74] sm:$0xf] %vm2197, %v2064
  %2228 = vst.msk [vmem:[#allocation3 + $0x78] sm:$0xf] %vm2197, %v2066
  %2229 = vst.msk [vmem:[#allocation3 + $0x7c] sm:$0xf] %vm2197, %v2068
  %2230 = vst.msk [vmem:[#allocation3 + $0x80] sm:$0xf] %vm2197, %v2070
  %2231 = vst.msk [vmem:[#allocation3 + $0x84] sm:$0xf] %vm2197, %v2072
  %2232 = vst.msk [vmem:[#allocation3 + $0x88] sm:$0xf] %vm2197, %v2074
  %2233 = vst.msk [vmem:[#allocation3 + $0x8c] sm:$0xf] %vm2197, %v2076
  %2234 = vst.msk [vmem:[#allocation3 + $0x90] sm:$0xf] %vm2197, %v2078
  %2235 = vst.msk [vmem:[#allocation3 + $0x94] sm:$0xf] %vm2197, %v2080
  %2236 = vst.msk [vmem:[#allocation3 + $0x98] sm:$0xf] %vm2197, %v2082
  %2237 = vst.msk [vmem:[#allocation3 + $0x9c] sm:$0xf] %vm2197, %v2084
  %2238 = vst.msk [vmem:[#allocation3 + $0xa0] sm:$0xf] %vm2197, %v2086
  %2239 = vst.msk [vmem:[#allocation3 + $0xa4] sm:$0xf] %vm2197, %v2088
  %2240 = vst.msk [vmem:[#allocation3 + $0xa8] sm:$0xf] %vm2197, %v2090
  %2241 = vst.msk [vmem:[#allocation3 + $0xac] sm:$0xf] %vm2197, %v2092
  %2242 = vst.msk [vmem:[#allocation3 + $0xb0] sm:$0xf] %vm2197, %v2094
  %2243 = vst.msk [vmem:[#allocation3 + $0xb4] sm:$0xf] %vm2197, %v2096
  %2244 = vst.msk [vmem:[#allocation3 + $0xb8] sm:$0xf] %vm2197, %v2098
  %2245 = vst.msk [vmem:[#allocation3 + $0xbc] sm:$0xf] %vm2197, %v2100
  %2246 = vst.msk [vmem:[#allocation3 + $0xc0] sm:$0xf] %vm2197, %v2102
  %2247 = vst.msk [vmem:[#allocation3 + $0xc4] sm:$0xf] %vm2197, %v2104
  %2248 = vst.msk [vmem:[#allocation3 + $0xc8] sm:$0xf] %vm2197, %v2106
  %2249 = vst.msk [vmem:[#allocation3 + $0xcc] sm:$0xf] %vm2197, %v2108
  %2250 = vst.msk [vmem:[#allocation3 + $0xd0] sm:$0xf] %vm2197, %v2110
  %2251 = vst.msk [vmem:[#allocation3 + $0xd4] sm:$0xf] %vm2197, %v2112
  %2252 = vst.msk [vmem:[#allocation3 + $0xd8] sm:$0xf] %vm2197, %v2114
  %2253 = vst.msk [vmem:[#allocation3 + $0xdc] sm:$0xf] %vm2197, %v2116
  %2254 = vst.msk [vmem:[#allocation3 + $0xe0] sm:$0xf] %vm2197, %v2118
  %2255 = vst.msk [vmem:[#allocation3 + $0xe4] sm:$0xf] %vm2197, %v2120
  %2256 = vst.msk [vmem:[#allocation3 + $0xe8] sm:$0xf] %vm2197, %v2122
  %2257 = vst.msk [vmem:[#allocation3 + $0xec] sm:$0xf] %vm2197, %v2124
  %2258 = vst.msk [vmem:[#allocation3 + $0xf0] sm:$0xf] %vm2197, %v2126
  %2259 = vst.msk [vmem:[#allocation3 + $0xf4] sm:$0xf] %vm2197, %v2128
  %2260 = vst.msk [vmem:[#allocation3 + $0xf8] sm:$0xf] %vm2197, %v2130
  %2261 = vst.msk [vmem:[#allocation3 + $0xfc] sm:$0xf] %vm2197, %v2132
  %v2262 = vld [vmem:[%s39] sm:$0xf]
  %v2263 = vld [vmem:[%s39 + $0x4] sm:$0xf]
  %v2264 = vld [vmem:[%s39 + $0xc] sm:$0xf]
  %v2265 = vld [vmem:[%s39 + $0x10] sm:$0xf]
  %v2266 = vld [vmem:[%s39 + $0x18] sm:$0xf]
  %v2267 = vld [vmem:[%s39 + $0x1c] sm:$0xf]
  %v2268 = vld [vmem:[%s39 + $0x24] sm:$0xf]
  %v2269 = vld [vmem:[%s39 + $0x28] sm:$0xf]
  %v2270 = vld [vmem:[%s39 + $0x30] sm:$0xf]
  %v2271 = vld [vmem:[%s39 + $0x34] sm:$0xf]
  %v2272 = vld [vmem:[%s39 + $0x3c] sm:$0xf]
  %v2273 = vld [vmem:[%s39 + $0x40] sm:$0xf]
  %v2274 = vld [vmem:[%s39 + $0x48] sm:$0xf]
  %v2275 = vld [vmem:[%s39 + $0x4c] sm:$0xf]
  %v2276 = vld [vmem:[%s39 + $0x54] sm:$0xf]
  %v2277 = vld [vmem:[%s39 + $0x58] sm:$0xf]
  %v2278 = vld [vmem:[%s39 + $0x60] sm:$0xf]
  %v2279 = vld [vmem:[%s39 + $0x64] sm:$0xf]
  %v2280 = vld [vmem:[%s39 + $0x6c] sm:$0xf]
  %v2281 = vld [vmem:[%s39 + $0x70] sm:$0xf]
  %v2282 = vld [vmem:[%s39 + $0x78] sm:$0xf]
  %v2283 = vld [vmem:[%s39 + $0x7c] sm:$0xf]
  %v2284 = vld [vmem:[%s39 + $0x84] sm:$0xf]
  %v2285 = vld [vmem:[%s39 + $0x88] sm:$0xf]
  %v2286 = vld [vmem:[%s39 + $0x90] sm:$0xf]
  %v2287 = vld [vmem:[%s39 + $0x94] sm:$0xf]
  %v2288 = vld [vmem:[%s39 + $0x9c] sm:$0xf]
  %v2289 = vld [vmem:[%s39 + $0xa0] sm:$0xf]
  %v2290 = vld [vmem:[%s39 + $0xa8] sm:$0xf]
  %v2291 = vld [vmem:[%s39 + $0xac] sm:$0xf]
  %v2292 = vld [vmem:[%s39 + $0xb4] sm:$0xf]
  %v2293 = vld [vmem:[%s39 + $0xb8] sm:$0xf]
  %v2294 = vld [vmem:[%s39 + $0xf0] sm:$0xf]
  %v2295 = vld [vmem:[%s39 + $0xf4] sm:$0xf]
  %v2296 = vld [vmem:[%s39 + $0xfc] sm:$0xf]
  %v2297 = vld [vmem:[%s39 + $0x100] sm:$0xf]
  %v2298 = vld [vmem:[%s39 + $0x108] sm:$0xf]
  %v2299 = vld [vmem:[%s39 + $0x10c] sm:$0xf]
  %v2300 = vld [vmem:[%s39 + $0x114] sm:$0xf]
  %v2301 = vld [vmem:[%s39 + $0x118] sm:$0xf]
  %v2302 = vld [vmem:[%s39 + $0x120] sm:$0xf]
  %v2303 = vld [vmem:[%s39 + $0x124] sm:$0xf]
  %v2304 = vld [vmem:[%s39 + $0x12c] sm:$0xf]
  %v2305 = vld [vmem:[%s39 + $0x130] sm:$0xf]
  %v2306 = vld [vmem:[%s39 + $0x138] sm:$0xf]
  %v2307 = vld [vmem:[%s39 + $0x13c] sm:$0xf]
  %v2308 = vld [vmem:[%s39 + $0x144] sm:$0xf]
  %v2309 = vld [vmem:[%s39 + $0x148] sm:$0xf]
  %v2310 = vld [vmem:[%s39 + $0x150] sm:$0xf]
  %v2311 = vld [vmem:[%s39 + $0x154] sm:$0xf]
  %v2312 = vld [vmem:[%s39 + $0x15c] sm:$0xf]
  %v2313 = vld [vmem:[%s39 + $0x160] sm:$0xf]
  %v2314 = vld [vmem:[%s39 + $0x168] sm:$0xf]
  %v2315 = vld [vmem:[%s39 + $0x16c] sm:$0xf]
  %v2316 = vld [vmem:[%s39 + $0x174] sm:$0xf]
  %v2317 = vld [vmem:[%s39 + $0x178] sm:$0xf]
  %v2318 = vld [vmem:[%s39 + $0x180] sm:$0xf]
  %v2319 = vld [vmem:[%s39 + $0x184] sm:$0xf]
  %v2320 = vld [vmem:[%s39 + $0x18c] sm:$0xf]
  %v2321 = vld [vmem:[%s39 + $0x190] sm:$0xf]
  %v2322 = vld [vmem:[%s39 + $0x198] sm:$0xf]
  %v2323 = vld [vmem:[%s39 + $0x19c] sm:$0xf]
  %v2324 = vld [vmem:[%s39 + $0x1a4] sm:$0xf]
  %v2325 = vld [vmem:[%s39 + $0x1a8] sm:$0xf]
  %2390 = vrot.lane.b32.xlu0 %v2262, 12
  %v2391 = vpop.permute.xlu0 %2390
  %2392 = vrot.lane.b32.xlu0 %v2263, 12
  %v2393 = vpop.permute.xlu0 %2392
  %2394 = vrot.lane.b32.xlu0 %v2264, 12
  %v2395 = vpop.permute.xlu0 %2394
  %2396 = vrot.lane.b32.xlu0 %v2265, 12
  %v2397 = vpop.permute.xlu0 %2396
  %2398 = vrot.lane.b32.xlu0 %v2266, 12
  %v2399 = vpop.permute.xlu0 %2398
  %2400 = vrot.lane.b32.xlu0 %v2267, 12
  %v2401 = vpop.permute.xlu0 %2400
  %2402 = vrot.lane.b32.xlu0 %v2268, 12
  %v2403 = vpop.permute.xlu0 %2402
  %2404 = vrot.lane.b32.xlu0 %v2269, 12
  %v2405 = vpop.permute.xlu0 %2404
  %2406 = vrot.lane.b32.xlu0 %v2270, 12
  %v2407 = vpop.permute.xlu0 %2406
  %2408 = vrot.lane.b32.xlu0 %v2271, 12
  %v2409 = vpop.permute.xlu0 %2408
  %2410 = vrot.lane.b32.xlu0 %v2272, 12
  %v2411 = vpop.permute.xlu0 %2410
  %2412 = vrot.lane.b32.xlu0 %v2273, 12
  %v2413 = vpop.permute.xlu0 %2412
  %2414 = vrot.lane.b32.xlu0 %v2274, 12
  %v2415 = vpop.permute.xlu0 %2414
  %2416 = vrot.lane.b32.xlu0 %v2275, 12
  %v2417 = vpop.permute.xlu0 %2416
  %2418 = vrot.lane.b32.xlu0 %v2276, 12
  %v2419 = vpop.permute.xlu0 %2418
  %2420 = vrot.lane.b32.xlu0 %v2277, 12
  %v2421 = vpop.permute.xlu0 %2420
  %2422 = vrot.lane.b32.xlu0 %v2278, 12
  %v2423 = vpop.permute.xlu0 %2422
  %2424 = vrot.lane.b32.xlu0 %v2279, 12
  %v2425 = vpop.permute.xlu0 %2424
  %2426 = vrot.lane.b32.xlu0 %v2280, 12
  %v2427 = vpop.permute.xlu0 %2426
  %2428 = vrot.lane.b32.xlu0 %v2281, 12
  %v2429 = vpop.permute.xlu0 %2428
  %2430 = vrot.lane.b32.xlu0 %v2282, 12
  %v2431 = vpop.permute.xlu0 %2430
  %2432 = vrot.lane.b32.xlu0 %v2283, 12
  %v2433 = vpop.permute.xlu0 %2432
  %2434 = vrot.lane.b32.xlu0 %v2284, 12
  %v2435 = vpop.permute.xlu0 %2434
  %2436 = vrot.lane.b32.xlu0 %v2285, 12
  %v2437 = vpop.permute.xlu0 %2436
  %2438 = vrot.lane.b32.xlu0 %v2286, 12
  %v2439 = vpop.permute.xlu0 %2438
  %2440 = vrot.lane.b32.xlu0 %v2287, 12
  %v2441 = vpop.permute.xlu0 %2440
  %2442 = vrot.lane.b32.xlu0 %v2288, 12
  %v2443 = vpop.permute.xlu0 %2442
  %2444 = vrot.lane.b32.xlu0 %v2289, 12
  %v2445 = vpop.permute.xlu0 %2444
  %2446 = vrot.lane.b32.xlu0 %v2290, 12
  %v2447 = vpop.permute.xlu0 %2446
  %2448 = vrot.lane.b32.xlu0 %v2291, 12
  %v2449 = vpop.permute.xlu0 %2448
  %2450 = vrot.lane.b32.xlu0 %v2292, 12
  %v2451 = vpop.permute.xlu0 %2450
  %2452 = vrot.lane.b32.xlu0 %v2293, 12
  %v2453 = vpop.permute.xlu0 %2452
  %2454 = vrot.lane.b32.xlu0 %v2294, 12
  %v2455 = vpop.permute.xlu0 %2454
  %2456 = vrot.lane.b32.xlu0 %v2295, 12
  %v2457 = vpop.permute.xlu0 %2456
  %2458 = vrot.lane.b32.xlu0 %v2296, 12
  %v2459 = vpop.permute.xlu0 %2458
  %2460 = vrot.lane.b32.xlu0 %v2297, 12
  %v2461 = vpop.permute.xlu0 %2460
  %2462 = vrot.lane.b32.xlu0 %v2298, 12
  %v2463 = vpop.permute.xlu0 %2462
  %2464 = vrot.lane.b32.xlu0 %v2299, 12
  %v2465 = vpop.permute.xlu0 %2464
  %2466 = vrot.lane.b32.xlu0 %v2300, 12
  %v2467 = vpop.permute.xlu0 %2466
  %2468 = vrot.lane.b32.xlu0 %v2301, 12
  %v2469 = vpop.permute.xlu0 %2468
  %2470 = vrot.lane.b32.xlu0 %v2302, 12
  %v2471 = vpop.permute.xlu0 %2470
  %2472 = vrot.lane.b32.xlu0 %v2303, 12
  %v2473 = vpop.permute.xlu0 %2472
  %2474 = vrot.lane.b32.xlu0 %v2304, 12
  %v2475 = vpop.permute.xlu0 %2474
  %2476 = vrot.lane.b32.xlu0 %v2305, 12
  %v2477 = vpop.permute.xlu0 %2476
  %2478 = vrot.lane.b32.xlu0 %v2306, 12
  %v2479 = vpop.permute.xlu0 %2478
  %2480 = vrot.lane.b32.xlu0 %v2307, 12
  %v2481 = vpop.permute.xlu0 %2480
  %2482 = vrot.lane.b32.xlu0 %v2308, 12
  %v2483 = vpop.permute.xlu0 %2482
  %2484 = vrot.lane.b32.xlu0 %v2309, 12
  %v2485 = vpop.permute.xlu0 %2484
  %2486 = vrot.lane.b32.xlu0 %v2310, 12
  %v2487 = vpop.permute.xlu0 %2486
  %2488 = vrot.lane.b32.xlu0 %v2311, 12
  %v2489 = vpop.permute.xlu0 %2488
  %2490 = vrot.lane.b32.xlu0 %v2312, 12
  %v2491 = vpop.permute.xlu0 %2490
  %2492 = vrot.lane.b32.xlu0 %v2313, 12
  %v2493 = vpop.permute.xlu0 %2492
  %2494 = vrot.lane.b32.xlu0 %v2314, 12
  %v2495 = vpop.permute.xlu0 %2494
  %2496 = vrot.lane.b32.xlu0 %v2315, 12
  %v2497 = vpop.permute.xlu0 %2496
  %2498 = vrot.lane.b32.xlu0 %v2316, 12
  %v2499 = vpop.permute.xlu0 %2498
  %2500 = vrot.lane.b32.xlu0 %v2317, 12
  %v2501 = vpop.permute.xlu0 %2500
  %2502 = vrot.lane.b32.xlu0 %v2318, 12
  %v2503 = vpop.permute.xlu0 %2502
  %2504 = vrot.lane.b32.xlu0 %v2319, 12
  %v2505 = vpop.permute.xlu0 %2504
  %2506 = vrot.lane.b32.xlu0 %v2320, 12
  %v2507 = vpop.permute.xlu0 %2506
  %2508 = vrot.lane.b32.xlu0 %v2321, 12
  %v2509 = vpop.permute.xlu0 %2508
  %2510 = vrot.lane.b32.xlu0 %v2322, 12
  %v2511 = vpop.permute.xlu0 %2510
  %2512 = vrot.lane.b32.xlu0 %v2323, 12
  %v2513 = vpop.permute.xlu0 %2512
  %2514 = vrot.lane.b32.xlu0 %v2324, 12
  %v2515 = vpop.permute.xlu0 %2514
  %2516 = vrot.lane.b32.xlu0 %v2325, 12
  %v2517 = vpop.permute.xlu0 %2516
  %vm2582 = vcmask 126048
  %2583 = vst.msk [vmem:[#allocation3] sm:$0xf] %vm2582, %v2391
  %2584 = vst.msk [vmem:[#allocation3 + $0x4] sm:$0xf] %vm2582, %v2393
  %2585 = vst.msk [vmem:[#allocation3 + $0x8] sm:$0xf] %vm2582, %v2395
  %2586 = vst.msk [vmem:[#allocation3 + $0xc] sm:$0xf] %vm2582, %v2397
  %2587 = vst.msk [vmem:[#allocation3 + $0x10] sm:$0xf] %vm2582, %v2399
  %2588 = vst.msk [vmem:[#allocation3 + $0x14] sm:$0xf] %vm2582, %v2401
  %2589 = vst.msk [vmem:[#allocation3 + $0x18] sm:$0xf] %vm2582, %v2403
  %2590 = vst.msk [vmem:[#allocation3 + $0x1c] sm:$0xf] %vm2582, %v2405
  %2591 = vst.msk [vmem:[#allocation3 + $0x20] sm:$0xf] %vm2582, %v2407
  %2592 = vst.msk [vmem:[#allocation3 + $0x24] sm:$0xf] %vm2582, %v2409
  %2593 = vst.msk [vmem:[#allocation3 + $0x28] sm:$0xf] %vm2582, %v2411
  %2594 = vst.msk [vmem:[#allocation3 + $0x2c] sm:$0xf] %vm2582, %v2413
  %2595 = vst.msk [vmem:[#allocation3 + $0x30] sm:$0xf] %vm2582, %v2415
  %2596 = vst.msk [vmem:[#allocation3 + $0x34] sm:$0xf] %vm2582, %v2417
  %2597 = vst.msk [vmem:[#allocation3 + $0x38] sm:$0xf] %vm2582, %v2419
  %2598 = vst.msk [vmem:[#allocation3 + $0x3c] sm:$0xf] %vm2582, %v2421
  %2599 = vst.msk [vmem:[#allocation3 + $0x40] sm:$0xf] %vm2582, %v2423
  %2600 = vst.msk [vmem:[#allocation3 + $0x44] sm:$0xf] %vm2582, %v2425
  %2601 = vst.msk [vmem:[#allocation3 + $0x48] sm:$0xf] %vm2582, %v2427
  %2602 = vst.msk [vmem:[#allocation3 + $0x4c] sm:$0xf] %vm2582, %v2429
  %2603 = vst.msk [vmem:[#allocation3 + $0x50] sm:$0xf] %vm2582, %v2431
  %2604 = vst.msk [vmem:[#allocation3 + $0x54] sm:$0xf] %vm2582, %v2433
  %2605 = vst.msk [vmem:[#allocation3 + $0x58] sm:$0xf] %vm2582, %v2435
  %2606 = vst.msk [vmem:[#allocation3 + $0x5c] sm:$0xf] %vm2582, %v2437
  %2607 = vst.msk [vmem:[#allocation3 + $0x60] sm:$0xf] %vm2582, %v2439
  %2608 = vst.msk [vmem:[#allocation3 + $0x64] sm:$0xf] %vm2582, %v2441
  %2609 = vst.msk [vmem:[#allocation3 + $0x68] sm:$0xf] %vm2582, %v2443
  %2610 = vst.msk [vmem:[#allocation3 + $0x6c] sm:$0xf] %vm2582, %v2445
  %2611 = vst.msk [vmem:[#allocation3 + $0x70] sm:$0xf] %vm2582, %v2447
  %2612 = vst.msk [vmem:[#allocation3 + $0x74] sm:$0xf] %vm2582, %v2449
  %2613 = vst.msk [vmem:[#allocation3 + $0x78] sm:$0xf] %vm2582, %v2451
  %2614 = vst.msk [vmem:[#allocation3 + $0x7c] sm:$0xf] %vm2582, %v2453
  %2615 = vst.msk [vmem:[#allocation3 + $0x80] sm:$0xf] %vm2582, %v2455
  %2616 = vst.msk [vmem:[#allocation3 + $0x84] sm:$0xf] %vm2582, %v2457
  %2617 = vst.msk [vmem:[#allocation3 + $0x88] sm:$0xf] %vm2582, %v2459
  %2618 = vst.msk [vmem:[#allocation3 + $0x8c] sm:$0xf] %vm2582, %v2461
  %2619 = vst.msk [vmem:[#allocation3 + $0x90] sm:$0xf] %vm2582, %v2463
  %2620 = vst.msk [vmem:[#allocation3 + $0x94] sm:$0xf] %vm2582, %v2465
  %2621 = vst.msk [vmem:[#allocation3 + $0x98] sm:$0xf] %vm2582, %v2467
  %2622 = vst.msk [vmem:[#allocation3 + $0x9c] sm:$0xf] %vm2582, %v2469
  %2623 = vst.msk [vmem:[#allocation3 + $0xa0] sm:$0xf] %vm2582, %v2471
  %2624 = vst.msk [vmem:[#allocation3 + $0xa4] sm:$0xf] %vm2582, %v2473
  %2625 = vst.msk [vmem:[#allocation3 + $0xa8] sm:$0xf] %vm2582, %v2475
  %2626 = vst.msk [vmem:[#allocation3 + $0xac] sm:$0xf] %vm2582, %v2477
  %2627 = vst.msk [vmem:[#allocation3 + $0xb0] sm:$0xf] %vm2582, %v2479
  %2628 = vst.msk [vmem:[#allocation3 + $0xb4] sm:$0xf] %vm2582, %v2481
  %2629 = vst.msk [vmem:[#allocation3 + $0xb8] sm:$0xf] %vm2582, %v2483
  %2630 = vst.msk [vmem:[#allocation3 + $0xbc] sm:$0xf] %vm2582, %v2485
  %2631 = vst.msk [vmem:[#allocation3 + $0xc0] sm:$0xf] %vm2582, %v2487
  %2632 = vst.msk [vmem:[#allocation3 + $0xc4] sm:$0xf] %vm2582, %v2489
  %2633 = vst.msk [vmem:[#allocation3 + $0xc8] sm:$0xf] %vm2582, %v2491
  %2634 = vst.msk [vmem:[#allocation3 + $0xcc] sm:$0xf] %vm2582, %v2493
  %2635 = vst.msk [vmem:[#allocation3 + $0xd0] sm:$0xf] %vm2582, %v2495
  %2636 = vst.msk [vmem:[#allocation3 + $0xd4] sm:$0xf] %vm2582, %v2497
  %2637 = vst.msk [vmem:[#allocation3 + $0xd8] sm:$0xf] %vm2582, %v2499
  %2638 = vst.msk [vmem:[#allocation3 + $0xdc] sm:$0xf] %vm2582, %v2501
  %2639 = vst.msk [vmem:[#allocation3 + $0xe0] sm:$0xf] %vm2582, %v2503
  %2640 = vst.msk [vmem:[#allocation3 + $0xe4] sm:$0xf] %vm2582, %v2505
  %2641 = vst.msk [vmem:[#allocation3 + $0xe8] sm:$0xf] %vm2582, %v2507
  %2642 = vst.msk [vmem:[#allocation3 + $0xec] sm:$0xf] %vm2582, %v2509
  %2643 = vst.msk [vmem:[#allocation3 + $0xf0] sm:$0xf] %vm2582, %v2511
  %2644 = vst.msk [vmem:[#allocation3 + $0xf4] sm:$0xf] %vm2582, %v2513
  %2645 = vst.msk [vmem:[#allocation3 + $0xf8] sm:$0xf] %vm2582, %v2515
  %2646 = vst.msk [vmem:[#allocation3 + $0xfc] sm:$0xf] %vm2582, %v2517
  %v2647 = vld [vmem:[%s39] sm:$0xe]
  %v2648 = vld [vmem:[%s39 + $0x4] sm:$0xf]
  %v2649 = vld [vmem:[%s39 + $0x8] sm:$0x1]
  %v2650 = vld [vmem:[%s39 + $0xc] sm:$0xe]
  %v2651 = vld [vmem:[%s39 + $0x10] sm:$0xf]
  %v2652 = vld [vmem:[%s39 + $0x14] sm:$0x1]
  %v2653 = vld [vmem:[%s39 + $0x18] sm:$0xe]
  %v2654 = vld [vmem:[%s39 + $0x1c] sm:$0xf]
  %v2655 = vld [vmem:[%s39 + $0x20] sm:$0x1]
  %v2656 = vld [vmem:[%s39 + $0x24] sm:$0xe]
  %v2657 = vld [vmem:[%s39 + $0x28] sm:$0xf]
  %v2658 = vld [vmem:[%s39 + $0x2c] sm:$0x1]
  %v2659 = vld [vmem:[%s39 + $0x30] sm:$0xe]
  %v2660 = vld [vmem:[%s39 + $0x34] sm:$0xf]
  %v2661 = vld [vmem:[%s39 + $0x38] sm:$0x1]
  %v2662 = vld [vmem:[%s39 + $0x3c] sm:$0xe]
  %v2663 = vld [vmem:[%s39 + $0x40] sm:$0xf]
  %v2664 = vld [vmem:[%s39 + $0x44] sm:$0x1]
  %v2665 = vld [vmem:[%s39 + $0x48] sm:$0xe]
  %v2666 = vld [vmem:[%s39 + $0x4c] sm:$0xf]
  %v2667 = vld [vmem:[%s39 + $0x50] sm:$0x1]
  %v2668 = vld [vmem:[%s39 + $0x54] sm:$0xe]
  %v2669 = vld [vmem:[%s39 + $0x58] sm:$0xf]
  %v2670 = vld [vmem:[%s39 + $0x5c] sm:$0x1]
  %v2671 = vld [vmem:[%s39 + $0x60] sm:$0xe]
  %v2672 = vld [vmem:[%s39 + $0x64] sm:$0xf]
  %v2673 = vld [vmem:[%s39 + $0x68] sm:$0x1]
  %v2674 = vld [vmem:[%s39 + $0x6c] sm:$0xe]
  %v2675 = vld [vmem:[%s39 + $0x70] sm:$0xf]
  %v2676 = vld [vmem:[%s39 + $0x74] sm:$0x1]
  %v2677 = vld [vmem:[%s39 + $0x78] sm:$0xe]
  %v2678 = vld [vmem:[%s39 + $0x7c] sm:$0xf]
  %v2679 = vld [vmem:[%s39 + $0x80] sm:$0x1]
  %v2680 = vld [vmem:[%s39 + $0x84] sm:$0xe]
  %v2681 = vld [vmem:[%s39 + $0x88] sm:$0xf]
  %v2682 = vld [vmem:[%s39 + $0x8c] sm:$0x1]
  %v2683 = vld [vmem:[%s39 + $0x90] sm:$0xe]
  %v2684 = vld [vmem:[%s39 + $0x94] sm:$0xf]
  %v2685 = vld [vmem:[%s39 + $0x98] sm:$0x1]
  %v2686 = vld [vmem:[%s39 + $0x9c] sm:$0xe]
  %v2687 = vld [vmem:[%s39 + $0xa0] sm:$0xf]
  %v2688 = vld [vmem:[%s39 + $0xa4] sm:$0x1]
  %v2689 = vld [vmem:[%s39 + $0xa8] sm:$0xe]
  %v2690 = vld [vmem:[%s39 + $0xac] sm:$0xf]
  %v2691 = vld [vmem:[%s39 + $0xb0] sm:$0x1]
  %v2692 = vld [vmem:[%s39 + $0xb4] sm:$0xe]
  %v2693 = vld [vmem:[%s39 + $0xb8] sm:$0xf]
  %v2694 = vld [vmem:[%s39 + $0xbc] sm:$0x1]
  %v2695 = vld [vmem:[%s39 + $0xf0] sm:$0xe]
  %v2696 = vld [vmem:[%s39 + $0xf4] sm:$0xf]
  %v2697 = vld [vmem:[%s39 + $0xf8] sm:$0x1]
  %v2698 = vld [vmem:[%s39 + $0xfc] sm:$0xe]
  %v2699 = vld [vmem:[%s39 + $0x100] sm:$0xf]
  %v2700 = vld [vmem:[%s39 + $0x104] sm:$0x1]
  %v2701 = vld [vmem:[%s39 + $0x108] sm:$0xe]
  %v2702 = vld [vmem:[%s39 + $0x10c] sm:$0xf]
  %v2703 = vld [vmem:[%s39 + $0x110] sm:$0x1]
  %v2704 = vld [vmem:[%s39 + $0x114] sm:$0xe]
  %v2705 = vld [vmem:[%s39 + $0x118] sm:$0xf]
  %v2706 = vld [vmem:[%s39 + $0x11c] sm:$0x1]
  %v2707 = vld [vmem:[%s39 + $0x120] sm:$0xe]
  %v2708 = vld [vmem:[%s39 + $0x124] sm:$0xf]
  %v2709 = vld [vmem:[%s39 + $0x128] sm:$0x1]
  %v2710 = vld [vmem:[%s39 + $0x12c] sm:$0xe]
  %v2711 = vld [vmem:[%s39 + $0x130] sm:$0xf]
  %v2712 = vld [vmem:[%s39 + $0x134] sm:$0x1]
  %v2713 = vld [vmem:[%s39 + $0x138] sm:$0xe]
  %v2714 = vld [vmem:[%s39 + $0x13c] sm:$0xf]
  %v2715 = vld [vmem:[%s39 + $0x140] sm:$0x1]
  %v2716 = vld [vmem:[%s39 + $0x144] sm:$0xe]
  %v2717 = vld [vmem:[%s39 + $0x148] sm:$0xf]
  %v2718 = vld [vmem:[%s39 + $0x14c] sm:$0x1]
  %v2719 = vld [vmem:[%s39 + $0x150] sm:$0xe]
  %v2720 = vld [vmem:[%s39 + $0x154] sm:$0xf]
  %v2721 = vld [vmem:[%s39 + $0x158] sm:$0x1]
  %v2722 = vld [vmem:[%s39 + $0x15c] sm:$0xe]
  %v2723 = vld [vmem:[%s39 + $0x160] sm:$0xf]
  %v2724 = vld [vmem:[%s39 + $0x164] sm:$0x1]
  %v2725 = vld [vmem:[%s39 + $0x168] sm:$0xe]
  %v2726 = vld [vmem:[%s39 + $0x16c] sm:$0xf]
  %v2727 = vld [vmem:[%s39 + $0x170] sm:$0x1]
  %v2728 = vld [vmem:[%s39 + $0x174] sm:$0xe]
  %v2729 = vld [vmem:[%s39 + $0x178] sm:$0xf]
  %v2730 = vld [vmem:[%s39 + $0x17c] sm:$0x1]
  %v2731 = vld [vmem:[%s39 + $0x180] sm:$0xe]
  %v2732 = vld [vmem:[%s39 + $0x184] sm:$0xf]
  %v2733 = vld [vmem:[%s39 + $0x188] sm:$0x1]
  %v2734 = vld [vmem:[%s39 + $0x18c] sm:$0xe]
  %v2735 = vld [vmem:[%s39 + $0x190] sm:$0xf]
  %v2736 = vld [vmem:[%s39 + $0x194] sm:$0x1]
  %v2737 = vld [vmem:[%s39 + $0x198] sm:$0xe]
  %v2738 = vld [vmem:[%s39 + $0x19c] sm:$0xf]
  %v2739 = vld [vmem:[%s39 + $0x1a0] sm:$0x1]
  %v2740 = vld [vmem:[%s39 + $0x1a4] sm:$0xe]
  %v2741 = vld [vmem:[%s39 + $0x1a8] sm:$0xf]
  %v2742 = vld [vmem:[%s39 + $0x1ac] sm:$0x1]
  %v2839 = vrot.slane %v2647, 5
  %v2840 = vrot.slane %v2839, 4
  %v2841 = vrot.slane %v2648, 5
  %v2842 = vsel %vm1104, %v2840, %v2841
  %v2843 = vrot.slane %v2841, 4
  %v2844 = vrot.slane %v2649, 5
  %v2845 = vsel %vm1104, %v2843, %v2844
  %v2846 = vrot.slane %v2650, 5
  %v2847 = vrot.slane %v2846, 4
  %v2848 = vrot.slane %v2651, 5
  %v2849 = vsel %vm1104, %v2847, %v2848
  %v2850 = vrot.slane %v2848, 4
  %v2851 = vrot.slane %v2652, 5
  %v2852 = vsel %vm1104, %v2850, %v2851
  %v2853 = vrot.slane %v2653, 5
  %v2854 = vrot.slane %v2853, 4
  %v2855 = vrot.slane %v2654, 5
  %v2856 = vsel %vm1104, %v2854, %v2855
  %v2857 = vrot.slane %v2855, 4
  %v2858 = vrot.slane %v2655, 5
  %v2859 = vsel %vm1104, %v2857, %v2858
  %v2860 = vrot.slane %v2656, 5
  %v2861 = vrot.slane %v2860, 4
  %v2862 = vrot.slane %v2657, 5
  %v2863 = vsel %vm1104, %v2861, %v2862
  %v2864 = vrot.slane %v2862, 4
  %v2865 = vrot.slane %v2658, 5
  %v2866 = vsel %vm1104, %v2864, %v2865
  %v2867 = vrot.slane %v2659, 5
  %v2868 = vrot.slane %v2867, 4
  %v2869 = vrot.slane %v2660, 5
  %v2870 = vsel %vm1104, %v2868, %v2869
  %v2871 = vrot.slane %v2869, 4
  %v2872 = vrot.slane %v2661, 5
  %v2873 = vsel %vm1104, %v2871, %v2872
  %v2874 = vrot.slane %v2662, 5
  %v2875 = vrot.slane %v2874, 4
  %v2876 = vrot.slane %v2663, 5
  %v2877 = vsel %vm1104, %v2875, %v2876
  %v2878 = vrot.slane %v2876, 4
  %v2879 = vrot.slane %v2664, 5
  %v2880 = vsel %vm1104, %v2878, %v2879
  %v2881 = vrot.slane %v2665, 5
  %v2882 = vrot.slane %v2881, 4
  %v2883 = vrot.slane %v2666, 5
  %v2884 = vsel %vm1104, %v2882, %v2883
  %v2885 = vrot.slane %v2883, 4
  %v2886 = vrot.slane %v2667, 5
  %v2887 = vsel %vm1104, %v2885, %v2886
  %v2888 = vrot.slane %v2668, 5
  %v2889 = vrot.slane %v2888, 4
  %v2890 = vrot.slane %v2669, 5
  %v2891 = vsel %vm1104, %v2889, %v2890
  %v2892 = vrot.slane %v2890, 4
  %v2893 = vrot.slane %v2670, 5
  %v2894 = vsel %vm1104, %v2892, %v2893
  %v2895 = vrot.slane %v2671, 5
  %v2896 = vrot.slane %v2895, 4
  %v2897 = vrot.slane %v2672, 5
  %v2898 = vsel %vm1104, %v2896, %v2897
  %v2899 = vrot.slane %v2897, 4
  %v2900 = vrot.slane %v2673, 5
  %v2901 = vsel %vm1104, %v2899, %v2900
  %v2902 = vrot.slane %v2674, 5
  %v2903 = vrot.slane %v2902, 4
  %v2904 = vrot.slane %v2675, 5
  %v2905 = vsel %vm1104, %v2903, %v2904
  %v2906 = vrot.slane %v2904, 4
  %v2907 = vrot.slane %v2676, 5
  %v2908 = vsel %vm1104, %v2906, %v2907
  %v2909 = vrot.slane %v2677, 5
  %v2910 = vrot.slane %v2909, 4
  %v2911 = vrot.slane %v2678, 5
  %v2912 = vsel %vm1104, %v2910, %v2911
  %v2913 = vrot.slane %v2911, 4
  %v2914 = vrot.slane %v2679, 5
  %v2915 = vsel %vm1104, %v2913, %v2914
  %v2916 = vrot.slane %v2680, 5
  %v2917 = vrot.slane %v2916, 4
  %v2918 = vrot.slane %v2681, 5
  %v2919 = vsel %vm1104, %v2917, %v2918
  %v2920 = vrot.slane %v2918, 4
  %v2921 = vrot.slane %v2682, 5
  %v2922 = vsel %vm1104, %v2920, %v2921
  %v2923 = vrot.slane %v2683, 5
  %v2924 = vrot.slane %v2923, 4
  %v2925 = vrot.slane %v2684, 5
  %v2926 = vsel %vm1104, %v2924, %v2925
  %v2927 = vrot.slane %v2925, 4
  %v2928 = vrot.slane %v2685, 5
  %v2929 = vsel %vm1104, %v2927, %v2928
  %v2930 = vrot.slane %v2686, 5
  %v2931 = vrot.slane %v2930, 4
  %v2932 = vrot.slane %v2687, 5
  %v2933 = vsel %vm1104, %v2931, %v2932
  %v2934 = vrot.slane %v2932, 4
  %v2935 = vrot.slane %v2688, 5
  %v2936 = vsel %vm1104, %v2934, %v2935
  %v2937 = vrot.slane %v2689, 5
  %v2938 = vrot.slane %v2937, 4
  %v2939 = vrot.slane %v2690, 5
  %v2940 = vsel %vm1104, %v2938, %v2939
  %v2941 = vrot.slane %v2939, 4
  %v2942 = vrot.slane %v2691, 5
  %v2943 = vsel %vm1104, %v2941, %v2942
  %v2944 = vrot.slane %v2692, 5
  %v2945 = vrot.slane %v2944, 4
  %v2946 = vrot.slane %v2693, 5
  %v2947 = vsel %vm1104, %v2945, %v2946
  %v2948 = vrot.slane %v2946, 4
  %v2949 = vrot.slane %v2694, 5
  %v2950 = vsel %vm1104, %v2948, %v2949
  %v2951 = vrot.slane %v2695, 5
  %v2952 = vrot.slane %v2951, 4
  %v2953 = vrot.slane %v2696, 5
  %v2954 = vsel %vm1104, %v2952, %v2953
  %v2955 = vrot.slane %v2953, 4
  %v2956 = vrot.slane %v2697, 5
  %v2957 = vsel %vm1104, %v2955, %v2956
  %v2958 = vrot.slane %v2698, 5
  %v2959 = vrot.slane %v2958, 4
  %v2960 = vrot.slane %v2699, 5
  %v2961 = vsel %vm1104, %v2959, %v2960
  %v2962 = vrot.slane %v2960, 4
  %v2963 = vrot.slane %v2700, 5
  %v2964 = vsel %vm1104, %v2962, %v2963
  %v2965 = vrot.slane %v2701, 5
  %v2966 = vrot.slane %v2965, 4
  %v2967 = vrot.slane %v2702, 5
  %v2968 = vsel %vm1104, %v2966, %v2967
  %v2969 = vrot.slane %v2967, 4
  %v2970 = vrot.slane %v2703, 5
  %v2971 = vsel %vm1104, %v2969, %v2970
  %v2972 = vrot.slane %v2704, 5
  %v2973 = vrot.slane %v2972, 4
  %v2974 = vrot.slane %v2705, 5
  %v2975 = vsel %vm1104, %v2973, %v2974
  %v2976 = vrot.slane %v2974, 4
  %v2977 = vrot.slane %v2706, 5
  %v2978 = vsel %vm1104, %v2976, %v2977
  %v2979 = vrot.slane %v2707, 5
  %v2980 = vrot.slane %v2979, 4
  %v2981 = vrot.slane %v2708, 5
  %v2982 = vsel %vm1104, %v2980, %v2981
  %v2983 = vrot.slane %v2981, 4
  %v2984 = vrot.slane %v2709, 5
  %v2985 = vsel %vm1104, %v2983, %v2984
  %v2986 = vrot.slane %v2710, 5
  %v2987 = vrot.slane %v2986, 4
  %v2988 = vrot.slane %v2711, 5
  %v2989 = vsel %vm1104, %v2987, %v2988
  %v2990 = vrot.slane %v2988, 4
  %v2991 = vrot.slane %v2712, 5
  %v2992 = vsel %vm1104, %v2990, %v2991
  %v2993 = vrot.slane %v2713, 5
  %v2994 = vrot.slane %v2993, 4
  %v2995 = vrot.slane %v2714, 5
  %v2996 = vsel %vm1104, %v2994, %v2995
  %v2997 = vrot.slane %v2995, 4
  %v2998 = vrot.slane %v2715, 5
  %v2999 = vsel %vm1104, %v2997, %v2998
  %v3000 = vrot.slane %v2716, 5
  %v3001 = vrot.slane %v3000, 4
  %v3002 = vrot.slane %v2717, 5
  %v3003 = vsel %vm1104, %v3001, %v3002
  %v3004 = vrot.slane %v3002, 4
  %v3005 = vrot.slane %v2718, 5
  %v3006 = vsel %vm1104, %v3004, %v3005
  %v3007 = vrot.slane %v2719, 5
  %v3008 = vrot.slane %v3007, 4
  %v3009 = vrot.slane %v2720, 5
  %v3010 = vsel %vm1104, %v3008, %v3009
  %v3011 = vrot.slane %v3009, 4
  %v3012 = vrot.slane %v2721, 5
  %v3013 = vsel %vm1104, %v3011, %v3012
  %v3014 = vrot.slane %v2722, 5
  %v3015 = vrot.slane %v3014, 4
  %v3016 = vrot.slane %v2723, 5
  %v3017 = vsel %vm1104, %v3015, %v3016
  %v3018 = vrot.slane %v3016, 4
  %v3019 = vrot.slane %v2724, 5
  %v3020 = vsel %vm1104, %v3018, %v3019
  %v3021 = vrot.slane %v2725, 5
  %v3022 = vrot.slane %v3021, 4
  %v3023 = vrot.slane %v2726, 5
  %v3024 = vsel %vm1104, %v3022, %v3023
  %v3025 = vrot.slane %v3023, 4
  %v3026 = vrot.slane %v2727, 5
  %v3027 = vsel %vm1104, %v3025, %v3026
  %v3028 = vrot.slane %v2728, 5
  %v3029 = vrot.slane %v3028, 4
  %v3030 = vrot.slane %v2729, 5
  %v3031 = vsel %vm1104, %v3029, %v3030
  %v3032 = vrot.slane %v3030, 4
  %v3033 = vrot.slane %v2730, 5
  %v3034 = vsel %vm1104, %v3032, %v3033
  %v3035 = vrot.slane %v2731, 5
  %v3036 = vrot.slane %v3035, 4
  %v3037 = vrot.slane %v2732, 5
  %v3038 = vsel %vm1104, %v3036, %v3037
  %v3039 = vrot.slane %v3037, 4
  %v3040 = vrot.slane %v2733, 5
  %v3041 = vsel %vm1104, %v3039, %v3040
  %v3042 = vrot.slane %v2734, 5
  %v3043 = vrot.slane %v3042, 4
  %v3044 = vrot.slane %v2735, 5
  %v3045 = vsel %vm1104, %v3043, %v3044
  %v3046 = vrot.slane %v3044, 4
  %v3047 = vrot.slane %v2736, 5
  %v3048 = vsel %vm1104, %v3046, %v3047
  %v3049 = vrot.slane %v2737, 5
  %v3050 = vrot.slane %v3049, 4
  %v3051 = vrot.slane %v2738, 5
  %v3052 = vsel %vm1104, %v3050, %v3051
  %v3053 = vrot.slane %v3051, 4
  %v3054 = vrot.slane %v2739, 5
  %v3055 = vsel %vm1104, %v3053, %v3054
  %v3056 = vrot.slane %v2740, 5
  %v3057 = vrot.slane %v3056, 4
  %v3058 = vrot.slane %v2741, 5
  %v3059 = vsel %vm1104, %v3057, %v3058
  %v3060 = vrot.slane %v3058, 4
  %v3061 = vrot.slane %v2742, 5
  %v3062 = vsel %vm1104, %v3060, %v3061
  %3063 = vrot.lane.b32.xlu0 %v2842, 16
  %v3064 = vpop.permute.xlu0 %3063
  %3065 = vrot.lane.b32.xlu0 %v2845, 16
  %v3066 = vpop.permute.xlu0 %3065
  %3067 = vrot.lane.b32.xlu0 %v2849, 16
  %v3068 = vpop.permute.xlu0 %3067
  %3069 = vrot.lane.b32.xlu0 %v2852, 16
  %v3070 = vpop.permute.xlu0 %3069
  %3071 = vrot.lane.b32.xlu0 %v2856, 16
  %v3072 = vpop.permute.xlu0 %3071
  %3073 = vrot.lane.b32.xlu0 %v2859, 16
  %v3074 = vpop.permute.xlu0 %3073
  %3075 = vrot.lane.b32.xlu0 %v2863, 16
  %v3076 = vpop.permute.xlu0 %3075
  %3077 = vrot.lane.b32.xlu0 %v2866, 16
  %v3078 = vpop.permute.xlu0 %3077
  %3079 = vrot.lane.b32.xlu0 %v2870, 16
  %v3080 = vpop.permute.xlu0 %3079
  %3081 = vrot.lane.b32.xlu0 %v2873, 16
  %v3082 = vpop.permute.xlu0 %3081
  %3083 = vrot.lane.b32.xlu0 %v2877, 16
  %v3084 = vpop.permute.xlu0 %3083
  %3085 = vrot.lane.b32.xlu0 %v2880, 16
  %v3086 = vpop.permute.xlu0 %3085
  %3087 = vrot.lane.b32.xlu0 %v2884, 16
  %v3088 = vpop.permute.xlu0 %3087
  %3089 = vrot.lane.b32.xlu0 %v2887, 16
  %v3090 = vpop.permute.xlu0 %3089
  %3091 = vrot.lane.b32.xlu0 %v2891, 16
  %v3092 = vpop.permute.xlu0 %3091
  %3093 = vrot.lane.b32.xlu0 %v2894, 16
  %v3094 = vpop.permute.xlu0 %3093
  %3095 = vrot.lane.b32.xlu0 %v2898, 16
  %v3096 = vpop.permute.xlu0 %3095
  %3097 = vrot.lane.b32.xlu0 %v2901, 16
  %v3098 = vpop.permute.xlu0 %3097
  %3099 = vrot.lane.b32.xlu0 %v2905, 16
  %v3100 = vpop.permute.xlu0 %3099
  %3101 = vrot.lane.b32.xlu0 %v2908, 16
  %v3102 = vpop.permute.xlu0 %3101
  %3103 = vrot.lane.b32.xlu0 %v2912, 16
  %v3104 = vpop.permute.xlu0 %3103
  %3105 = vrot.lane.b32.xlu0 %v2915, 16
  %v3106 = vpop.permute.xlu0 %3105
  %3107 = vrot.lane.b32.xlu0 %v2919, 16
  %v3108 = vpop.permute.xlu0 %3107
  %3109 = vrot.lane.b32.xlu0 %v2922, 16
  %v3110 = vpop.permute.xlu0 %3109
  %3111 = vrot.lane.b32.xlu0 %v2926, 16
  %v3112 = vpop.permute.xlu0 %3111
  %3113 = vrot.lane.b32.xlu0 %v2929, 16
  %v3114 = vpop.permute.xlu0 %3113
  %3115 = vrot.lane.b32.xlu0 %v2933, 16
  %v3116 = vpop.permute.xlu0 %3115
  %3117 = vrot.lane.b32.xlu0 %v2936, 16
  %v3118 = vpop.permute.xlu0 %3117
  %3119 = vrot.lane.b32.xlu0 %v2940, 16
  %v3120 = vpop.permute.xlu0 %3119
  %3121 = vrot.lane.b32.xlu0 %v2943, 16
  %v3122 = vpop.permute.xlu0 %3121
  %3123 = vrot.lane.b32.xlu0 %v2947, 16
  %v3124 = vpop.permute.xlu0 %3123
  %3125 = vrot.lane.b32.xlu0 %v2950, 16
  %v3126 = vpop.permute.xlu0 %3125
  %3127 = vrot.lane.b32.xlu0 %v2954, 16
  %v3128 = vpop.permute.xlu0 %3127
  %3129 = vrot.lane.b32.xlu0 %v2957, 16
  %v3130 = vpop.permute.xlu0 %3129
  %3131 = vrot.lane.b32.xlu0 %v2961, 16
  %v3132 = vpop.permute.xlu0 %3131
  %3133 = vrot.lane.b32.xlu0 %v2964, 16
  %v3134 = vpop.permute.xlu0 %3133
  %3135 = vrot.lane.b32.xlu0 %v2968, 16
  %v3136 = vpop.permute.xlu0 %3135
  %3137 = vrot.lane.b32.xlu0 %v2971, 16
  %v3138 = vpop.permute.xlu0 %3137
  %3139 = vrot.lane.b32.xlu0 %v2975, 16
  %v3140 = vpop.permute.xlu0 %3139
  %3141 = vrot.lane.b32.xlu0 %v2978, 16
  %v3142 = vpop.permute.xlu0 %3141
  %3143 = vrot.lane.b32.xlu0 %v2982, 16
  %v3144 = vpop.permute.xlu0 %3143
  %3145 = vrot.lane.b32.xlu0 %v2985, 16
  %v3146 = vpop.permute.xlu0 %3145
  %3147 = vrot.lane.b32.xlu0 %v2989, 16
  %v3148 = vpop.permute.xlu0 %3147
  %3149 = vrot.lane.b32.xlu0 %v2992, 16
  %v3150 = vpop.permute.xlu0 %3149
  %3151 = vrot.lane.b32.xlu0 %v2996, 16
  %v3152 = vpop.permute.xlu0 %3151
  %3153 = vrot.lane.b32.xlu0 %v2999, 16
  %v3154 = vpop.permute.xlu0 %3153
  %3155 = vrot.lane.b32.xlu0 %v3003, 16
  %v3156 = vpop.permute.xlu0 %3155
  %3157 = vrot.lane.b32.xlu0 %v3006, 16
  %v3158 = vpop.permute.xlu0 %3157
  %3159 = vrot.lane.b32.xlu0 %v3010, 16
  %v3160 = vpop.permute.xlu0 %3159
  %3161 = vrot.lane.b32.xlu0 %v3013, 16
  %v3162 = vpop.permute.xlu0 %3161
  %3163 = vrot.lane.b32.xlu0 %v3017, 16
  %v3164 = vpop.permute.xlu0 %3163
  %3165 = vrot.lane.b32.xlu0 %v3020, 16
  %v3166 = vpop.permute.xlu0 %3165
  %3167 = vrot.lane.b32.xlu0 %v3024, 16
  %v3168 = vpop.permute.xlu0 %3167
  %3169 = vrot.lane.b32.xlu0 %v3027, 16
  %v3170 = vpop.permute.xlu0 %3169
  %3171 = vrot.lane.b32.xlu0 %v3031, 16
  %v3172 = vpop.permute.xlu0 %3171
  %3173 = vrot.lane.b32.xlu0 %v3034, 16
  %v3174 = vpop.permute.xlu0 %3173
  %3175 = vrot.lane.b32.xlu0 %v3038, 16
  %v3176 = vpop.permute.xlu0 %3175
  %3177 = vrot.lane.b32.xlu0 %v3041, 16
  %v3178 = vpop.permute.xlu0 %3177
  %3179 = vrot.lane.b32.xlu0 %v3045, 16
  %v3180 = vpop.permute.xlu0 %3179
  %3181 = vrot.lane.b32.xlu0 %v3048, 16
  %v3182 = vpop.permute.xlu0 %3181
  %3183 = vrot.lane.b32.xlu0 %v3052, 16
  %v3184 = vpop.permute.xlu0 %3183
  %3185 = vrot.lane.b32.xlu0 %v3055, 16
  %v3186 = vpop.permute.xlu0 %3185
  %3187 = vrot.lane.b32.xlu0 %v3059, 16
  %v3188 = vpop.permute.xlu0 %3187
  %3189 = vrot.lane.b32.xlu0 %v3062, 16
  %v3190 = vpop.permute.xlu0 %3189
  %vm3255 = vcmask 158848
  %3256 = vst.msk [vmem:[#allocation3] sm:$0xf] %vm3255, %v3064
  %3257 = vst.msk [vmem:[#allocation3 + $0x4] sm:$0xf] %vm3255, %v3066
  %3258 = vst.msk [vmem:[#allocation3 + $0x8] sm:$0xf] %vm3255, %v3068
  %3259 = vst.msk [vmem:[#allocation3 + $0xc] sm:$0xf] %vm3255, %v3070
  %3260 = vst.msk [vmem:[#allocation3 + $0x10] sm:$0xf] %vm3255, %v3072
  %3261 = vst.msk [vmem:[#allocation3 + $0x14] sm:$0xf] %vm3255, %v3074
  %3262 = vst.msk [vmem:[#allocation3 + $0x18] sm:$0xf] %vm3255, %v3076
  %3263 = vst.msk [vmem:[#allocation3 + $0x1c] sm:$0xf] %vm3255, %v3078
  %3264 = vst.msk [vmem:[#allocation3 + $0x20] sm:$0xf] %vm3255, %v3080
  %3265 = vst.msk [vmem:[#allocation3 + $0x24] sm:$0xf] %vm3255, %v3082
  %3266 = vst.msk [vmem:[#allocation3 + $0x28] sm:$0xf] %vm3255, %v3084
  %3267 = vst.msk [vmem:[#allocation3 + $0x2c] sm:$0xf] %vm3255, %v3086
  %3268 = vst.msk [vmem:[#allocation3 + $0x30] sm:$0xf] %vm3255, %v3088
  %3269 = vst.msk [vmem:[#allocation3 + $0x34] sm:$0xf] %vm3255, %v3090
  %3270 = vst.msk [vmem:[#allocation3 + $0x38] sm:$0xf] %vm3255, %v3092
  %3271 = vst.msk [vmem:[#allocation3 + $0x3c] sm:$0xf] %vm3255, %v3094
  %3272 = vst.msk [vmem:[#allocation3 + $0x40] sm:$0xf] %vm3255, %v3096
  %3273 = vst.msk [vmem:[#allocation3 + $0x44] sm:$0xf] %vm3255, %v3098
  %3274 = vst.msk [vmem:[#allocation3 + $0x48] sm:$0xf] %vm3255, %v3100
  %3275 = vst.msk [vmem:[#allocation3 + $0x4c] sm:$0xf] %vm3255, %v3102
  %3276 = vst.msk [vmem:[#allocation3 + $0x50] sm:$0xf] %vm3255, %v3104
  %3277 = vst.msk [vmem:[#allocation3 + $0x54] sm:$0xf] %vm3255, %v3106
  %3278 = vst.msk [vmem:[#allocation3 + $0x58] sm:$0xf] %vm3255, %v3108
  %3279 = vst.msk [vmem:[#allocation3 + $0x5c] sm:$0xf] %vm3255, %v3110
  %3280 = vst.msk [vmem:[#allocation3 + $0x60] sm:$0xf] %vm3255, %v3112
  %3281 = vst.msk [vmem:[#allocation3 + $0x64] sm:$0xf] %vm3255, %v3114
  %3282 = vst.msk [vmem:[#allocation3 + $0x68] sm:$0xf] %vm3255, %v3116
  %3283 = vst.msk [vmem:[#allocation3 + $0x6c] sm:$0xf] %vm3255, %v3118
  %3284 = vst.msk [vmem:[#allocation3 + $0x70] sm:$0xf] %vm3255, %v3120
  %3285 = vst.msk [vmem:[#allocation3 + $0x74] sm:$0xf] %vm3255, %v3122
  %3286 = vst.msk [vmem:[#allocation3 + $0x78] sm:$0xf] %vm3255, %v3124
  %3287 = vst.msk [vmem:[#allocation3 + $0x7c] sm:$0xf] %vm3255, %v3126
  %3288 = vst.msk [vmem:[#allocation3 + $0x80] sm:$0xf] %vm3255, %v3128
  %3289 = vst.msk [vmem:[#allocation3 + $0x84] sm:$0xf] %vm3255, %v3130
  %3290 = vst.msk [vmem:[#allocation3 + $0x88] sm:$0xf] %vm3255, %v3132
  %3291 = vst.msk [vmem:[#allocation3 + $0x8c] sm:$0xf] %vm3255, %v3134
  %3292 = vst.msk [vmem:[#allocation3 + $0x90] sm:$0xf] %vm3255, %v3136
  %3293 = vst.msk [vmem:[#allocation3 + $0x94] sm:$0xf] %vm3255, %v3138
  %3294 = vst.msk [vmem:[#allocation3 + $0x98] sm:$0xf] %vm3255, %v3140
  %3295 = vst.msk [vmem:[#allocation3 + $0x9c] sm:$0xf] %vm3255, %v3142
  %3296 = vst.msk [vmem:[#allocation3 + $0xa0] sm:$0xf] %vm3255, %v3144
  %3297 = vst.msk [vmem:[#allocation3 + $0xa4] sm:$0xf] %vm3255, %v3146
  %3298 = vst.msk [vmem:[#allocation3 + $0xa8] sm:$0xf] %vm3255, %v3148
  %3299 = vst.msk [vmem:[#allocation3 + $0xac] sm:$0xf] %vm3255, %v3150
  %3300 = vst.msk [vmem:[#allocation3 + $0xb0] sm:$0xf] %vm3255, %v3152
  %3301 = vst.msk [vmem:[#allocation3 + $0xb4] sm:$0xf] %vm3255, %v3154
  %3302 = vst.msk [vmem:[#allocation3 + $0xb8] sm:$0xf] %vm3255, %v3156
  %3303 = vst.msk [vmem:[#allocation3 + $0xbc] sm:$0xf] %vm3255, %v3158
  %3304 = vst.msk [vmem:[#allocation3 + $0xc0] sm:$0xf] %vm3255, %v3160
  %3305 = vst.msk [vmem:[#allocation3 + $0xc4] sm:$0xf] %vm3255, %v3162
  %3306 = vst.msk [vmem:[#allocation3 + $0xc8] sm:$0xf] %vm3255, %v3164
  %3307 = vst.msk [vmem:[#allocation3 + $0xcc] sm:$0xf] %vm3255, %v3166
  %3308 = vst.msk [vmem:[#allocation3 + $0xd0] sm:$0xf] %vm3255, %v3168
  %3309 = vst.msk [vmem:[#allocation3 + $0xd4] sm:$0xf] %vm3255, %v3170
  %3310 = vst.msk [vmem:[#allocation3 + $0xd8] sm:$0xf] %vm3255, %v3172
  %3311 = vst.msk [vmem:[#allocation3 + $0xdc] sm:$0xf] %vm3255, %v3174
  %3312 = vst.msk [vmem:[#allocation3 + $0xe0] sm:$0xf] %vm3255, %v3176
  %3313 = vst.msk [vmem:[#allocation3 + $0xe4] sm:$0xf] %vm3255, %v3178
  %3314 = vst.msk [vmem:[#allocation3 + $0xe8] sm:$0xf] %vm3255, %v3180
  %3315 = vst.msk [vmem:[#allocation3 + $0xec] sm:$0xf] %vm3255, %v3182
  %3316 = vst.msk [vmem:[#allocation3 + $0xf0] sm:$0xf] %vm3255, %v3184
  %3317 = vst.msk [vmem:[#allocation3 + $0xf4] sm:$0xf] %vm3255, %v3186
  %3318 = vst.msk [vmem:[#allocation3 + $0xf8] sm:$0xf] %vm3255, %v3188
  %3319 = vst.msk [vmem:[#allocation3 + $0xfc] sm:$0xf] %vm3255, %v3190
  %v3320 = vld [vmem:[%s39] sm:$0xc]
  %v3321 = vld [vmem:[%s39 + $0x4] sm:$0xf]
  %v3322 = vld [vmem:[%s39 + $0x8] sm:$0x3]
  %v3323 = vld [vmem:[%s39 + $0xc] sm:$0xc]
  %v3324 = vld [vmem:[%s39 + $0x10] sm:$0xf]
  %v3325 = vld [vmem:[%s39 + $0x14] sm:$0x3]
  %v3326 = vld [vmem:[%s39 + $0x18] sm:$0xc]
  %v3327 = vld [vmem:[%s39 + $0x1c] sm:$0xf]
  %v3328 = vld [vmem:[%s39 + $0x20] sm:$0x3]
  %v3329 = vld [vmem:[%s39 + $0x24] sm:$0xc]
  %v3330 = vld [vmem:[%s39 + $0x28] sm:$0xf]
  %v3331 = vld [vmem:[%s39 + $0x2c] sm:$0x3]
  %v3332 = vld [vmem:[%s39 + $0x30] sm:$0xc]
  %v3333 = vld [vmem:[%s39 + $0x34] sm:$0xf]
  %v3334 = vld [vmem:[%s39 + $0x38] sm:$0x3]
  %v3335 = vld [vmem:[%s39 + $0x3c] sm:$0xc]
  %v3336 = vld [vmem:[%s39 + $0x40] sm:$0xf]
  %v3337 = vld [vmem:[%s39 + $0x44] sm:$0x3]
  %v3338 = vld [vmem:[%s39 + $0x48] sm:$0xc]
  %v3339 = vld [vmem:[%s39 + $0x4c] sm:$0xf]
  %v3340 = vld [vmem:[%s39 + $0x50] sm:$0x3]
  %v3341 = vld [vmem:[%s39 + $0x54] sm:$0xc]
  %v3342 = vld [vmem:[%s39 + $0x58] sm:$0xf]
  %v3343 = vld [vmem:[%s39 + $0x5c] sm:$0x3]
  %v3344 = vld [vmem:[%s39 + $0x60] sm:$0xc]
  %v3345 = vld [vmem:[%s39 + $0x64] sm:$0xf]
  %v3346 = vld [vmem:[%s39 + $0x68] sm:$0x3]
  %v3347 = vld [vmem:[%s39 + $0x6c] sm:$0xc]
  %v3348 = vld [vmem:[%s39 + $0x70] sm:$0xf]
  %v3349 = vld [vmem:[%s39 + $0x74] sm:$0x3]
  %v3350 = vld [vmem:[%s39 + $0x78] sm:$0xc]
  %v3351 = vld [vmem:[%s39 + $0x7c] sm:$0xf]
  %v3352 = vld [vmem:[%s39 + $0x80] sm:$0x3]
  %v3353 = vld [vmem:[%s39 + $0x84] sm:$0xc]
  %v3354 = vld [vmem:[%s39 + $0x88] sm:$0xf]
  %v3355 = vld [vmem:[%s39 + $0x8c] sm:$0x3]
  %v3356 = vld [vmem:[%s39 + $0x90] sm:$0xc]
  %v3357 = vld [vmem:[%s39 + $0x94] sm:$0xf]
  %v3358 = vld [vmem:[%s39 + $0x98] sm:$0x3]
  %v3359 = vld [vmem:[%s39 + $0x9c] sm:$0xc]
  %v3360 = vld [vmem:[%s39 + $0xa0] sm:$0xf]
  %v3361 = vld [vmem:[%s39 + $0xa4] sm:$0x3]
  %v3362 = vld [vmem:[%s39 + $0xa8] sm:$0xc]
  %v3363 = vld [vmem:[%s39 + $0xac] sm:$0xf]
  %v3364 = vld [vmem:[%s39 + $0xb0] sm:$0x3]
  %v3365 = vld [vmem:[%s39 + $0xb4] sm:$0xc]
  %v3366 = vld [vmem:[%s39 + $0xb8] sm:$0xf]
  %v3367 = vld [vmem:[%s39 + $0xbc] sm:$0x3]
  %v3368 = vld [vmem:[%s39 + $0xf0] sm:$0xc]
  %v3369 = vld [vmem:[%s39 + $0xf4] sm:$0xf]
  %v3370 = vld [vmem:[%s39 + $0xf8] sm:$0x3]
  %v3371 = vld [vmem:[%s39 + $0xfc] sm:$0xc]
  %v3372 = vld [vmem:[%s39 + $0x100] sm:$0xf]
  %v3373 = vld [vmem:[%s39 + $0x104] sm:$0x3]
  %v3374 = vld [vmem:[%s39 + $0x108] sm:$0xc]
  %v3375 = vld [vmem:[%s39 + $0x10c] sm:$0xf]
  %v3376 = vld [vmem:[%s39 + $0x110] sm:$0x3]
  %v3377 = vld [vmem:[%s39 + $0x114] sm:$0xc]
  %v3378 = vld [vmem:[%s39 + $0x118] sm:$0xf]
  %v3379 = vld [vmem:[%s39 + $0x11c] sm:$0x3]
  %v3380 = vld [vmem:[%s39 + $0x120] sm:$0xc]
  %v3381 = vld [vmem:[%s39 + $0x124] sm:$0xf]
  %v3382 = vld [vmem:[%s39 + $0x128] sm:$0x3]
  %v3383 = vld [vmem:[%s39 + $0x12c] sm:$0xc]
  %v3384 = vld [vmem:[%s39 + $0x130] sm:$0xf]
  %v3385 = vld [vmem:[%s39 + $0x134] sm:$0x3]
  %v3386 = vld [vmem:[%s39 + $0x138] sm:$0xc]
  %v3387 = vld [vmem:[%s39 + $0x13c] sm:$0xf]
  %v3388 = vld [vmem:[%s39 + $0x140] sm:$0x3]
  %v3389 = vld [vmem:[%s39 + $0x144] sm:$0xc]
  %v3390 = vld [vmem:[%s39 + $0x148] sm:$0xf]
  %v3391 = vld [vmem:[%s39 + $0x14c] sm:$0x3]
  %v3392 = vld [vmem:[%s39 + $0x150] sm:$0xc]
  %v3393 = vld [vmem:[%s39 + $0x154] sm:$0xf]
  %v3394 = vld [vmem:[%s39 + $0x158] sm:$0x3]
  %v3395 = vld [vmem:[%s39 + $0x15c] sm:$0xc]
  %v3396 = vld [vmem:[%s39 + $0x160] sm:$0xf]
  %v3397 = vld [vmem:[%s39 + $0x164] sm:$0x3]
  %v3398 = vld [vmem:[%s39 + $0x168] sm:$0xc]
  %v3399 = vld [vmem:[%s39 + $0x16c] sm:$0xf]
  %v3400 = vld [vmem:[%s39 + $0x170] sm:$0x3]
  %v3401 = vld [vmem:[%s39 + $0x174] sm:$0xc]
  %v3402 = vld [vmem:[%s39 + $0x178] sm:$0xf]
  %v3403 = vld [vmem:[%s39 + $0x17c] sm:$0x3]
  %v3404 = vld [vmem:[%s39 + $0x180] sm:$0xc]
  %v3405 = vld [vmem:[%s39 + $0x184] sm:$0xf]
  %v3406 = vld [vmem:[%s39 + $0x188] sm:$0x3]
  %v3407 = vld [vmem:[%s39 + $0x18c] sm:$0xc]
  %v3408 = vld [vmem:[%s39 + $0x190] sm:$0xf]
  %v3409 = vld [vmem:[%s39 + $0x194] sm:$0x3]
  %v3410 = vld [vmem:[%s39 + $0x198] sm:$0xc]
  %v3411 = vld [vmem:[%s39 + $0x19c] sm:$0xf]
  %v3412 = vld [vmem:[%s39 + $0x1a0] sm:$0x3]
  %v3413 = vld [vmem:[%s39 + $0x1a4] sm:$0xc]
  %v3414 = vld [vmem:[%s39 + $0x1a8] sm:$0xf]
  %v3415 = vld [vmem:[%s39 + $0x1ac] sm:$0x3]
  %v3512 = vrot.slane %v3320, 6
  %v3513 = vrot.slane %v3512, 4
  %v3514 = vrot.slane %v3321, 6
  %v3515 = vsel %vm1780, %v3513, %v3514
  %v3516 = vrot.slane %v3514, 4
  %v3517 = vrot.slane %v3322, 6
  %v3518 = vsel %vm1780, %v3516, %v3517
  %v3519 = vrot.slane %v3323, 6
  %v3520 = vrot.slane %v3519, 4
  %v3521 = vrot.slane %v3324, 6
  %v3522 = vsel %vm1780, %v3520, %v3521
  %v3523 = vrot.slane %v3521, 4
  %v3524 = vrot.slane %v3325, 6
  %v3525 = vsel %vm1780, %v3523, %v3524
  %v3526 = vrot.slane %v3326, 6
  %v3527 = vrot.slane %v3526, 4
  %v3528 = vrot.slane %v3327, 6
  %v3529 = vsel %vm1780, %v3527, %v3528
  %v3530 = vrot.slane %v3528, 4
  %v3531 = vrot.slane %v3328, 6
  %v3532 = vsel %vm1780, %v3530, %v3531
  %v3533 = vrot.slane %v3329, 6
  %v3534 = vrot.slane %v3533, 4
  %v3535 = vrot.slane %v3330, 6
  %v3536 = vsel %vm1780, %v3534, %v3535
  %v3537 = vrot.slane %v3535, 4
  %v3538 = vrot.slane %v3331, 6
  %v3539 = vsel %vm1780, %v3537, %v3538
  %v3540 = vrot.slane %v3332, 6
  %v3541 = vrot.slane %v3540, 4
  %v3542 = vrot.slane %v3333, 6
  %v3543 = vsel %vm1780, %v3541, %v3542
  %v3544 = vrot.slane %v3542, 4
  %v3545 = vrot.slane %v3334, 6
  %v3546 = vsel %vm1780, %v3544, %v3545
  %v3547 = vrot.slane %v3335, 6
  %v3548 = vrot.slane %v3547, 4
  %v3549 = vrot.slane %v3336, 6
  %v3550 = vsel %vm1780, %v3548, %v3549
  %v3551 = vrot.slane %v3549, 4
  %v3552 = vrot.slane %v3337, 6
  %v3553 = vsel %vm1780, %v3551, %v3552
  %v3554 = vrot.slane %v3338, 6
  %v3555 = vrot.slane %v3554, 4
  %v3556 = vrot.slane %v3339, 6
  %v3557 = vsel %vm1780, %v3555, %v3556
  %v3558 = vrot.slane %v3556, 4
  %v3559 = vrot.slane %v3340, 6
  %v3560 = vsel %vm1780, %v3558, %v3559
  %v3561 = vrot.slane %v3341, 6
  %v3562 = vrot.slane %v3561, 4
  %v3563 = vrot.slane %v3342, 6
  %v3564 = vsel %vm1780, %v3562, %v3563
  %v3565 = vrot.slane %v3563, 4
  %v3566 = vrot.slane %v3343, 6
  %v3567 = vsel %vm1780, %v3565, %v3566
  %v3568 = vrot.slane %v3344, 6
  %v3569 = vrot.slane %v3568, 4
  %v3570 = vrot.slane %v3345, 6
  %v3571 = vsel %vm1780, %v3569, %v3570
  %v3572 = vrot.slane %v3570, 4
  %v3573 = vrot.slane %v3346, 6
  %v3574 = vsel %vm1780, %v3572, %v3573
  %v3575 = vrot.slane %v3347, 6
  %v3576 = vrot.slane %v3575, 4
  %v3577 = vrot.slane %v3348, 6
  %v3578 = vsel %vm1780, %v3576, %v3577
  %v3579 = vrot.slane %v3577, 4
  %v3580 = vrot.slane %v3349, 6
  %v3581 = vsel %vm1780, %v3579, %v3580
  %v3582 = vrot.slane %v3350, 6
  %v3583 = vrot.slane %v3582, 4
  %v3584 = vrot.slane %v3351, 6
  %v3585 = vsel %vm1780, %v3583, %v3584
  %v3586 = vrot.slane %v3584, 4
  %v3587 = vrot.slane %v3352, 6
  %v3588 = vsel %vm1780, %v3586, %v3587
  %v3589 = vrot.slane %v3353, 6
  %v3590 = vrot.slane %v3589, 4
  %v3591 = vrot.slane %v3354, 6
  %v3592 = vsel %vm1780, %v3590, %v3591
  %v3593 = vrot.slane %v3591, 4
  %v3594 = vrot.slane %v3355, 6
  %v3595 = vsel %vm1780, %v3593, %v3594
  %v3596 = vrot.slane %v3356, 6
  %v3597 = vrot.slane %v3596, 4
  %v3598 = vrot.slane %v3357, 6
  %v3599 = vsel %vm1780, %v3597, %v3598
  %v3600 = vrot.slane %v3598, 4
  %v3601 = vrot.slane %v3358, 6
  %v3602 = vsel %vm1780, %v3600, %v3601
  %v3603 = vrot.slane %v3359, 6
  %v3604 = vrot.slane %v3603, 4
  %v3605 = vrot.slane %v3360, 6
  %v3606 = vsel %vm1780, %v3604, %v3605
  %v3607 = vrot.slane %v3605, 4
  %v3608 = vrot.slane %v3361, 6
  %v3609 = vsel %vm1780, %v3607, %v3608
  %v3610 = vrot.slane %v3362, 6
  %v3611 = vrot.slane %v3610, 4
  %v3612 = vrot.slane %v3363, 6
  %v3613 = vsel %vm1780, %v3611, %v3612
  %v3614 = vrot.slane %v3612, 4
  %v3615 = vrot.slane %v3364, 6
  %v3616 = vsel %vm1780, %v3614, %v3615
  %v3617 = vrot.slane %v3365, 6
  %v3618 = vrot.slane %v3617, 4
  %v3619 = vrot.slane %v3366, 6
  %v3620 = vsel %vm1780, %v3618, %v3619
  %v3621 = vrot.slane %v3619, 4
  %v3622 = vrot.slane %v3367, 6
  %v3623 = vsel %vm1780, %v3621, %v3622
  %v3624 = vrot.slane %v3368, 6
  %v3625 = vrot.slane %v3624, 4
  %v3626 = vrot.slane %v3369, 6
  %v3627 = vsel %vm1780, %v3625, %v3626
  %v3628 = vrot.slane %v3626, 4
  %v3629 = vrot.slane %v3370, 6
  %v3630 = vsel %vm1780, %v3628, %v3629
  %v3631 = vrot.slane %v3371, 6
  %v3632 = vrot.slane %v3631, 4
  %v3633 = vrot.slane %v3372, 6
  %v3634 = vsel %vm1780, %v3632, %v3633
  %v3635 = vrot.slane %v3633, 4
  %v3636 = vrot.slane %v3373, 6
  %v3637 = vsel %vm1780, %v3635, %v3636
  %v3638 = vrot.slane %v3374, 6
  %v3639 = vrot.slane %v3638, 4
  %v3640 = vrot.slane %v3375, 6
  %v3641 = vsel %vm1780, %v3639, %v3640
  %v3642 = vrot.slane %v3640, 4
  %v3643 = vrot.slane %v3376, 6
  %v3644 = vsel %vm1780, %v3642, %v3643
  %v3645 = vrot.slane %v3377, 6
  %v3646 = vrot.slane %v3645, 4
  %v3647 = vrot.slane %v3378, 6
  %v3648 = vsel %vm1780, %v3646, %v3647
  %v3649 = vrot.slane %v3647, 4
  %v3650 = vrot.slane %v3379, 6
  %v3651 = vsel %vm1780, %v3649, %v3650
  %v3652 = vrot.slane %v3380, 6
  %v3653 = vrot.slane %v3652, 4
  %v3654 = vrot.slane %v3381, 6
  %v3655 = vsel %vm1780, %v3653, %v3654
  %v3656 = vrot.slane %v3654, 4
  %v3657 = vrot.slane %v3382, 6
  %v3658 = vsel %vm1780, %v3656, %v3657
  %v3659 = vrot.slane %v3383, 6
  %v3660 = vrot.slane %v3659, 4
  %v3661 = vrot.slane %v3384, 6
  %v3662 = vsel %vm1780, %v3660, %v3661
  %v3663 = vrot.slane %v3661, 4
  %v3664 = vrot.slane %v3385, 6
  %v3665 = vsel %vm1780, %v3663, %v3664
  %v3666 = vrot.slane %v3386, 6
  %v3667 = vrot.slane %v3666, 4
  %v3668 = vrot.slane %v3387, 6
  %v3669 = vsel %vm1780, %v3667, %v3668
  %v3670 = vrot.slane %v3668, 4
  %v3671 = vrot.slane %v3388, 6
  %v3672 = vsel %vm1780, %v3670, %v3671
  %v3673 = vrot.slane %v3389, 6
  %v3674 = vrot.slane %v3673, 4
  %v3675 = vrot.slane %v3390, 6
  %v3676 = vsel %vm1780, %v3674, %v3675
  %v3677 = vrot.slane %v3675, 4
  %v3678 = vrot.slane %v3391, 6
  %v3679 = vsel %vm1780, %v3677, %v3678
  %v3680 = vrot.slane %v3392, 6
  %v3681 = vrot.slane %v3680, 4
  %v3682 = vrot.slane %v3393, 6
  %v3683 = vsel %vm1780, %v3681, %v3682
  %v3684 = vrot.slane %v3682, 4
  %v3685 = vrot.slane %v3394, 6
  %v3686 = vsel %vm1780, %v3684, %v3685
  %v3687 = vrot.slane %v3395, 6
  %v3688 = vrot.slane %v3687, 4
  %v3689 = vrot.slane %v3396, 6
  %v3690 = vsel %vm1780, %v3688, %v3689
  %v3691 = vrot.slane %v3689, 4
  %v3692 = vrot.slane %v3397, 6
  %v3693 = vsel %vm1780, %v3691, %v3692
  %v3694 = vrot.slane %v3398, 6
  %v3695 = vrot.slane %v3694, 4
  %v3696 = vrot.slane %v3399, 6
  %v3697 = vsel %vm1780, %v3695, %v3696
  %v3698 = vrot.slane %v3696, 4
  %v3699 = vrot.slane %v3400, 6
  %v3700 = vsel %vm1780, %v3698, %v3699
  %v3701 = vrot.slane %v3401, 6
  %v3702 = vrot.slane %v3701, 4
  %v3703 = vrot.slane %v3402, 6
  %v3704 = vsel %vm1780, %v3702, %v3703
  %v3705 = vrot.slane %v3703, 4
  %v3706 = vrot.slane %v3403, 6
  %v3707 = vsel %vm1780, %v3705, %v3706
  %v3708 = vrot.slane %v3404, 6
  %v3709 = vrot.slane %v3708, 4
  %v3710 = vrot.slane %v3405, 6
  %v3711 = vsel %vm1780, %v3709, %v3710
  %v3712 = vrot.slane %v3710, 4
  %v3713 = vrot.slane %v3406, 6
  %v3714 = vsel %vm1780, %v3712, %v3713
  %v3715 = vrot.slane %v3407, 6
  %v3716 = vrot.slane %v3715, 4
  %v3717 = vrot.slane %v3408, 6
  %v3718 = vsel %vm1780, %v3716, %v3717
  %v3719 = vrot.slane %v3717, 4
  %v3720 = vrot.slane %v3409, 6
  %v3721 = vsel %vm1780, %v3719, %v3720
  %v3722 = vrot.slane %v3410, 6
  %v3723 = vrot.slane %v3722, 4
  %v3724 = vrot.slane %v3411, 6
  %v3725 = vsel %vm1780, %v3723, %v3724
  %v3726 = vrot.slane %v3724, 4
  %v3727 = vrot.slane %v3412, 6
  %v3728 = vsel %vm1780, %v3726, %v3727
  %v3729 = vrot.slane %v3413, 6
  %v3730 = vrot.slane %v3729, 4
  %v3731 = vrot.slane %v3414, 6
  %v3732 = vsel %vm1780, %v3730, %v3731
  %v3733 = vrot.slane %v3731, 4
  %v3734 = vrot.slane %v3415, 6
  %v3735 = vsel %vm1780, %v3733, %v3734
  %3736 = vrot.lane.b32.xlu0 %v3515, 20
  %v3737 = vpop.permute.xlu0 %3736
  %3738 = vrot.lane.b32.xlu0 %v3518, 20
  %v3739 = vpop.permute.xlu0 %3738
  %3740 = vrot.lane.b32.xlu0 %v3522, 20
  %v3741 = vpop.permute.xlu0 %3740
  %3742 = vrot.lane.b32.xlu0 %v3525, 20
  %v3743 = vpop.permute.xlu0 %3742
  %3744 = vrot.lane.b32.xlu0 %v3529, 20
  %v3745 = vpop.permute.xlu0 %3744
  %3746 = vrot.lane.b32.xlu0 %v3532, 20
  %v3747 = vpop.permute.xlu0 %3746
  %3748 = vrot.lane.b32.xlu0 %v3536, 20
  %v3749 = vpop.permute.xlu0 %3748
  %3750 = vrot.lane.b32.xlu0 %v3539, 20
  %v3751 = vpop.permute.xlu0 %3750
  %3752 = vrot.lane.b32.xlu0 %v3543, 20
  %v3753 = vpop.permute.xlu0 %3752
  %3754 = vrot.lane.b32.xlu0 %v3546, 20
  %v3755 = vpop.permute.xlu0 %3754
  %3756 = vrot.lane.b32.xlu0 %v3550, 20
  %v3757 = vpop.permute.xlu0 %3756
  %3758 = vrot.lane.b32.xlu0 %v3553, 20
  %v3759 = vpop.permute.xlu0 %3758
  %3760 = vrot.lane.b32.xlu0 %v3557, 20
  %v3761 = vpop.permute.xlu0 %3760
  %3762 = vrot.lane.b32.xlu0 %v3560, 20
  %v3763 = vpop.permute.xlu0 %3762
  %3764 = vrot.lane.b32.xlu0 %v3564, 20
  %v3765 = vpop.permute.xlu0 %3764
  %3766 = vrot.lane.b32.xlu0 %v3567, 20
  %v3767 = vpop.permute.xlu0 %3766
  %3768 = vrot.lane.b32.xlu0 %v3571, 20
  %v3769 = vpop.permute.xlu0 %3768
  %3770 = vrot.lane.b32.xlu0 %v3574, 20
  %v3771 = vpop.permute.xlu0 %3770
  %3772 = vrot.lane.b32.xlu0 %v3578, 20
  %v3773 = vpop.permute.xlu0 %3772
  %3774 = vrot.lane.b32.xlu0 %v3581, 20
  %v3775 = vpop.permute.xlu0 %3774
  %3776 = vrot.lane.b32.xlu0 %v3585, 20
  %v3777 = vpop.permute.xlu0 %3776
  %3778 = vrot.lane.b32.xlu0 %v3588, 20
  %v3779 = vpop.permute.xlu0 %3778
  %3780 = vrot.lane.b32.xlu0 %v3592, 20
  %v3781 = vpop.permute.xlu0 %3780
  %3782 = vrot.lane.b32.xlu0 %v3595, 20
  %v3783 = vpop.permute.xlu0 %3782
  %3784 = vrot.lane.b32.xlu0 %v3599, 20
  %v3785 = vpop.permute.xlu0 %3784
  %3786 = vrot.lane.b32.xlu0 %v3602, 20
  %v3787 = vpop.permute.xlu0 %3786
  %3788 = vrot.lane.b32.xlu0 %v3606, 20
  %v3789 = vpop.permute.xlu0 %3788
  %3790 = vrot.lane.b32.xlu0 %v3609, 20
  %v3791 = vpop.permute.xlu0 %3790
  %3792 = vrot.lane.b32.xlu0 %v3613, 20
  %v3793 = vpop.permute.xlu0 %3792
  %3794 = vrot.lane.b32.xlu0 %v3616, 20
  %v3795 = vpop.permute.xlu0 %3794
  %3796 = vrot.lane.b32.xlu0 %v3620, 20
  %v3797 = vpop.permute.xlu0 %3796
  %3798 = vrot.lane.b32.xlu0 %v3623, 20
  %v3799 = vpop.permute.xlu0 %3798
  %3800 = vrot.lane.b32.xlu0 %v3627, 20
  %v3801 = vpop.permute.xlu0 %3800
  %3802 = vrot.lane.b32.xlu0 %v3630, 20
  %v3803 = vpop.permute.xlu0 %3802
  %3804 = vrot.lane.b32.xlu0 %v3634, 20
  %v3805 = vpop.permute.xlu0 %3804
  %3806 = vrot.lane.b32.xlu0 %v3637, 20
  %v3807 = vpop.permute.xlu0 %3806
  %3808 = vrot.lane.b32.xlu0 %v3641, 20
  %v3809 = vpop.permute.xlu0 %3808
  %3810 = vrot.lane.b32.xlu0 %v3644, 20
  %v3811 = vpop.permute.xlu0 %3810
  %3812 = vrot.lane.b32.xlu0 %v3648, 20
  %v3813 = vpop.permute.xlu0 %3812
  %3814 = vrot.lane.b32.xlu0 %v3651, 20
  %v3815 = vpop.permute.xlu0 %3814
  %3816 = vrot.lane.b32.xlu0 %v3655, 20
  %v3817 = vpop.permute.xlu0 %3816
  %3818 = vrot.lane.b32.xlu0 %v3658, 20
  %v3819 = vpop.permute.xlu0 %3818
  %3820 = vrot.lane.b32.xlu0 %v3662, 20
  %v3821 = vpop.permute.xlu0 %3820
  %3822 = vrot.lane.b32.xlu0 %v3665, 20
  %v3823 = vpop.permute.xlu0 %3822
  %3824 = vrot.lane.b32.xlu0 %v3669, 20
  %v3825 = vpop.permute.xlu0 %3824
  %3826 = vrot.lane.b32.xlu0 %v3672, 20
  %v3827 = vpop.permute.xlu0 %3826
  %3828 = vrot.lane.b32.xlu0 %v3676, 20
  %v3829 = vpop.permute.xlu0 %3828
  %3830 = vrot.lane.b32.xlu0 %v3679, 20
  %v3831 = vpop.permute.xlu0 %3830
  %3832 = vrot.lane.b32.xlu0 %v3683, 20
  %v3833 = vpop.permute.xlu0 %3832
  %3834 = vrot.lane.b32.xlu0 %v3686, 20
  %v3835 = vpop.permute.xlu0 %3834
  %3836 = vrot.lane.b32.xlu0 %v3690, 20
  %v3837 = vpop.permute.xlu0 %3836
  %3838 = vrot.lane.b32.xlu0 %v3693, 20
  %v3839 = vpop.permute.xlu0 %3838
  %3840 = vrot.lane.b32.xlu0 %v3697, 20
  %v3841 = vpop.permute.xlu0 %3840
  %3842 = vrot.lane.b32.xlu0 %v3700, 20
  %v3843 = vpop.permute.xlu0 %3842
  %3844 = vrot.lane.b32.xlu0 %v3704, 20
  %v3845 = vpop.permute.xlu0 %3844
  %3846 = vrot.lane.b32.xlu0 %v3707, 20
  %v3847 = vpop.permute.xlu0 %3846
  %3848 = vrot.lane.b32.xlu0 %v3711, 20
  %v3849 = vpop.permute.xlu0 %3848
  %3850 = vrot.lane.b32.xlu0 %v3714, 20
  %v3851 = vpop.permute.xlu0 %3850
  %3852 = vrot.lane.b32.xlu0 %v3718, 20
  %v3853 = vpop.permute.xlu0 %3852
  %3854 = vrot.lane.b32.xlu0 %v3721, 20
  %v3855 = vpop.permute.xlu0 %3854
  %3856 = vrot.lane.b32.xlu0 %v3725, 20
  %v3857 = vpop.permute.xlu0 %3856
  %3858 = vrot.lane.b32.xlu0 %v3728, 20
  %v3859 = vpop.permute.xlu0 %3858
  %3860 = vrot.lane.b32.xlu0 %v3732, 20
  %v3861 = vpop.permute.xlu0 %3860
  %3862 = vrot.lane.b32.xlu0 %v3735, 20
  %v3863 = vpop.permute.xlu0 %3862
  %vm3928 = vcmask 191648
  %3929 = vst.msk [vmem:[#allocation3] sm:$0xf] %vm3928, %v3737
  %3930 = vst.msk [vmem:[#allocation3 + $0x4] sm:$0xf] %vm3928, %v3739
  %3931 = vst.msk [vmem:[#allocation3 + $0x8] sm:$0xf] %vm3928, %v3741
  %3932 = vst.msk [vmem:[#allocation3 + $0xc] sm:$0xf] %vm3928, %v3743
  %3933 = vst.msk [vmem:[#allocation3 + $0x10] sm:$0xf] %vm3928, %v3745
  %3934 = vst.msk [vmem:[#allocation3 + $0x14] sm:$0xf] %vm3928, %v3747
  %3935 = vst.msk [vmem:[#allocation3 + $0x18] sm:$0xf] %vm3928, %v3749
  %3936 = vst.msk [vmem:[#allocation3 + $0x1c] sm:$0xf] %vm3928, %v3751
  %3937 = vst.msk [vmem:[#allocation3 + $0x20] sm:$0xf] %vm3928, %v3753
  %3938 = vst.msk [vmem:[#allocation3 + $0x24] sm:$0xf] %vm3928, %v3755
  %3939 = vst.msk [vmem:[#allocation3 + $0x28] sm:$0xf] %vm3928, %v3757
  %3940 = vst.msk [vmem:[#allocation3 + $0x2c] sm:$0xf] %vm3928, %v3759
  %3941 = vst.msk [vmem:[#allocation3 + $0x30] sm:$0xf] %vm3928, %v3761
  %3942 = vst.msk [vmem:[#allocation3 + $0x34] sm:$0xf] %vm3928, %v3763
  %3943 = vst.msk [vmem:[#allocation3 + $0x38] sm:$0xf] %vm3928, %v3765
  %3944 = vst.msk [vmem:[#allocation3 + $0x3c] sm:$0xf] %vm3928, %v3767
  %3945 = vst.msk [vmem:[#allocation3 + $0x40] sm:$0xf] %vm3928, %v3769
  %3946 = vst.msk [vmem:[#allocation3 + $0x44] sm:$0xf] %vm3928, %v3771
  %3947 = vst.msk [vmem:[#allocation3 + $0x48] sm:$0xf] %vm3928, %v3773
  %3948 = vst.msk [vmem:[#allocation3 + $0x4c] sm:$0xf] %vm3928, %v3775
  %3949 = vst.msk [vmem:[#allocation3 + $0x50] sm:$0xf] %vm3928, %v3777
  %3950 = vst.msk [vmem:[#allocation3 + $0x54] sm:$0xf] %vm3928, %v3779
  %3951 = vst.msk [vmem:[#allocation3 + $0x58] sm:$0xf] %vm3928, %v3781
  %3952 = vst.msk [vmem:[#allocation3 + $0x5c] sm:$0xf] %vm3928, %v3783
  %3953 = vst.msk [vmem:[#allocation3 + $0x60] sm:$0xf] %vm3928, %v3785
  %3954 = vst.msk [vmem:[#allocation3 + $0x64] sm:$0xf] %vm3928, %v3787
  %3955 = vst.msk [vmem:[#allocation3 + $0x68] sm:$0xf] %vm3928, %v3789
  %3956 = vst.msk [vmem:[#allocation3 + $0x6c] sm:$0xf] %vm3928, %v3791
  %3957 = vst.msk [vmem:[#allocation3 + $0x70] sm:$0xf] %vm3928, %v3793
  %3958 = vst.msk [vmem:[#allocation3 + $0x74] sm:$0xf] %vm3928, %v3795
  %3959 = vst.msk [vmem:[#allocation3 + $0x78] sm:$0xf] %vm3928, %v3797
  %3960 = vst.msk [vmem:[#allocation3 + $0x7c] sm:$0xf] %vm3928, %v3799
  %3961 = vst.msk [vmem:[#allocation3 + $0x80] sm:$0xf] %vm3928, %v3801
  %3962 = vst.msk [vmem:[#allocation3 + $0x84] sm:$0xf] %vm3928, %v3803
  %3963 = vst.msk [vmem:[#allocation3 + $0x88] sm:$0xf] %vm3928, %v3805
  %3964 = vst.msk [vmem:[#allocation3 + $0x8c] sm:$0xf] %vm3928, %v3807
  %3965 = vst.msk [vmem:[#allocation3 + $0x90] sm:$0xf] %vm3928, %v3809
  %3966 = vst.msk [vmem:[#allocation3 + $0x94] sm:$0xf] %vm3928, %v3811
  %3967 = vst.msk [vmem:[#allocation3 + $0x98] sm:$0xf] %vm3928, %v3813
  %3968 = vst.msk [vmem:[#allocation3 + $0x9c] sm:$0xf] %vm3928, %v3815
  %3969 = vst.msk [vmem:[#allocation3 + $0xa0] sm:$0xf] %vm3928, %v3817
  %3970 = vst.msk [vmem:[#allocation3 + $0xa4] sm:$0xf] %vm3928, %v3819
  %3971 = vst.msk [vmem:[#allocation3 + $0xa8] sm:$0xf] %vm3928, %v3821
  %3972 = vst.msk [vmem:[#allocation3 + $0xac] sm:$0xf] %vm3928, %v3823
  %3973 = vst.msk [vmem:[#allocation3 + $0xb0] sm:$0xf] %vm3928, %v3825
  %3974 = vst.msk [vmem:[#allocation3 + $0xb4] sm:$0xf] %vm3928, %v3827
  %3975 = vst.msk [vmem:[#allocation3 + $0xb8] sm:$0xf] %vm3928, %v3829
  %3976 = vst.msk [vmem:[#allocation3 + $0xbc] sm:$0xf] %vm3928, %v3831
  %3977 = vst.msk [vmem:[#allocation3 + $0xc0] sm:$0xf] %vm3928, %v3833
  %3978 = vst.msk [vmem:[#allocation3 + $0xc4] sm:$0xf] %vm3928, %v3835
  %3979 = vst.msk [vmem:[#allocation3 + $0xc8] sm:$0xf] %vm3928, %v3837
  %3980 = vst.msk [vmem:[#allocation3 + $0xcc] sm:$0xf] %vm3928, %v3839
  %3981 = vst.msk [vmem:[#allocation3 + $0xd0] sm:$0xf] %vm3928, %v3841
  %3982 = vst.msk [vmem:[#allocation3 + $0xd4] sm:$0xf] %vm3928, %v3843
  %3983 = vst.msk [vmem:[#allocation3 + $0xd8] sm:$0xf] %vm3928, %v3845
  %3984 = vst.msk [vmem:[#allocation3 + $0xdc] sm:$0xf] %vm3928, %v3847
  %3985 = vst.msk [vmem:[#allocation3 + $0xe0] sm:$0xf] %vm3928, %v3849
  %3986 = vst.msk [vmem:[#allocation3 + $0xe4] sm:$0xf] %vm3928, %v3851
  %3987 = vst.msk [vmem:[#allocation3 + $0xe8] sm:$0xf] %vm3928, %v3853
  %3988 = vst.msk [vmem:[#allocation3 + $0xec] sm:$0xf] %vm3928, %v3855
  %3989 = vst.msk [vmem:[#allocation3 + $0xf0] sm:$0xf] %vm3928, %v3857
  %3990 = vst.msk [vmem:[#allocation3 + $0xf4] sm:$0xf] %vm3928, %v3859
  %3991 = vst.msk [vmem:[#allocation3 + $0xf8] sm:$0xf] %vm3928, %v3861
  %3992 = vst.msk [vmem:[#allocation3 + $0xfc] sm:$0xf] %vm3928, %v3863
  %s3993 = scalar_lea.vmem [#allocation2], 48
  %v3994 = vld [vmem:[%s3993] sm:$0xf]
  %v3995 = vld [vmem:[%s3993 + $0x4] sm:$0xf]
  %v3996 = vld [vmem:[%s3993 + $0xc] sm:$0xf]
  %v3997 = vld [vmem:[%s3993 + $0x10] sm:$0xf]
  %v3998 = vld [vmem:[%s3993 + $0x18] sm:$0xf]
  %v3999 = vld [vmem:[%s3993 + $0x1c] sm:$0xf]
  %v4000 = vld [vmem:[%s3993 + $0x24] sm:$0xf]
  %v4001 = vld [vmem:[%s3993 + $0x28] sm:$0xf]
  %v4002 = vld [vmem:[%s3993 + $0x30] sm:$0xf]
  %v4003 = vld [vmem:[%s3993 + $0x34] sm:$0xf]
  %v4004 = vld [vmem:[%s3993 + $0x3c] sm:$0xf]
  %v4005 = vld [vmem:[%s3993 + $0x40] sm:$0xf]
  %v4006 = vld [vmem:[%s3993 + $0x48] sm:$0xf]
  %v4007 = vld [vmem:[%s3993 + $0x4c] sm:$0xf]
  %v4008 = vld [vmem:[%s3993 + $0x54] sm:$0xf]
  %v4009 = vld [vmem:[%s3993 + $0x58] sm:$0xf]
  %v4010 = vld [vmem:[%s3993 + $0x60] sm:$0xf]
  %v4011 = vld [vmem:[%s3993 + $0x64] sm:$0xf]
  %v4012 = vld [vmem:[%s3993 + $0x6c] sm:$0xf]
  %v4013 = vld [vmem:[%s3993 + $0x70] sm:$0xf]
  %v4014 = vld [vmem:[%s3993 + $0x78] sm:$0xf]
  %v4015 = vld [vmem:[%s3993 + $0x7c] sm:$0xf]
  %v4016 = vld [vmem:[%s3993 + $0x84] sm:$0xf]
  %v4017 = vld [vmem:[%s3993 + $0x88] sm:$0xf]
  %v4018 = vld [vmem:[%s3993 + $0x90] sm:$0xf]
  %v4019 = vld [vmem:[%s3993 + $0x94] sm:$0xf]
  %v4020 = vld [vmem:[%s3993 + $0x9c] sm:$0xf]
  %v4021 = vld [vmem:[%s3993 + $0xa0] sm:$0xf]
  %v4022 = vld [vmem:[%s3993 + $0xa8] sm:$0xf]
  %v4023 = vld [vmem:[%s3993 + $0xac] sm:$0xf]
  %v4024 = vld [vmem:[%s3993 + $0xb4] sm:$0xf]
  %v4025 = vld [vmem:[%s3993 + $0xb8] sm:$0xf]
  %v4026 = vld [vmem:[%s3993 + $0xf0] sm:$0xf]
  %v4027 = vld [vmem:[%s3993 + $0xf4] sm:$0xf]
  %v4028 = vld [vmem:[%s3993 + $0xfc] sm:$0xf]
  %v4029 = vld [vmem:[%s3993 + $0x100] sm:$0xf]
  %v4030 = vld [vmem:[%s3993 + $0x108] sm:$0xf]
  %v4031 = vld [vmem:[%s3993 + $0x10c] sm:$0xf]
  %v4032 = vld [vmem:[%s3993 + $0x114] sm:$0xf]
  %v4033 = vld [vmem:[%s3993 + $0x118] sm:$0xf]
  %v4034 = vld [vmem:[%s3993 + $0x120] sm:$0xf]
  %v4035 = vld [vmem:[%s3993 + $0x124] sm:$0xf]
  %v4036 = vld [vmem:[%s3993 + $0x12c] sm:$0xf]
  %v4037 = vld [vmem:[%s3993 + $0x130] sm:$0xf]
  %v4038 = vld [vmem:[%s3993 + $0x138] sm:$0xf]
  %v4039 = vld [vmem:[%s3993 + $0x13c] sm:$0xf]
  %v4040 = vld [vmem:[%s3993 + $0x144] sm:$0xf]
  %v4041 = vld [vmem:[%s3993 + $0x148] sm:$0xf]
  %v4042 = vld [vmem:[%s3993 + $0x150] sm:$0xf]
  %v4043 = vld [vmem:[%s3993 + $0x154] sm:$0xf]
  %v4044 = vld [vmem:[%s3993 + $0x15c] sm:$0xf]
  %v4045 = vld [vmem:[%s3993 + $0x160] sm:$0xf]
  %v4046 = vld [vmem:[%s3993 + $0x168] sm:$0xf]
  %v4047 = vld [vmem:[%s3993 + $0x16c] sm:$0xf]
  %v4048 = vld [vmem:[%s3993 + $0x174] sm:$0xf]
  %v4049 = vld [vmem:[%s3993 + $0x178] sm:$0xf]
  %v4050 = vld [vmem:[%s3993 + $0x180] sm:$0xf]
  %v4051 = vld [vmem:[%s3993 + $0x184] sm:$0xf]
  %v4052 = vld [vmem:[%s3993 + $0x18c] sm:$0xf]
  %v4053 = vld [vmem:[%s3993 + $0x190] sm:$0xf]
  %v4054 = vld [vmem:[%s3993 + $0x198] sm:$0xf]
  %v4055 = vld [vmem:[%s3993 + $0x19c] sm:$0xf]
  %v4056 = vld [vmem:[%s3993 + $0x1a4] sm:$0xf]
  %v4057 = vld [vmem:[%s3993 + $0x1a8] sm:$0xf]
  %4122 = vrot.lane.b32.xlu0 %v3994, 24
  %v4123 = vpop.permute.xlu0 %4122
  %4124 = vrot.lane.b32.xlu0 %v3995, 24
  %v4125 = vpop.permute.xlu0 %4124
  %4126 = vrot.lane.b32.xlu0 %v3996, 24
  %v4127 = vpop.permute.xlu0 %4126
  %4128 = vrot.lane.b32.xlu0 %v3997, 24
  %v4129 = vpop.permute.xlu0 %4128
  %4130 = vrot.lane.b32.xlu0 %v3998, 24
  %v4131 = vpop.permute.xlu0 %4130
  %4132 = vrot.lane.b32.xlu0 %v3999, 24
  %v4133 = vpop.permute.xlu0 %4132
  %4134 = vrot.lane.b32.xlu0 %v4000, 24
  %v4135 = vpop.permute.xlu0 %4134
  %4136 = vrot.lane.b32.xlu0 %v4001, 24
  %v4137 = vpop.permute.xlu0 %4136
  %4138 = vrot.lane.b32.xlu0 %v4002, 24
  %v4139 = vpop.permute.xlu0 %4138
  %4140 = vrot.lane.b32.xlu0 %v4003, 24
  %v4141 = vpop.permute.xlu0 %4140
  %4142 = vrot.lane.b32.xlu0 %v4004, 24
  %v4143 = vpop.permute.xlu0 %4142
  %4144 = vrot.lane.b32.xlu0 %v4005, 24
  %v4145 = vpop.permute.xlu0 %4144
  %4146 = vrot.lane.b32.xlu0 %v4006, 24
  %v4147 = vpop.permute.xlu0 %4146
  %4148 = vrot.lane.b32.xlu0 %v4007, 24
  %v4149 = vpop.permute.xlu0 %4148
  %4150 = vrot.lane.b32.xlu0 %v4008, 24
  %v4151 = vpop.permute.xlu0 %4150
  %4152 = vrot.lane.b32.xlu0 %v4009, 24
  %v4153 = vpop.permute.xlu0 %4152
  %4154 = vrot.lane.b32.xlu0 %v4010, 24
  %v4155 = vpop.permute.xlu0 %4154
  %4156 = vrot.lane.b32.xlu0 %v4011, 24
  %v4157 = vpop.permute.xlu0 %4156
  %4158 = vrot.lane.b32.xlu0 %v4012, 24
  %v4159 = vpop.permute.xlu0 %4158
  %4160 = vrot.lane.b32.xlu0 %v4013, 24
  %v4161 = vpop.permute.xlu0 %4160
  %4162 = vrot.lane.b32.xlu0 %v4014, 24
  %v4163 = vpop.permute.xlu0 %4162
  %4164 = vrot.lane.b32.xlu0 %v4015, 24
  %v4165 = vpop.permute.xlu0 %4164
  %4166 = vrot.lane.b32.xlu0 %v4016, 24
  %v4167 = vpop.permute.xlu0 %4166
  %4168 = vrot.lane.b32.xlu0 %v4017, 24
  %v4169 = vpop.permute.xlu0 %4168
  %4170 = vrot.lane.b32.xlu0 %v4018, 24
  %v4171 = vpop.permute.xlu0 %4170
  %4172 = vrot.lane.b32.xlu0 %v4019, 24
  %v4173 = vpop.permute.xlu0 %4172
  %4174 = vrot.lane.b32.xlu0 %v4020, 24
  %v4175 = vpop.permute.xlu0 %4174
  %4176 = vrot.lane.b32.xlu0 %v4021, 24
  %v4177 = vpop.permute.xlu0 %4176
  %4178 = vrot.lane.b32.xlu0 %v4022, 24
  %v4179 = vpop.permute.xlu0 %4178
  %4180 = vrot.lane.b32.xlu0 %v4023, 24
  %v4181 = vpop.permute.xlu0 %4180
  %4182 = vrot.lane.b32.xlu0 %v4024, 24
  %v4183 = vpop.permute.xlu0 %4182
  %4184 = vrot.lane.b32.xlu0 %v4025, 24
  %v4185 = vpop.permute.xlu0 %4184
  %4186 = vrot.lane.b32.xlu0 %v4026, 24
  %v4187 = vpop.permute.xlu0 %4186
  %4188 = vrot.lane.b32.xlu0 %v4027, 24
  %v4189 = vpop.permute.xlu0 %4188
  %4190 = vrot.lane.b32.xlu0 %v4028, 24
  %v4191 = vpop.permute.xlu0 %4190
  %4192 = vrot.lane.b32.xlu0 %v4029, 24
  %v4193 = vpop.permute.xlu0 %4192
  %4194 = vrot.lane.b32.xlu0 %v4030, 24
  %v4195 = vpop.permute.xlu0 %4194
  %4196 = vrot.lane.b32.xlu0 %v4031, 24
  %v4197 = vpop.permute.xlu0 %4196
  %4198 = vrot.lane.b32.xlu0 %v4032, 24
  %v4199 = vpop.permute.xlu0 %4198
  %4200 = vrot.lane.b32.xlu0 %v4033, 24
  %v4201 = vpop.permute.xlu0 %4200
  %4202 = vrot.lane.b32.xlu0 %v4034, 24
  %v4203 = vpop.permute.xlu0 %4202
  %4204 = vrot.lane.b32.xlu0 %v4035, 24
  %v4205 = vpop.permute.xlu0 %4204
  %4206 = vrot.lane.b32.xlu0 %v4036, 24
  %v4207 = vpop.permute.xlu0 %4206
  %4208 = vrot.lane.b32.xlu0 %v4037, 24
  %v4209 = vpop.permute.xlu0 %4208
  %4210 = vrot.lane.b32.xlu0 %v4038, 24
  %v4211 = vpop.permute.xlu0 %4210
  %4212 = vrot.lane.b32.xlu0 %v4039, 24
  %v4213 = vpop.permute.xlu0 %4212
  %4214 = vrot.lane.b32.xlu0 %v4040, 24
  %v4215 = vpop.permute.xlu0 %4214
  %4216 = vrot.lane.b32.xlu0 %v4041, 24
  %v4217 = vpop.permute.xlu0 %4216
  %4218 = vrot.lane.b32.xlu0 %v4042, 24
  %v4219 = vpop.permute.xlu0 %4218
  %4220 = vrot.lane.b32.xlu0 %v4043, 24
  %v4221 = vpop.permute.xlu0 %4220
  %4222 = vrot.lane.b32.xlu0 %v4044, 24
  %v4223 = vpop.permute.xlu0 %4222
  %4224 = vrot.lane.b32.xlu0 %v4045, 24
  %v4225 = vpop.permute.xlu0 %4224
  %4226 = vrot.lane.b32.xlu0 %v4046, 24
  %v4227 = vpop.permute.xlu0 %4226
  %4228 = vrot.lane.b32.xlu0 %v4047, 24
  %v4229 = vpop.permute.xlu0 %4228
  %4230 = vrot.lane.b32.xlu0 %v4048, 24
  %v4231 = vpop.permute.xlu0 %4230
  %4232 = vrot.lane.b32.xlu0 %v4049, 24
  %v4233 = vpop.permute.xlu0 %4232
  %4234 = vrot.lane.b32.xlu0 %v4050, 24
  %v4235 = vpop.permute.xlu0 %4234
  %4236 = vrot.lane.b32.xlu0 %v4051, 24
  %v4237 = vpop.permute.xlu0 %4236
  %4238 = vrot.lane.b32.xlu0 %v4052, 24
  %v4239 = vpop.permute.xlu0 %4238
  %4240 = vrot.lane.b32.xlu0 %v4053, 24
  %v4241 = vpop.permute.xlu0 %4240
  %4242 = vrot.lane.b32.xlu0 %v4054, 24
  %v4243 = vpop.permute.xlu0 %4242
  %4244 = vrot.lane.b32.xlu0 %v4055, 24
  %v4245 = vpop.permute.xlu0 %4244
  %4246 = vrot.lane.b32.xlu0 %v4056, 24
  %v4247 = vpop.permute.xlu0 %4246
  %4248 = vrot.lane.b32.xlu0 %v4057, 24
  %v4249 = vpop.permute.xlu0 %4248
  %vm4314 = vcmask 224448
  %4315 = vst.msk [vmem:[#allocation3] sm:$0xf] %vm4314, %v4123
  %4316 = vst.msk [vmem:[#allocation3 + $0x4] sm:$0xf] %vm4314, %v4125
  %4317 = vst.msk [vmem:[#allocation3 + $0x8] sm:$0xf] %vm4314, %v4127
  %4318 = vst.msk [vmem:[#allocation3 + $0xc] sm:$0xf] %vm4314, %v4129
  %4319 = vst.msk [vmem:[#allocation3 + $0x10] sm:$0xf] %vm4314, %v4131
  %4320 = vst.msk [vmem:[#allocation3 + $0x14] sm:$0xf] %vm4314, %v4133
  %4321 = vst.msk [vmem:[#allocation3 + $0x18] sm:$0xf] %vm4314, %v4135
  %4322 = vst.msk [vmem:[#allocation3 + $0x1c] sm:$0xf] %vm4314, %v4137
  %4323 = vst.msk [vmem:[#allocation3 + $0x20] sm:$0xf] %vm4314, %v4139
  %4324 = vst.msk [vmem:[#allocation3 + $0x24] sm:$0xf] %vm4314, %v4141
  %4325 = vst.msk [vmem:[#allocation3 + $0x28] sm:$0xf] %vm4314, %v4143
  %4326 = vst.msk [vmem:[#allocation3 + $0x2c] sm:$0xf] %vm4314, %v4145
  %4327 = vst.msk [vmem:[#allocation3 + $0x30] sm:$0xf] %vm4314, %v4147
  %4328 = vst.msk [vmem:[#allocation3 + $0x34] sm:$0xf] %vm4314, %v4149
  %4329 = vst.msk [vmem:[#allocation3 + $0x38] sm:$0xf] %vm4314, %v4151
  %4330 = vst.msk [vmem:[#allocation3 + $0x3c] sm:$0xf] %vm4314, %v4153
  %4331 = vst.msk [vmem:[#allocation3 + $0x40] sm:$0xf] %vm4314, %v4155
  %4332 = vst.msk [vmem:[#allocation3 + $0x44] sm:$0xf] %vm4314, %v4157
  %4333 = vst.msk [vmem:[#allocation3 + $0x48] sm:$0xf] %vm4314, %v4159
  %4334 = vst.msk [vmem:[#allocation3 + $0x4c] sm:$0xf] %vm4314, %v4161
  %4335 = vst.msk [vmem:[#allocation3 + $0x50] sm:$0xf] %vm4314, %v4163
  %4336 = vst.msk [vmem:[#allocation3 + $0x54] sm:$0xf] %vm4314, %v4165
  %4337 = vst.msk [vmem:[#allocation3 + $0x58] sm:$0xf] %vm4314, %v4167
  %4338 = vst.msk [vmem:[#allocation3 + $0x5c] sm:$0xf] %vm4314, %v4169
  %4339 = vst.msk [vmem:[#allocation3 + $0x60] sm:$0xf] %vm4314, %v4171
  %4340 = vst.msk [vmem:[#allocation3 + $0x64] sm:$0xf] %vm4314, %v4173
  %4341 = vst.msk [vmem:[#allocation3 + $0x68] sm:$0xf] %vm4314, %v4175
  %4342 = vst.msk [vmem:[#allocation3 + $0x6c] sm:$0xf] %vm4314, %v4177
  %4343 = vst.msk [vmem:[#allocation3 + $0x70] sm:$0xf] %vm4314, %v4179
  %4344 = vst.msk [vmem:[#allocation3 + $0x74] sm:$0xf] %vm4314, %v4181
  %4345 = vst.msk [vmem:[#allocation3 + $0x78] sm:$0xf] %vm4314, %v4183
  %4346 = vst.msk [vmem:[#allocation3 + $0x7c] sm:$0xf] %vm4314, %v4185
  %4347 = vst.msk [vmem:[#allocation3 + $0x80] sm:$0xf] %vm4314, %v4187
  %4348 = vst.msk [vmem:[#allocation3 + $0x84] sm:$0xf] %vm4314, %v4189
  %4349 = vst.msk [vmem:[#allocation3 + $0x88] sm:$0xf] %vm4314, %v4191
  %4350 = vst.msk [vmem:[#allocation3 + $0x8c] sm:$0xf] %vm4314, %v4193
  %4351 = vst.msk [vmem:[#allocation3 + $0x90] sm:$0xf] %vm4314, %v4195
  %4352 = vst.msk [vmem:[#allocation3 + $0x94] sm:$0xf] %vm4314, %v4197
  %4353 = vst.msk [vmem:[#allocation3 + $0x98] sm:$0xf] %vm4314, %v4199
  %4354 = vst.msk [vmem:[#allocation3 + $0x9c] sm:$0xf] %vm4314, %v4201
  %4355 = vst.msk [vmem:[#allocation3 + $0xa0] sm:$0xf] %vm4314, %v4203
  %4356 = vst.msk [vmem:[#allocation3 + $0xa4] sm:$0xf] %vm4314, %v4205
  %4357 = vst.msk [vmem:[#allocation3 + $0xa8] sm:$0xf] %vm4314, %v4207
  %4358 = vst.msk [vmem:[#allocation3 + $0xac] sm:$0xf] %vm4314, %v4209
  %4359 = vst.msk [vmem:[#allocation3 + $0xb0] sm:$0xf] %vm4314, %v4211
  %4360 = vst.msk [vmem:[#allocation3 + $0xb4] sm:$0xf] %vm4314, %v4213
  %4361 = vst.msk [vmem:[#allocation3 + $0xb8] sm:$0xf] %vm4314, %v4215
  %4362 = vst.msk [vmem:[#allocation3 + $0xbc] sm:$0xf] %vm4314, %v4217
  %4363 = vst.msk [vmem:[#allocation3 + $0xc0] sm:$0xf] %vm4314, %v4219
  %4364 = vst.msk [vmem:[#allocation3 + $0xc4] sm:$0xf] %vm4314, %v4221
  %4365 = vst.msk [vmem:[#allocation3 + $0xc8] sm:$0xf] %vm4314, %v4223
  %4366 = vst.msk [vmem:[#allocation3 + $0xcc] sm:$0xf] %vm4314, %v4225
  %4367 = vst.msk [vmem:[#allocation3 + $0xd0] sm:$0xf] %vm4314, %v4227
  %4368 = vst.msk [vmem:[#allocation3 + $0xd4] sm:$0xf] %vm4314, %v4229
  %4369 = vst.msk [vmem:[#allocation3 + $0xd8] sm:$0xf] %vm4314, %v4231
  %4370 = vst.msk [vmem:[#allocation3 + $0xdc] sm:$0xf] %vm4314, %v4233
  %4371 = vst.msk [vmem:[#allocation3 + $0xe0] sm:$0xf] %vm4314, %v4235
  %4372 = vst.msk [vmem:[#allocation3 + $0xe4] sm:$0xf] %vm4314, %v4237
  %4373 = vst.msk [vmem:[#allocation3 + $0xe8] sm:$0xf] %vm4314, %v4239
  %4374 = vst.msk [vmem:[#allocation3 + $0xec] sm:$0xf] %vm4314, %v4241
  %4375 = vst.msk [vmem:[#allocation3 + $0xf0] sm:$0xf] %vm4314, %v4243
  %4376 = vst.msk [vmem:[#allocation3 + $0xf4] sm:$0xf] %vm4314, %v4245
  %4377 = vst.msk [vmem:[#allocation3 + $0xf8] sm:$0xf] %vm4314, %v4247
  %4378 = vst.msk [vmem:[#allocation3 + $0xfc] sm:$0xf] %vm4314, %v4249
  %v4379 = vld [vmem:[%s3993] sm:$0xe]
  %v4380 = vld [vmem:[%s3993 + $0x4] sm:$0xf]
  %v4381 = vld [vmem:[%s3993 + $0x8] sm:$0x1]
  %v4382 = vld [vmem:[%s3993 + $0xc] sm:$0xe]
  %v4383 = vld [vmem:[%s3993 + $0x10] sm:$0xf]
  %v4384 = vld [vmem:[%s3993 + $0x14] sm:$0x1]
  %v4385 = vld [vmem:[%s3993 + $0x18] sm:$0xe]
  %v4386 = vld [vmem:[%s3993 + $0x1c] sm:$0xf]
  %v4387 = vld [vmem:[%s3993 + $0x20] sm:$0x1]
  %v4388 = vld [vmem:[%s3993 + $0x24] sm:$0xe]
  %v4389 = vld [vmem:[%s3993 + $0x28] sm:$0xf]
  %v4390 = vld [vmem:[%s3993 + $0x2c] sm:$0x1]
  %v4391 = vld [vmem:[%s3993 + $0x30] sm:$0xe]
  %v4392 = vld [vmem:[%s3993 + $0x34] sm:$0xf]
  %v4393 = vld [vmem:[%s3993 + $0x38] sm:$0x1]
  %v4394 = vld [vmem:[%s3993 + $0x3c] sm:$0xe]
  %v4395 = vld [vmem:[%s3993 + $0x40] sm:$0xf]
  %v4396 = vld [vmem:[%s3993 + $0x44] sm:$0x1]
  %v4397 = vld [vmem:[%s3993 + $0x48] sm:$0xe]
  %v4398 = vld [vmem:[%s3993 + $0x4c] sm:$0xf]
  %v4399 = vld [vmem:[%s3993 + $0x50] sm:$0x1]
  %v4400 = vld [vmem:[%s3993 + $0x54] sm:$0xe]
  %v4401 = vld [vmem:[%s3993 + $0x58] sm:$0xf]
  %v4402 = vld [vmem:[%s3993 + $0x5c] sm:$0x1]
  %v4403 = vld [vmem:[%s3993 + $0x60] sm:$0xe]
  %v4404 = vld [vmem:[%s3993 + $0x64] sm:$0xf]
  %v4405 = vld [vmem:[%s3993 + $0x68] sm:$0x1]
  %v4406 = vld [vmem:[%s3993 + $0x6c] sm:$0xe]
  %v4407 = vld [vmem:[%s3993 + $0x70] sm:$0xf]
  %v4408 = vld [vmem:[%s3993 + $0x74] sm:$0x1]
  %v4409 = vld [vmem:[%s3993 + $0x78] sm:$0xe]
  %v4410 = vld [vmem:[%s3993 + $0x7c] sm:$0xf]
  %v4411 = vld [vmem:[%s3993 + $0x80] sm:$0x1]
  %v4412 = vld [vmem:[%s3993 + $0x84] sm:$0xe]
  %v4413 = vld [vmem:[%s3993 + $0x88] sm:$0xf]
  %v4414 = vld [vmem:[%s3993 + $0x8c] sm:$0x1]
  %v4415 = vld [vmem:[%s3993 + $0x90] sm:$0xe]
  %v4416 = vld [vmem:[%s3993 + $0x94] sm:$0xf]
  %v4417 = vld [vmem:[%s3993 + $0x98] sm:$0x1]
  %v4418 = vld [vmem:[%s3993 + $0x9c] sm:$0xe]
  %v4419 = vld [vmem:[%s3993 + $0xa0] sm:$0xf]
  %v4420 = vld [vmem:[%s3993 + $0xa4] sm:$0x1]
  %v4421 = vld [vmem:[%s3993 + $0xa8] sm:$0xe]
  %v4422 = vld [vmem:[%s3993 + $0xac] sm:$0xf]
  %v4423 = vld [vmem:[%s3993 + $0xb0] sm:$0x1]
  %v4424 = vld [vmem:[%s3993 + $0xb4] sm:$0xe]
  %v4425 = vld [vmem:[%s3993 + $0xb8] sm:$0xf]
  %v4426 = vld [vmem:[%s3993 + $0xbc] sm:$0x1]
  %v4427 = vld [vmem:[%s3993 + $0xf0] sm:$0xe]
  %v4428 = vld [vmem:[%s3993 + $0xf4] sm:$0xf]
  %v4429 = vld [vmem:[%s3993 + $0xf8] sm:$0x1]
  %v4430 = vld [vmem:[%s3993 + $0xfc] sm:$0xe]
  %v4431 = vld [vmem:[%s3993 + $0x100] sm:$0xf]
  %v4432 = vld [vmem:[%s3993 + $0x104] sm:$0x1]
  %v4433 = vld [vmem:[%s3993 + $0x108] sm:$0xe]
  %v4434 = vld [vmem:[%s3993 + $0x10c] sm:$0xf]
  %v4435 = vld [vmem:[%s3993 + $0x110] sm:$0x1]
  %v4436 = vld [vmem:[%s3993 + $0x114] sm:$0xe]
  %v4437 = vld [vmem:[%s3993 + $0x118] sm:$0xf]
  %v4438 = vld [vmem:[%s3993 + $0x11c] sm:$0x1]
  %v4439 = vld [vmem:[%s3993 + $0x120] sm:$0xe]
  %v4440 = vld [vmem:[%s3993 + $0x124] sm:$0xf]
  %v4441 = vld [vmem:[%s3993 + $0x128] sm:$0x1]
  %v4442 = vld [vmem:[%s3993 + $0x12c] sm:$0xe]
  %v4443 = vld [vmem:[%s3993 + $0x130] sm:$0xf]
  %v4444 = vld [vmem:[%s3993 + $0x134] sm:$0x1]
  %v4445 = vld [vmem:[%s3993 + $0x138] sm:$0xe]
  %v4446 = vld [vmem:[%s3993 + $0x13c] sm:$0xf]
  %v4447 = vld [vmem:[%s3993 + $0x140] sm:$0x1]
  %v4448 = vld [vmem:[%s3993 + $0x144] sm:$0xe]
  %v4449 = vld [vmem:[%s3993 + $0x148] sm:$0xf]
  %v4450 = vld [vmem:[%s3993 + $0x14c] sm:$0x1]
  %v4451 = vld [vmem:[%s3993 + $0x150] sm:$0xe]
  %v4452 = vld [vmem:[%s3993 + $0x154] sm:$0xf]
  %v4453 = vld [vmem:[%s3993 + $0x158] sm:$0x1]
  %v4454 = vld [vmem:[%s3993 + $0x15c] sm:$0xe]
  %v4455 = vld [vmem:[%s3993 + $0x160] sm:$0xf]
  %v4456 = vld [vmem:[%s3993 + $0x164] sm:$0x1]
  %v4457 = vld [vmem:[%s3993 + $0x168] sm:$0xe]
  %v4458 = vld [vmem:[%s3993 + $0x16c] sm:$0xf]
  %v4459 = vld [vmem:[%s3993 + $0x170] sm:$0x1]
  %v4460 = vld [vmem:[%s3993 + $0x174] sm:$0xe]
  %v4461 = vld [vmem:[%s3993 + $0x178] sm:$0xf]
  %v4462 = vld [vmem:[%s3993 + $0x17c] sm:$0x1]
  %v4463 = vld [vmem:[%s3993 + $0x180] sm:$0xe]
  %v4464 = vld [vmem:[%s3993 + $0x184] sm:$0xf]
  %v4465 = vld [vmem:[%s3993 + $0x188] sm:$0x1]
  %v4466 = vld [vmem:[%s3993 + $0x18c] sm:$0xe]
  %v4467 = vld [vmem:[%s3993 + $0x190] sm:$0xf]
  %v4468 = vld [vmem:[%s3993 + $0x194] sm:$0x1]
  %v4469 = vld [vmem:[%s3993 + $0x198] sm:$0xe]
  %v4470 = vld [vmem:[%s3993 + $0x19c] sm:$0xf]
  %v4471 = vld [vmem:[%s3993 + $0x1a0] sm:$0x1]
  %v4472 = vld [vmem:[%s3993 + $0x1a4] sm:$0xe]
  %v4473 = vld [vmem:[%s3993 + $0x1a8] sm:$0xf]
  %v4474 = vld [vmem:[%s3993 + $0x1ac] sm:$0x1]
  %v4571 = vrot.slane %v4379, 5
  %v4572 = vrot.slane %v4571, 4
  %v4573 = vrot.slane %v4380, 5
  %v4574 = vsel %vm1104, %v4572, %v4573
  %v4575 = vrot.slane %v4573, 4
  %v4576 = vrot.slane %v4381, 5
  %v4577 = vsel %vm1104, %v4575, %v4576
  %v4578 = vrot.slane %v4382, 5
  %v4579 = vrot.slane %v4578, 4
  %v4580 = vrot.slane %v4383, 5
  %v4581 = vsel %vm1104, %v4579, %v4580
  %v4582 = vrot.slane %v4580, 4
  %v4583 = vrot.slane %v4384, 5
  %v4584 = vsel %vm1104, %v4582, %v4583
  %v4585 = vrot.slane %v4385, 5
  %v4586 = vrot.slane %v4585, 4
  %v4587 = vrot.slane %v4386, 5
  %v4588 = vsel %vm1104, %v4586, %v4587
  %v4589 = vrot.slane %v4587, 4
  %v4590 = vrot.slane %v4387, 5
  %v4591 = vsel %vm1104, %v4589, %v4590
  %v4592 = vrot.slane %v4388, 5
  %v4593 = vrot.slane %v4592, 4
  %v4594 = vrot.slane %v4389, 5
  %v4595 = vsel %vm1104, %v4593, %v4594
  %v4596 = vrot.slane %v4594, 4
  %v4597 = vrot.slane %v4390, 5
  %v4598 = vsel %vm1104, %v4596, %v4597
  %v4599 = vrot.slane %v4391, 5
  %v4600 = vrot.slane %v4599, 4
  %v4601 = vrot.slane %v4392, 5
  %v4602 = vsel %vm1104, %v4600, %v4601
  %v4603 = vrot.slane %v4601, 4
  %v4604 = vrot.slane %v4393, 5
  %v4605 = vsel %vm1104, %v4603, %v4604
  %v4606 = vrot.slane %v4394, 5
  %v4607 = vrot.slane %v4606, 4
  %v4608 = vrot.slane %v4395, 5
  %v4609 = vsel %vm1104, %v4607, %v4608
  %v4610 = vrot.slane %v4608, 4
  %v4611 = vrot.slane %v4396, 5
  %v4612 = vsel %vm1104, %v4610, %v4611
  %v4613 = vrot.slane %v4397, 5
  %v4614 = vrot.slane %v4613, 4
  %v4615 = vrot.slane %v4398, 5
  %v4616 = vsel %vm1104, %v4614, %v4615
  %v4617 = vrot.slane %v4615, 4
  %v4618 = vrot.slane %v4399, 5
  %v4619 = vsel %vm1104, %v4617, %v4618
  %v4620 = vrot.slane %v4400, 5
  %v4621 = vrot.slane %v4620, 4
  %v4622 = vrot.slane %v4401, 5
  %v4623 = vsel %vm1104, %v4621, %v4622
  %v4624 = vrot.slane %v4622, 4
  %v4625 = vrot.slane %v4402, 5
  %v4626 = vsel %vm1104, %v4624, %v4625
  %v4627 = vrot.slane %v4403, 5
  %v4628 = vrot.slane %v4627, 4
  %v4629 = vrot.slane %v4404, 5
  %v4630 = vsel %vm1104, %v4628, %v4629
  %v4631 = vrot.slane %v4629, 4
  %v4632 = vrot.slane %v4405, 5
  %v4633 = vsel %vm1104, %v4631, %v4632
  %v4634 = vrot.slane %v4406, 5
  %v4635 = vrot.slane %v4634, 4
  %v4636 = vrot.slane %v4407, 5
  %v4637 = vsel %vm1104, %v4635, %v4636
  %v4638 = vrot.slane %v4636, 4
  %v4639 = vrot.slane %v4408, 5
  %v4640 = vsel %vm1104, %v4638, %v4639
  %v4641 = vrot.slane %v4409, 5
  %v4642 = vrot.slane %v4641, 4
  %v4643 = vrot.slane %v4410, 5
  %v4644 = vsel %vm1104, %v4642, %v4643
  %v4645 = vrot.slane %v4643, 4
  %v4646 = vrot.slane %v4411, 5
  %v4647 = vsel %vm1104, %v4645, %v4646
  %v4648 = vrot.slane %v4412, 5
  %v4649 = vrot.slane %v4648, 4
  %v4650 = vrot.slane %v4413, 5
  %v4651 = vsel %vm1104, %v4649, %v4650
  %v4652 = vrot.slane %v4650, 4
  %v4653 = vrot.slane %v4414, 5
  %v4654 = vsel %vm1104, %v4652, %v4653
  %v4655 = vrot.slane %v4415, 5
  %v4656 = vrot.slane %v4655, 4
  %v4657 = vrot.slane %v4416, 5
  %v4658 = vsel %vm1104, %v4656, %v4657
  %v4659 = vrot.slane %v4657, 4
  %v4660 = vrot.slane %v4417, 5
  %v4661 = vsel %vm1104, %v4659, %v4660
  %v4662 = vrot.slane %v4418, 5
  %v4663 = vrot.slane %v4662, 4
  %v4664 = vrot.slane %v4419, 5
  %v4665 = vsel %vm1104, %v4663, %v4664
  %v4666 = vrot.slane %v4664, 4
  %v4667 = vrot.slane %v4420, 5
  %v4668 = vsel %vm1104, %v4666, %v4667
  %v4669 = vrot.slane %v4421, 5
  %v4670 = vrot.slane %v4669, 4
  %v4671 = vrot.slane %v4422, 5
  %v4672 = vsel %vm1104, %v4670, %v4671
  %v4673 = vrot.slane %v4671, 4
  %v4674 = vrot.slane %v4423, 5
  %v4675 = vsel %vm1104, %v4673, %v4674
  %v4676 = vrot.slane %v4424, 5
  %v4677 = vrot.slane %v4676, 4
  %v4678 = vrot.slane %v4425, 5
  %v4679 = vsel %vm1104, %v4677, %v4678
  %v4680 = vrot.slane %v4678, 4
  %v4681 = vrot.slane %v4426, 5
  %v4682 = vsel %vm1104, %v4680, %v4681
  %v4683 = vrot.slane %v4427, 5
  %v4684 = vrot.slane %v4683, 4
  %v4685 = vrot.slane %v4428, 5
  %v4686 = vsel %vm1104, %v4684, %v4685
  %v4687 = vrot.slane %v4685, 4
  %v4688 = vrot.slane %v4429, 5
  %v4689 = vsel %vm1104, %v4687, %v4688
  %v4690 = vrot.slane %v4430, 5
  %v4691 = vrot.slane %v4690, 4
  %v4692 = vrot.slane %v4431, 5
  %v4693 = vsel %vm1104, %v4691, %v4692
  %v4694 = vrot.slane %v4692, 4
  %v4695 = vrot.slane %v4432, 5
  %v4696 = vsel %vm1104, %v4694, %v4695
  %v4697 = vrot.slane %v4433, 5
  %v4698 = vrot.slane %v4697, 4
  %v4699 = vrot.slane %v4434, 5
  %v4700 = vsel %vm1104, %v4698, %v4699
  %v4701 = vrot.slane %v4699, 4
  %v4702 = vrot.slane %v4435, 5
  %v4703 = vsel %vm1104, %v4701, %v4702
  %v4704 = vrot.slane %v4436, 5
  %v4705 = vrot.slane %v4704, 4
  %v4706 = vrot.slane %v4437, 5
  %v4707 = vsel %vm1104, %v4705, %v4706
  %v4708 = vrot.slane %v4706, 4
  %v4709 = vrot.slane %v4438, 5
  %v4710 = vsel %vm1104, %v4708, %v4709
  %v4711 = vrot.slane %v4439, 5
  %v4712 = vrot.slane %v4711, 4
  %v4713 = vrot.slane %v4440, 5
  %v4714 = vsel %vm1104, %v4712, %v4713
  %v4715 = vrot.slane %v4713, 4
  %v4716 = vrot.slane %v4441, 5
  %v4717 = vsel %vm1104, %v4715, %v4716
  %v4718 = vrot.slane %v4442, 5
  %v4719 = vrot.slane %v4718, 4
  %v4720 = vrot.slane %v4443, 5
  %v4721 = vsel %vm1104, %v4719, %v4720
  %v4722 = vrot.slane %v4720, 4
  %v4723 = vrot.slane %v4444, 5
  %v4724 = vsel %vm1104, %v4722, %v4723
  %v4725 = vrot.slane %v4445, 5
  %v4726 = vrot.slane %v4725, 4
  %v4727 = vrot.slane %v4446, 5
  %v4728 = vsel %vm1104, %v4726, %v4727
  %v4729 = vrot.slane %v4727, 4
  %v4730 = vrot.slane %v4447, 5
  %v4731 = vsel %vm1104, %v4729, %v4730
  %v4732 = vrot.slane %v4448, 5
  %v4733 = vrot.slane %v4732, 4
  %v4734 = vrot.slane %v4449, 5
  %v4735 = vsel %vm1104, %v4733, %v4734
  %v4736 = vrot.slane %v4734, 4
  %v4737 = vrot.slane %v4450, 5
  %v4738 = vsel %vm1104, %v4736, %v4737
  %v4739 = vrot.slane %v4451, 5
  %v4740 = vrot.slane %v4739, 4
  %v4741 = vrot.slane %v4452, 5
  %v4742 = vsel %vm1104, %v4740, %v4741
  %v4743 = vrot.slane %v4741, 4
  %v4744 = vrot.slane %v4453, 5
  %v4745 = vsel %vm1104, %v4743, %v4744
  %v4746 = vrot.slane %v4454, 5
  %v4747 = vrot.slane %v4746, 4
  %v4748 = vrot.slane %v4455, 5
  %v4749 = vsel %vm1104, %v4747, %v4748
  %v4750 = vrot.slane %v4748, 4
  %v4751 = vrot.slane %v4456, 5
  %v4752 = vsel %vm1104, %v4750, %v4751
  %v4753 = vrot.slane %v4457, 5
  %v4754 = vrot.slane %v4753, 4
  %v4755 = vrot.slane %v4458, 5
  %v4756 = vsel %vm1104, %v4754, %v4755
  %v4757 = vrot.slane %v4755, 4
  %v4758 = vrot.slane %v4459, 5
  %v4759 = vsel %vm1104, %v4757, %v4758
  %v4760 = vrot.slane %v4460, 5
  %v4761 = vrot.slane %v4760, 4
  %v4762 = vrot.slane %v4461, 5
  %v4763 = vsel %vm1104, %v4761, %v4762
  %v4764 = vrot.slane %v4762, 4
  %v4765 = vrot.slane %v4462, 5
  %v4766 = vsel %vm1104, %v4764, %v4765
  %v4767 = vrot.slane %v4463, 5
  %v4768 = vrot.slane %v4767, 4
  %v4769 = vrot.slane %v4464, 5
  %v4770 = vsel %vm1104, %v4768, %v4769
  %v4771 = vrot.slane %v4769, 4
  %v4772 = vrot.slane %v4465, 5
  %v4773 = vsel %vm1104, %v4771, %v4772
  %v4774 = vrot.slane %v4466, 5
  %v4775 = vrot.slane %v4774, 4
  %v4776 = vrot.slane %v4467, 5
  %v4777 = vsel %vm1104, %v4775, %v4776
  %v4778 = vrot.slane %v4776, 4
  %v4779 = vrot.slane %v4468, 5
  %v4780 = vsel %vm1104, %v4778, %v4779
  %v4781 = vrot.slane %v4469, 5
  %v4782 = vrot.slane %v4781, 4
  %v4783 = vrot.slane %v4470, 5
  %v4784 = vsel %vm1104, %v4782, %v4783
  %v4785 = vrot.slane %v4783, 4
  %v4786 = vrot.slane %v4471, 5
  %v4787 = vsel %vm1104, %v4785, %v4786
  %v4788 = vrot.slane %v4472, 5
  %v4789 = vrot.slane %v4788, 4
  %v4790 = vrot.slane %v4473, 5
  %v4791 = vsel %vm1104, %v4789, %v4790
  %v4792 = vrot.slane %v4790, 4
  %v4793 = vrot.slane %v4474, 5
  %v4794 = vsel %vm1104, %v4792, %v4793
  %4795 = vrot.lane.b32.xlu0 %v4574, 28
  %v4796 = vpop.permute.xlu0 %4795
  %4797 = vrot.lane.b32.xlu0 %v4577, 28
  %v4798 = vpop.permute.xlu0 %4797
  %4799 = vrot.lane.b32.xlu0 %v4581, 28
  %v4800 = vpop.permute.xlu0 %4799
  %4801 = vrot.lane.b32.xlu0 %v4584, 28
  %v4802 = vpop.permute.xlu0 %4801
  %4803 = vrot.lane.b32.xlu0 %v4588, 28
  %v4804 = vpop.permute.xlu0 %4803
  %4805 = vrot.lane.b32.xlu0 %v4591, 28
  %v4806 = vpop.permute.xlu0 %4805
  %4807 = vrot.lane.b32.xlu0 %v4595, 28
  %v4808 = vpop.permute.xlu0 %4807
  %4809 = vrot.lane.b32.xlu0 %v4598, 28
  %v4810 = vpop.permute.xlu0 %4809
  %4811 = vrot.lane.b32.xlu0 %v4602, 28
  %v4812 = vpop.permute.xlu0 %4811
  %4813 = vrot.lane.b32.xlu0 %v4605, 28
  %v4814 = vpop.permute.xlu0 %4813
  %4815 = vrot.lane.b32.xlu0 %v4609, 28
  %v4816 = vpop.permute.xlu0 %4815
  %4817 = vrot.lane.b32.xlu0 %v4612, 28
  %v4818 = vpop.permute.xlu0 %4817
  %4819 = vrot.lane.b32.xlu0 %v4616, 28
  %v4820 = vpop.permute.xlu0 %4819
  %4821 = vrot.lane.b32.xlu0 %v4619, 28
  %v4822 = vpop.permute.xlu0 %4821
  %4823 = vrot.lane.b32.xlu0 %v4623, 28
  %v4824 = vpop.permute.xlu0 %4823
  %4825 = vrot.lane.b32.xlu0 %v4626, 28
  %v4826 = vpop.permute.xlu0 %4825
  %4827 = vrot.lane.b32.xlu0 %v4630, 28
  %v4828 = vpop.permute.xlu0 %4827
  %4829 = vrot.lane.b32.xlu0 %v4633, 28
  %v4830 = vpop.permute.xlu0 %4829
  %4831 = vrot.lane.b32.xlu0 %v4637, 28
  %v4832 = vpop.permute.xlu0 %4831
  %4833 = vrot.lane.b32.xlu0 %v4640, 28
  %v4834 = vpop.permute.xlu0 %4833
  %4835 = vrot.lane.b32.xlu0 %v4644, 28
  %v4836 = vpop.permute.xlu0 %4835
  %4837 = vrot.lane.b32.xlu0 %v4647, 28
  %v4838 = vpop.permute.xlu0 %4837
  %4839 = vrot.lane.b32.xlu0 %v4651, 28
  %v4840 = vpop.permute.xlu0 %4839
  %4841 = vrot.lane.b32.xlu0 %v4654, 28
  %v4842 = vpop.permute.xlu0 %4841
  %4843 = vrot.lane.b32.xlu0 %v4658, 28
  %v4844 = vpop.permute.xlu0 %4843
  %4845 = vrot.lane.b32.xlu0 %v4661, 28
  %v4846 = vpop.permute.xlu0 %4845
  %4847 = vrot.lane.b32.xlu0 %v4665, 28
  %v4848 = vpop.permute.xlu0 %4847
  %4849 = vrot.lane.b32.xlu0 %v4668, 28
  %v4850 = vpop.permute.xlu0 %4849
  %4851 = vrot.lane.b32.xlu0 %v4672, 28
  %v4852 = vpop.permute.xlu0 %4851
  %4853 = vrot.lane.b32.xlu0 %v4675, 28
  %v4854 = vpop.permute.xlu0 %4853
  %4855 = vrot.lane.b32.xlu0 %v4679, 28
  %v4856 = vpop.permute.xlu0 %4855
  %4857 = vrot.lane.b32.xlu0 %v4682, 28
  %v4858 = vpop.permute.xlu0 %4857
  %4859 = vrot.lane.b32.xlu0 %v4686, 28
  %v4860 = vpop.permute.xlu0 %4859
  %4861 = vrot.lane.b32.xlu0 %v4689, 28
  %v4862 = vpop.permute.xlu0 %4861
  %4863 = vrot.lane.b32.xlu0 %v4693, 28
  %v4864 = vpop.permute.xlu0 %4863
  %4865 = vrot.lane.b32.xlu0 %v4696, 28
  %v4866 = vpop.permute.xlu0 %4865
  %4867 = vrot.lane.b32.xlu0 %v4700, 28
  %v4868 = vpop.permute.xlu0 %4867
  %4869 = vrot.lane.b32.xlu0 %v4703, 28
  %v4870 = vpop.permute.xlu0 %4869
  %4871 = vrot.lane.b32.xlu0 %v4707, 28
  %v4872 = vpop.permute.xlu0 %4871
  %4873 = vrot.lane.b32.xlu0 %v4710, 28
  %v4874 = vpop.permute.xlu0 %4873
  %4875 = vrot.lane.b32.xlu0 %v4714, 28
  %v4876 = vpop.permute.xlu0 %4875
  %4877 = vrot.lane.b32.xlu0 %v4717, 28
  %v4878 = vpop.permute.xlu0 %4877
  %4879 = vrot.lane.b32.xlu0 %v4721, 28
  %v4880 = vpop.permute.xlu0 %4879
  %4881 = vrot.lane.b32.xlu0 %v4724, 28
  %v4882 = vpop.permute.xlu0 %4881
  %4883 = vrot.lane.b32.xlu0 %v4728, 28
  %v4884 = vpop.permute.xlu0 %4883
  %4885 = vrot.lane.b32.xlu0 %v4731, 28
  %v4886 = vpop.permute.xlu0 %4885
  %4887 = vrot.lane.b32.xlu0 %v4735, 28
  %v4888 = vpop.permute.xlu0 %4887
  %4889 = vrot.lane.b32.xlu0 %v4738, 28
  %v4890 = vpop.permute.xlu0 %4889
  %4891 = vrot.lane.b32.xlu0 %v4742, 28
  %v4892 = vpop.permute.xlu0 %4891
  %4893 = vrot.lane.b32.xlu0 %v4745, 28
  %v4894 = vpop.permute.xlu0 %4893
  %4895 = vrot.lane.b32.xlu0 %v4749, 28
  %v4896 = vpop.permute.xlu0 %4895
  %4897 = vrot.lane.b32.xlu0 %v4752, 28
  %v4898 = vpop.permute.xlu0 %4897
  %4899 = vrot.lane.b32.xlu0 %v4756, 28
  %v4900 = vpop.permute.xlu0 %4899
  %4901 = vrot.lane.b32.xlu0 %v4759, 28
  %v4902 = vpop.permute.xlu0 %4901
  %4903 = vrot.lane.b32.xlu0 %v4763, 28
  %v4904 = vpop.permute.xlu0 %4903
  %4905 = vrot.lane.b32.xlu0 %v4766, 28
  %v4906 = vpop.permute.xlu0 %4905
  %4907 = vrot.lane.b32.xlu0 %v4770, 28
  %v4908 = vpop.permute.xlu0 %4907
  %4909 = vrot.lane.b32.xlu0 %v4773, 28
  %v4910 = vpop.permute.xlu0 %4909
  %4911 = vrot.lane.b32.xlu0 %v4777, 28
  %v4912 = vpop.permute.xlu0 %4911
  %4913 = vrot.lane.b32.xlu0 %v4780, 28
  %v4914 = vpop.permute.xlu0 %4913
  %4915 = vrot.lane.b32.xlu0 %v4784, 28
  %v4916 = vpop.permute.xlu0 %4915
  %4917 = vrot.lane.b32.xlu0 %v4787, 28
  %v4918 = vpop.permute.xlu0 %4917
  %4919 = vrot.lane.b32.xlu0 %v4791, 28
  %v4920 = vpop.permute.xlu0 %4919
  %4921 = vrot.lane.b32.xlu0 %v4794, 28
  %v4922 = vpop.permute.xlu0 %4921
  %vm4987 = vcmask 257248
  %4988 = vst.msk [vmem:[#allocation3] sm:$0xf] %vm4987, %v4796
  %4989 = vst.msk [vmem:[#allocation3 + $0x4] sm:$0xf] %vm4987, %v4798
  %4990 = vst.msk [vmem:[#allocation3 + $0x8] sm:$0xf] %vm4987, %v4800
  %4991 = vst.msk [vmem:[#allocation3 + $0xc] sm:$0xf] %vm4987, %v4802
  %4992 = vst.msk [vmem:[#allocation3 + $0x10] sm:$0xf] %vm4987, %v4804
  %4993 = vst.msk [vmem:[#allocation3 + $0x14] sm:$0xf] %vm4987, %v4806
  %4994 = vst.msk [vmem:[#allocation3 + $0x18] sm:$0xf] %vm4987, %v4808
  %4995 = vst.msk [vmem:[#allocation3 + $0x1c] sm:$0xf] %vm4987, %v4810
  %4996 = vst.msk [vmem:[#allocation3 + $0x20] sm:$0xf] %vm4987, %v4812
  %4997 = vst.msk [vmem:[#allocation3 + $0x24] sm:$0xf] %vm4987, %v4814
  %4998 = vst.msk [vmem:[#allocation3 + $0x28] sm:$0xf] %vm4987, %v4816
  %4999 = vst.msk [vmem:[#allocation3 + $0x2c] sm:$0xf] %vm4987, %v4818
  %5000 = vst.msk [vmem:[#allocation3 + $0x30] sm:$0xf] %vm4987, %v4820
  %5001 = vst.msk [vmem:[#allocation3 + $0x34] sm:$0xf] %vm4987, %v4822
  %5002 = vst.msk [vmem:[#allocation3 + $0x38] sm:$0xf] %vm4987, %v4824
  %5003 = vst.msk [vmem:[#allocation3 + $0x3c] sm:$0xf] %vm4987, %v4826
  %5004 = vst.msk [vmem:[#allocation3 + $0x40] sm:$0xf] %vm4987, %v4828
  %5005 = vst.msk [vmem:[#allocation3 + $0x44] sm:$0xf] %vm4987, %v4830
  %5006 = vst.msk [vmem:[#allocation3 + $0x48] sm:$0xf] %vm4987, %v4832
  %5007 = vst.msk [vmem:[#allocation3 + $0x4c] sm:$0xf] %vm4987, %v4834
  %5008 = vst.msk [vmem:[#allocation3 + $0x50] sm:$0xf] %vm4987, %v4836
  %5009 = vst.msk [vmem:[#allocation3 + $0x54] sm:$0xf] %vm4987, %v4838
  %5010 = vst.msk [vmem:[#allocation3 + $0x58] sm:$0xf] %vm4987, %v4840
  %5011 = vst.msk [vmem:[#allocation3 + $0x5c] sm:$0xf] %vm4987, %v4842
  %5012 = vst.msk [vmem:[#allocation3 + $0x60] sm:$0xf] %vm4987, %v4844
  %5013 = vst.msk [vmem:[#allocation3 + $0x64] sm:$0xf] %vm4987, %v4846
  %5014 = vst.msk [vmem:[#allocation3 + $0x68] sm:$0xf] %vm4987, %v4848
  %5015 = vst.msk [vmem:[#allocation3 + $0x6c] sm:$0xf] %vm4987, %v4850
  %5016 = vst.msk [vmem:[#allocation3 + $0x70] sm:$0xf] %vm4987, %v4852
  %5017 = vst.msk [vmem:[#allocation3 + $0x74] sm:$0xf] %vm4987, %v4854
  %5018 = vst.msk [vmem:[#allocation3 + $0x78] sm:$0xf] %vm4987, %v4856
  %5019 = vst.msk [vmem:[#allocation3 + $0x7c] sm:$0xf] %vm4987, %v4858
  %5020 = vst.msk [vmem:[#allocation3 + $0x80] sm:$0xf] %vm4987, %v4860
  %5021 = vst.msk [vmem:[#allocation3 + $0x84] sm:$0xf] %vm4987, %v4862
  %5022 = vst.msk [vmem:[#allocation3 + $0x88] sm:$0xf] %vm4987, %v4864
  %5023 = vst.msk [vmem:[#allocation3 + $0x8c] sm:$0xf] %vm4987, %v4866
  %5024 = vst.msk [vmem:[#allocation3 + $0x90] sm:$0xf] %vm4987, %v4868
  %5025 = vst.msk [vmem:[#allocation3 + $0x94] sm:$0xf] %vm4987, %v4870
  %5026 = vst.msk [vmem:[#allocation3 + $0x98] sm:$0xf] %vm4987, %v4872
  %5027 = vst.msk [vmem:[#allocation3 + $0x9c] sm:$0xf] %vm4987, %v4874
  %5028 = vst.msk [vmem:[#allocation3 + $0xa0] sm:$0xf] %vm4987, %v4876
  %5029 = vst.msk [vmem:[#allocation3 + $0xa4] sm:$0xf] %vm4987, %v4878
  %5030 = vst.msk [vmem:[#allocation3 + $0xa8] sm:$0xf] %vm4987, %v4880
  %5031 = vst.msk [vmem:[#allocation3 + $0xac] sm:$0xf] %vm4987, %v4882
  %5032 = vst.msk [vmem:[#allocation3 + $0xb0] sm:$0xf] %vm4987, %v4884
  %5033 = vst.msk [vmem:[#allocation3 + $0xb4] sm:$0xf] %vm4987, %v4886
  %5034 = vst.msk [vmem:[#allocation3 + $0xb8] sm:$0xf] %vm4987, %v4888
  %5035 = vst.msk [vmem:[#allocation3 + $0xbc] sm:$0xf] %vm4987, %v4890
  %5036 = vst.msk [vmem:[#allocation3 + $0xc0] sm:$0xf] %vm4987, %v4892
  %5037 = vst.msk [vmem:[#allocation3 + $0xc4] sm:$0xf] %vm4987, %v4894
  %5038 = vst.msk [vmem:[#allocation3 + $0xc8] sm:$0xf] %vm4987, %v4896
  %5039 = vst.msk [vmem:[#allocation3 + $0xcc] sm:$0xf] %vm4987, %v4898
  %5040 = vst.msk [vmem:[#allocation3 + $0xd0] sm:$0xf] %vm4987, %v4900
  %5041 = vst.msk [vmem:[#allocation3 + $0xd4] sm:$0xf] %vm4987, %v4902
  %5042 = vst.msk [vmem:[#allocation3 + $0xd8] sm:$0xf] %vm4987, %v4904
  %5043 = vst.msk [vmem:[#allocation3 + $0xdc] sm:$0xf] %vm4987, %v4906
  %5044 = vst.msk [vmem:[#allocation3 + $0xe0] sm:$0xf] %vm4987, %v4908
  %5045 = vst.msk [vmem:[#allocation3 + $0xe4] sm:$0xf] %vm4987, %v4910
  %5046 = vst.msk [vmem:[#allocation3 + $0xe8] sm:$0xf] %vm4987, %v4912
  %5047 = vst.msk [vmem:[#allocation3 + $0xec] sm:$0xf] %vm4987, %v4914
  %5048 = vst.msk [vmem:[#allocation3 + $0xf0] sm:$0xf] %vm4987, %v4916
  %5049 = vst.msk [vmem:[#allocation3 + $0xf4] sm:$0xf] %vm4987, %v4918
  %5050 = vst.msk [vmem:[#allocation3 + $0xf8] sm:$0xf] %vm4987, %v4920
  %5051 = vst.msk [vmem:[#allocation3 + $0xfc] sm:$0xf] %vm4987, %v4922
  %v5052 = vld [vmem:[%s3993] sm:$0xc]
  %v5053 = vld [vmem:[%s3993 + $0x4] sm:$0xf]
  %v5054 = vld [vmem:[%s3993 + $0x8] sm:$0x3]
  %v5055 = vld [vmem:[%s3993 + $0xc] sm:$0xc]
  %v5056 = vld [vmem:[%s3993 + $0x10] sm:$0xf]
  %v5057 = vld [vmem:[%s3993 + $0x14] sm:$0x3]
  %v5058 = vld [vmem:[%s3993 + $0x18] sm:$0xc]
  %v5059 = vld [vmem:[%s3993 + $0x1c] sm:$0xf]
  %v5060 = vld [vmem:[%s3993 + $0x20] sm:$0x3]
  %v5061 = vld [vmem:[%s3993 + $0x24] sm:$0xc]
  %v5062 = vld [vmem:[%s3993 + $0x28] sm:$0xf]
  %v5063 = vld [vmem:[%s3993 + $0x2c] sm:$0x3]
  %v5064 = vld [vmem:[%s3993 + $0x30] sm:$0xc]
  %v5065 = vld [vmem:[%s3993 + $0x34] sm:$0xf]
  %v5066 = vld [vmem:[%s3993 + $0x38] sm:$0x3]
  %v5067 = vld [vmem:[%s3993 + $0x3c] sm:$0xc]
  %v5068 = vld [vmem:[%s3993 + $0x40] sm:$0xf]
  %v5069 = vld [vmem:[%s3993 + $0x44] sm:$0x3]
  %v5070 = vld [vmem:[%s3993 + $0x48] sm:$0xc]
  %v5071 = vld [vmem:[%s3993 + $0x4c] sm:$0xf]
  %v5072 = vld [vmem:[%s3993 + $0x50] sm:$0x3]
  %v5073 = vld [vmem:[%s3993 + $0x54] sm:$0xc]
  %v5074 = vld [vmem:[%s3993 + $0x58] sm:$0xf]
  %v5075 = vld [vmem:[%s3993 + $0x5c] sm:$0x3]
  %v5076 = vld [vmem:[%s3993 + $0x60] sm:$0xc]
  %v5077 = vld [vmem:[%s3993 + $0x64] sm:$0xf]
  %v5078 = vld [vmem:[%s3993 + $0x68] sm:$0x3]
  %v5079 = vld [vmem:[%s3993 + $0x6c] sm:$0xc]
  %v5080 = vld [vmem:[%s3993 + $0x70] sm:$0xf]
  %v5081 = vld [vmem:[%s3993 + $0x74] sm:$0x3]
  %v5082 = vld [vmem:[%s3993 + $0x78] sm:$0xc]
  %v5083 = vld [vmem:[%s3993 + $0x7c] sm:$0xf]
  %v5084 = vld [vmem:[%s3993 + $0x80] sm:$0x3]
  %v5085 = vld [vmem:[%s3993 + $0x84] sm:$0xc]
  %v5086 = vld [vmem:[%s3993 + $0x88] sm:$0xf]
  %v5087 = vld [vmem:[%s3993 + $0x8c] sm:$0x3]
  %v5088 = vld [vmem:[%s3993 + $0x90] sm:$0xc]
  %v5089 = vld [vmem:[%s3993 + $0x94] sm:$0xf]
  %v5090 = vld [vmem:[%s3993 + $0x98] sm:$0x3]
  %v5091 = vld [vmem:[%s3993 + $0x9c] sm:$0xc]
  %v5092 = vld [vmem:[%s3993 + $0xa0] sm:$0xf]
  %v5093 = vld [vmem:[%s3993 + $0xa4] sm:$0x3]
  %v5094 = vld [vmem:[%s3993 + $0xa8] sm:$0xc]
  %v5095 = vld [vmem:[%s3993 + $0xac] sm:$0xf]
  %v5096 = vld [vmem:[%s3993 + $0xb0] sm:$0x3]
  %v5097 = vld [vmem:[%s3993 + $0xb4] sm:$0xc]
  %v5098 = vld [vmem:[%s3993 + $0xb8] sm:$0xf]
  %v5099 = vld [vmem:[%s3993 + $0xbc] sm:$0x3]
  %v5100 = vld [vmem:[%s3993 + $0xf0] sm:$0xc]
  %v5101 = vld [vmem:[%s3993 + $0xf4] sm:$0xf]
  %v5102 = vld [vmem:[%s3993 + $0xf8] sm:$0x3]
  %v5103 = vld [vmem:[%s3993 + $0xfc] sm:$0xc]
  %v5104 = vld [vmem:[%s3993 + $0x100] sm:$0xf]
  %v5105 = vld [vmem:[%s3993 + $0x104] sm:$0x3]
  %v5106 = vld [vmem:[%s3993 + $0x108] sm:$0xc]
  %v5107 = vld [vmem:[%s3993 + $0x10c] sm:$0xf]
  %v5108 = vld [vmem:[%s3993 + $0x110] sm:$0x3]
  %v5109 = vld [vmem:[%s3993 + $0x114] sm:$0xc]
  %v5110 = vld [vmem:[%s3993 + $0x118] sm:$0xf]
  %v5111 = vld [vmem:[%s3993 + $0x11c] sm:$0x3]
  %v5112 = vld [vmem:[%s3993 + $0x120] sm:$0xc]
  %v5113 = vld [vmem:[%s3993 + $0x124] sm:$0xf]
  %v5114 = vld [vmem:[%s3993 + $0x128] sm:$0x3]
  %v5115 = vld [vmem:[%s3993 + $0x12c] sm:$0xc]
  %v5116 = vld [vmem:[%s3993 + $0x130] sm:$0xf]
  %v5117 = vld [vmem:[%s3993 + $0x134] sm:$0x3]
  %v5118 = vld [vmem:[%s3993 + $0x138] sm:$0xc]
  %v5119 = vld [vmem:[%s3993 + $0x13c] sm:$0xf]
  %v5120 = vld [vmem:[%s3993 + $0x140] sm:$0x3]
  %v5121 = vld [vmem:[%s3993 + $0x144] sm:$0xc]
  %v5122 = vld [vmem:[%s3993 + $0x148] sm:$0xf]
  %v5123 = vld [vmem:[%s3993 + $0x14c] sm:$0x3]
  %v5124 = vld [vmem:[%s3993 + $0x150] sm:$0xc]
  %v5125 = vld [vmem:[%s3993 + $0x154] sm:$0xf]
  %v5126 = vld [vmem:[%s3993 + $0x158] sm:$0x3]
  %v5127 = vld [vmem:[%s3993 + $0x15c] sm:$0xc]
  %v5128 = vld [vmem:[%s3993 + $0x160] sm:$0xf]
  %v5129 = vld [vmem:[%s3993 + $0x164] sm:$0x3]
  %v5130 = vld [vmem:[%s3993 + $0x168] sm:$0xc]
  %v5131 = vld [vmem:[%s3993 + $0x16c] sm:$0xf]
  %v5132 = vld [vmem:[%s3993 + $0x170] sm:$0x3]
  %v5133 = vld [vmem:[%s3993 + $0x174] sm:$0xc]
  %v5134 = vld [vmem:[%s3993 + $0x178] sm:$0xf]
  %v5135 = vld [vmem:[%s3993 + $0x17c] sm:$0x3]
  %v5136 = vld [vmem:[%s3993 + $0x180] sm:$0xc]
  %v5137 = vld [vmem:[%s3993 + $0x184] sm:$0xf]
  %v5138 = vld [vmem:[%s3993 + $0x188] sm:$0x3]
  %v5139 = vld [vmem:[%s3993 + $0x18c] sm:$0xc]
  %v5140 = vld [vmem:[%s3993 + $0x190] sm:$0xf]
  %v5141 = vld [vmem:[%s3993 + $0x194] sm:$0x3]
  %v5142 = vld [vmem:[%s3993 + $0x198] sm:$0xc]
  %v5143 = vld [vmem:[%s3993 + $0x19c] sm:$0xf]
  %v5144 = vld [vmem:[%s3993 + $0x1a0] sm:$0x3]
  %v5145 = vld [vmem:[%s3993 + $0x1a4] sm:$0xc]
  %v5146 = vld [vmem:[%s3993 + $0x1a8] sm:$0xf]
  %v5147 = vld [vmem:[%s3993 + $0x1ac] sm:$0x3]
  %v5244 = vrot.slane %v5052, 6
  %v5245 = vrot.slane %v5244, 4
  %v5246 = vrot.slane %v5053, 6
  %v5247 = vsel %vm1780, %v5245, %v5246
  %v5248 = vrot.slane %v5246, 4
  %v5249 = vrot.slane %v5054, 6
  %v5250 = vsel %vm1780, %v5248, %v5249
  %v5251 = vrot.slane %v5055, 6
  %v5252 = vrot.slane %v5251, 4
  %v5253 = vrot.slane %v5056, 6
  %v5254 = vsel %vm1780, %v5252, %v5253
  %v5255 = vrot.slane %v5253, 4
  %v5256 = vrot.slane %v5057, 6
  %v5257 = vsel %vm1780, %v5255, %v5256
  %v5258 = vrot.slane %v5058, 6
  %v5259 = vrot.slane %v5258, 4
  %v5260 = vrot.slane %v5059, 6
  %v5261 = vsel %vm1780, %v5259, %v5260
  %v5262 = vrot.slane %v5260, 4
  %v5263 = vrot.slane %v5060, 6
  %v5264 = vsel %vm1780, %v5262, %v5263
  %v5265 = vrot.slane %v5061, 6
  %v5266 = vrot.slane %v5265, 4
  %v5267 = vrot.slane %v5062, 6
  %v5268 = vsel %vm1780, %v5266, %v5267
  %v5269 = vrot.slane %v5267, 4
  %v5270 = vrot.slane %v5063, 6
  %v5271 = vsel %vm1780, %v5269, %v5270
  %v5272 = vrot.slane %v5064, 6
  %v5273 = vrot.slane %v5272, 4
  %v5274 = vrot.slane %v5065, 6
  %v5275 = vsel %vm1780, %v5273, %v5274
  %v5276 = vrot.slane %v5274, 4
  %v5277 = vrot.slane %v5066, 6
  %v5278 = vsel %vm1780, %v5276, %v5277
  %v5279 = vrot.slane %v5067, 6
  %v5280 = vrot.slane %v5279, 4
  %v5281 = vrot.slane %v5068, 6
  %v5282 = vsel %vm1780, %v5280, %v5281
  %v5283 = vrot.slane %v5281, 4
  %v5284 = vrot.slane %v5069, 6
  %v5285 = vsel %vm1780, %v5283, %v5284
  %v5286 = vrot.slane %v5070, 6
  %v5287 = vrot.slane %v5286, 4
  %v5288 = vrot.slane %v5071, 6
  %v5289 = vsel %vm1780, %v5287, %v5288
  %v5290 = vrot.slane %v5288, 4
  %v5291 = vrot.slane %v5072, 6
  %v5292 = vsel %vm1780, %v5290, %v5291
  %v5293 = vrot.slane %v5073, 6
  %v5294 = vrot.slane %v5293, 4
  %v5295 = vrot.slane %v5074, 6
  %v5296 = vsel %vm1780, %v5294, %v5295
  %v5297 = vrot.slane %v5295, 4
  %v5298 = vrot.slane %v5075, 6
  %v5299 = vsel %vm1780, %v5297, %v5298
  %v5300 = vrot.slane %v5076, 6
  %v5301 = vrot.slane %v5300, 4
  %v5302 = vrot.slane %v5077, 6
  %v5303 = vsel %vm1780, %v5301, %v5302
  %v5304 = vrot.slane %v5302, 4
  %v5305 = vrot.slane %v5078, 6
  %v5306 = vsel %vm1780, %v5304, %v5305
  %v5307 = vrot.slane %v5079, 6
  %v5308 = vrot.slane %v5307, 4
  %v5309 = vrot.slane %v5080, 6
  %v5310 = vsel %vm1780, %v5308, %v5309
  %v5311 = vrot.slane %v5309, 4
  %v5312 = vrot.slane %v5081, 6
  %v5313 = vsel %vm1780, %v5311, %v5312
  %v5314 = vrot.slane %v5082, 6
  %v5315 = vrot.slane %v5314, 4
  %v5316 = vrot.slane %v5083, 6
  %v5317 = vsel %vm1780, %v5315, %v5316
  %v5318 = vrot.slane %v5316, 4
  %v5319 = vrot.slane %v5084, 6
  %v5320 = vsel %vm1780, %v5318, %v5319
  %v5321 = vrot.slane %v5085, 6
  %v5322 = vrot.slane %v5321, 4
  %v5323 = vrot.slane %v5086, 6
  %v5324 = vsel %vm1780, %v5322, %v5323
  %v5325 = vrot.slane %v5323, 4
  %v5326 = vrot.slane %v5087, 6
  %v5327 = vsel %vm1780, %v5325, %v5326
  %v5328 = vrot.slane %v5088, 6
  %v5329 = vrot.slane %v5328, 4
  %v5330 = vrot.slane %v5089, 6
  %v5331 = vsel %vm1780, %v5329, %v5330
  %v5332 = vrot.slane %v5330, 4
  %v5333 = vrot.slane %v5090, 6
  %v5334 = vsel %vm1780, %v5332, %v5333
  %v5335 = vrot.slane %v5091, 6
  %v5336 = vrot.slane %v5335, 4
  %v5337 = vrot.slane %v5092, 6
  %v5338 = vsel %vm1780, %v5336, %v5337
  %v5339 = vrot.slane %v5337, 4
  %v5340 = vrot.slane %v5093, 6
  %v5341 = vsel %vm1780, %v5339, %v5340
  %v5342 = vrot.slane %v5094, 6
  %v5343 = vrot.slane %v5342, 4
  %v5344 = vrot.slane %v5095, 6
  %v5345 = vsel %vm1780, %v5343, %v5344
  %v5346 = vrot.slane %v5344, 4
  %v5347 = vrot.slane %v5096, 6
  %v5348 = vsel %vm1780, %v5346, %v5347
  %v5349 = vrot.slane %v5097, 6
  %v5350 = vrot.slane %v5349, 4
  %v5351 = vrot.slane %v5098, 6
  %v5352 = vsel %vm1780, %v5350, %v5351
  %v5353 = vrot.slane %v5351, 4
  %v5354 = vrot.slane %v5099, 6
  %v5355 = vsel %vm1780, %v5353, %v5354
  %v5356 = vrot.slane %v5100, 6
  %v5357 = vrot.slane %v5356, 4
  %v5358 = vrot.slane %v5101, 6
  %v5359 = vsel %vm1780, %v5357, %v5358
  %v5360 = vrot.slane %v5358, 4
  %v5361 = vrot.slane %v5102, 6
  %v5362 = vsel %vm1780, %v5360, %v5361
  %v5363 = vrot.slane %v5103, 6
  %v5364 = vrot.slane %v5363, 4
  %v5365 = vrot.slane %v5104, 6
  %v5366 = vsel %vm1780, %v5364, %v5365
  %v5367 = vrot.slane %v5365, 4
  %v5368 = vrot.slane %v5105, 6
  %v5369 = vsel %vm1780, %v5367, %v5368
  %v5370 = vrot.slane %v5106, 6
  %v5371 = vrot.slane %v5370, 4
  %v5372 = vrot.slane %v5107, 6
  %v5373 = vsel %vm1780, %v5371, %v5372
  %v5374 = vrot.slane %v5372, 4
  %v5375 = vrot.slane %v5108, 6
  %v5376 = vsel %vm1780, %v5374, %v5375
  %v5377 = vrot.slane %v5109, 6
  %v5378 = vrot.slane %v5377, 4
  %v5379 = vrot.slane %v5110, 6
  %v5380 = vsel %vm1780, %v5378, %v5379
  %v5381 = vrot.slane %v5379, 4
  %v5382 = vrot.slane %v5111, 6
  %v5383 = vsel %vm1780, %v5381, %v5382
  %v5384 = vrot.slane %v5112, 6
  %v5385 = vrot.slane %v5384, 4
  %v5386 = vrot.slane %v5113, 6
  %v5387 = vsel %vm1780, %v5385, %v5386
  %v5388 = vrot.slane %v5386, 4
  %v5389 = vrot.slane %v5114, 6
  %v5390 = vsel %vm1780, %v5388, %v5389
  %v5391 = vrot.slane %v5115, 6
  %v5392 = vrot.slane %v5391, 4
  %v5393 = vrot.slane %v5116, 6
  %v5394 = vsel %vm1780, %v5392, %v5393
  %v5395 = vrot.slane %v5393, 4
  %v5396 = vrot.slane %v5117, 6
  %v5397 = vsel %vm1780, %v5395, %v5396
  %v5398 = vrot.slane %v5118, 6
  %v5399 = vrot.slane %v5398, 4
  %v5400 = vrot.slane %v5119, 6
  %v5401 = vsel %vm1780, %v5399, %v5400
  %v5402 = vrot.slane %v5400, 4
  %v5403 = vrot.slane %v5120, 6
  %v5404 = vsel %vm1780, %v5402, %v5403
  %v5405 = vrot.slane %v5121, 6
  %v5406 = vrot.slane %v5405, 4
  %v5407 = vrot.slane %v5122, 6
  %v5408 = vsel %vm1780, %v5406, %v5407
  %v5409 = vrot.slane %v5407, 4
  %v5410 = vrot.slane %v5123, 6
  %v5411 = vsel %vm1780, %v5409, %v5410
  %v5412 = vrot.slane %v5124, 6
  %v5413 = vrot.slane %v5412, 4
  %v5414 = vrot.slane %v5125, 6
  %v5415 = vsel %vm1780, %v5413, %v5414
  %v5416 = vrot.slane %v5414, 4
  %v5417 = vrot.slane %v5126, 6
  %v5418 = vsel %vm1780, %v5416, %v5417
  %v5419 = vrot.slane %v5127, 6
  %v5420 = vrot.slane %v5419, 4
  %v5421 = vrot.slane %v5128, 6
  %v5422 = vsel %vm1780, %v5420, %v5421
  %v5423 = vrot.slane %v5421, 4
  %v5424 = vrot.slane %v5129, 6
  %v5425 = vsel %vm1780, %v5423, %v5424
  %v5426 = vrot.slane %v5130, 6
  %v5427 = vrot.slane %v5426, 4
  %v5428 = vrot.slane %v5131, 6
  %v5429 = vsel %vm1780, %v5427, %v5428
  %v5430 = vrot.slane %v5428, 4
  %v5431 = vrot.slane %v5132, 6
  %v5432 = vsel %vm1780, %v5430, %v5431
  %v5433 = vrot.slane %v5133, 6
  %v5434 = vrot.slane %v5433, 4
  %v5435 = vrot.slane %v5134, 6
  %v5436 = vsel %vm1780, %v5434, %v5435
  %v5437 = vrot.slane %v5435, 4
  %v5438 = vrot.slane %v5135, 6
  %v5439 = vsel %vm1780, %v5437, %v5438
  %v5440 = vrot.slane %v5136, 6
  %v5441 = vrot.slane %v5440, 4
  %v5442 = vrot.slane %v5137, 6
  %v5443 = vsel %vm1780, %v5441, %v5442
  %v5444 = vrot.slane %v5442, 4
  %v5445 = vrot.slane %v5138, 6
  %v5446 = vsel %vm1780, %v5444, %v5445
  %v5447 = vrot.slane %v5139, 6
  %v5448 = vrot.slane %v5447, 4
  %v5449 = vrot.slane %v5140, 6
  %v5450 = vsel %vm1780, %v5448, %v5449
  %v5451 = vrot.slane %v5449, 4
  %v5452 = vrot.slane %v5141, 6
  %v5453 = vsel %vm1780, %v5451, %v5452
  %v5454 = vrot.slane %v5142, 6
  %v5455 = vrot.slane %v5454, 4
  %v5456 = vrot.slane %v5143, 6
  %v5457 = vsel %vm1780, %v5455, %v5456
  %v5458 = vrot.slane %v5456, 4
  %v5459 = vrot.slane %v5144, 6
  %v5460 = vsel %vm1780, %v5458, %v5459
  %v5461 = vrot.slane %v5145, 6
  %v5462 = vrot.slane %v5461, 4
  %v5463 = vrot.slane %v5146, 6
  %v5464 = vsel %vm1780, %v5462, %v5463
  %v5465 = vrot.slane %v5463, 4
  %v5466 = vrot.slane %v5147, 6
  %v5467 = vsel %vm1780, %v5465, %v5466
  %5468 = vrot.lane.b32.xlu0 %v5247, 32
  %v5469 = vpop.permute.xlu0 %5468
  %5470 = vrot.lane.b32.xlu0 %v5250, 32
  %v5471 = vpop.permute.xlu0 %5470
  %5472 = vrot.lane.b32.xlu0 %v5254, 32
  %v5473 = vpop.permute.xlu0 %5472
  %5474 = vrot.lane.b32.xlu0 %v5257, 32
  %v5475 = vpop.permute.xlu0 %5474
  %5476 = vrot.lane.b32.xlu0 %v5261, 32
  %v5477 = vpop.permute.xlu0 %5476
  %5478 = vrot.lane.b32.xlu0 %v5264, 32
  %v5479 = vpop.permute.xlu0 %5478
  %5480 = vrot.lane.b32.xlu0 %v5268, 32
  %v5481 = vpop.permute.xlu0 %5480
  %5482 = vrot.lane.b32.xlu0 %v5271, 32
  %v5483 = vpop.permute.xlu0 %5482
  %5484 = vrot.lane.b32.xlu0 %v5275, 32
  %v5485 = vpop.permute.xlu0 %5484
  %5486 = vrot.lane.b32.xlu0 %v5278, 32
  %v5487 = vpop.permute.xlu0 %5486
  %5488 = vrot.lane.b32.xlu0 %v5282, 32
  %v5489 = vpop.permute.xlu0 %5488
  %5490 = vrot.lane.b32.xlu0 %v5285, 32
  %v5491 = vpop.permute.xlu0 %5490
  %5492 = vrot.lane.b32.xlu0 %v5289, 32
  %v5493 = vpop.permute.xlu0 %5492
  %5494 = vrot.lane.b32.xlu0 %v5292, 32
  %v5495 = vpop.permute.xlu0 %5494
  %5496 = vrot.lane.b32.xlu0 %v5296, 32
  %v5497 = vpop.permute.xlu0 %5496
  %5498 = vrot.lane.b32.xlu0 %v5299, 32
  %v5499 = vpop.permute.xlu0 %5498
  %5500 = vrot.lane.b32.xlu0 %v5303, 32
  %v5501 = vpop.permute.xlu0 %5500
  %5502 = vrot.lane.b32.xlu0 %v5306, 32
  %v5503 = vpop.permute.xlu0 %5502
  %5504 = vrot.lane.b32.xlu0 %v5310, 32
  %v5505 = vpop.permute.xlu0 %5504
  %5506 = vrot.lane.b32.xlu0 %v5313, 32
  %v5507 = vpop.permute.xlu0 %5506
  %5508 = vrot.lane.b32.xlu0 %v5317, 32
  %v5509 = vpop.permute.xlu0 %5508
  %5510 = vrot.lane.b32.xlu0 %v5320, 32
  %v5511 = vpop.permute.xlu0 %5510
  %5512 = vrot.lane.b32.xlu0 %v5324, 32
  %v5513 = vpop.permute.xlu0 %5512
  %5514 = vrot.lane.b32.xlu0 %v5327, 32
  %v5515 = vpop.permute.xlu0 %5514
  %5516 = vrot.lane.b32.xlu0 %v5331, 32
  %v5517 = vpop.permute.xlu0 %5516
  %5518 = vrot.lane.b32.xlu0 %v5334, 32
  %v5519 = vpop.permute.xlu0 %5518
  %5520 = vrot.lane.b32.xlu0 %v5338, 32
  %v5521 = vpop.permute.xlu0 %5520
  %5522 = vrot.lane.b32.xlu0 %v5341, 32
  %v5523 = vpop.permute.xlu0 %5522
  %5524 = vrot.lane.b32.xlu0 %v5345, 32
  %v5525 = vpop.permute.xlu0 %5524
  %5526 = vrot.lane.b32.xlu0 %v5348, 32
  %v5527 = vpop.permute.xlu0 %5526
  %5528 = vrot.lane.b32.xlu0 %v5352, 32
  %v5529 = vpop.permute.xlu0 %5528
  %5530 = vrot.lane.b32.xlu0 %v5355, 32
  %v5531 = vpop.permute.xlu0 %5530
  %5532 = vrot.lane.b32.xlu0 %v5359, 32
  %v5533 = vpop.permute.xlu0 %5532
  %5534 = vrot.lane.b32.xlu0 %v5362, 32
  %v5535 = vpop.permute.xlu0 %5534
  %5536 = vrot.lane.b32.xlu0 %v5366, 32
  %v5537 = vpop.permute.xlu0 %5536
  %5538 = vrot.lane.b32.xlu0 %v5369, 32
  %v5539 = vpop.permute.xlu0 %5538
  %5540 = vrot.lane.b32.xlu0 %v5373, 32
  %v5541 = vpop.permute.xlu0 %5540
  %5542 = vrot.lane.b32.xlu0 %v5376, 32
  %v5543 = vpop.permute.xlu0 %5542
  %5544 = vrot.lane.b32.xlu0 %v5380, 32
  %v5545 = vpop.permute.xlu0 %5544
  %5546 = vrot.lane.b32.xlu0 %v5383, 32
  %v5547 = vpop.permute.xlu0 %5546
  %5548 = vrot.lane.b32.xlu0 %v5387, 32
  %v5549 = vpop.permute.xlu0 %5548
  %5550 = vrot.lane.b32.xlu0 %v5390, 32
  %v5551 = vpop.permute.xlu0 %5550
  %5552 = vrot.lane.b32.xlu0 %v5394, 32
  %v5553 = vpop.permute.xlu0 %5552
  %5554 = vrot.lane.b32.xlu0 %v5397, 32
  %v5555 = vpop.permute.xlu0 %5554
  %5556 = vrot.lane.b32.xlu0 %v5401, 32
  %v5557 = vpop.permute.xlu0 %5556
  %5558 = vrot.lane.b32.xlu0 %v5404, 32
  %v5559 = vpop.permute.xlu0 %5558
  %5560 = vrot.lane.b32.xlu0 %v5408, 32
  %v5561 = vpop.permute.xlu0 %5560
  %5562 = vrot.lane.b32.xlu0 %v5411, 32
  %v5563 = vpop.permute.xlu0 %5562
  %5564 = vrot.lane.b32.xlu0 %v5415, 32
  %v5565 = vpop.permute.xlu0 %5564
  %5566 = vrot.lane.b32.xlu0 %v5418, 32
  %v5567 = vpop.permute.xlu0 %5566
  %5568 = vrot.lane.b32.xlu0 %v5422, 32
  %v5569 = vpop.permute.xlu0 %5568
  %5570 = vrot.lane.b32.xlu0 %v5425, 32
  %v5571 = vpop.permute.xlu0 %5570
  %5572 = vrot.lane.b32.xlu0 %v5429, 32
  %v5573 = vpop.permute.xlu0 %5572
  %5574 = vrot.lane.b32.xlu0 %v5432, 32
  %v5575 = vpop.permute.xlu0 %5574
  %5576 = vrot.lane.b32.xlu0 %v5436, 32
  %v5577 = vpop.permute.xlu0 %5576
  %5578 = vrot.lane.b32.xlu0 %v5439, 32
  %v5579 = vpop.permute.xlu0 %5578
  %5580 = vrot.lane.b32.xlu0 %v5443, 32
  %v5581 = vpop.permute.xlu0 %5580
  %5582 = vrot.lane.b32.xlu0 %v5446, 32
  %v5583 = vpop.permute.xlu0 %5582
  %5584 = vrot.lane.b32.xlu0 %v5450, 32
  %v5585 = vpop.permute.xlu0 %5584
  %5586 = vrot.lane.b32.xlu0 %v5453, 32
  %v5587 = vpop.permute.xlu0 %5586
  %5588 = vrot.lane.b32.xlu0 %v5457, 32
  %v5589 = vpop.permute.xlu0 %5588
  %5590 = vrot.lane.b32.xlu0 %v5460, 32
  %v5591 = vpop.permute.xlu0 %5590
  %5592 = vrot.lane.b32.xlu0 %v5464, 32
  %v5593 = vpop.permute.xlu0 %5592
  %5594 = vrot.lane.b32.xlu0 %v5467, 32
  %v5595 = vpop.permute.xlu0 %5594
  %vm5660 = vcmask 290048
  %5661 = vst.msk [vmem:[#allocation3] sm:$0xf] %vm5660, %v5469
  %5662 = vst.msk [vmem:[#allocation3 + $0x4] sm:$0xf] %vm5660, %v5471
  %5663 = vst.msk [vmem:[#allocation3 + $0x8] sm:$0xf] %vm5660, %v5473
  %5664 = vst.msk [vmem:[#allocation3 + $0xc] sm:$0xf] %vm5660, %v5475
  %5665 = vst.msk [vmem:[#allocation3 + $0x10] sm:$0xf] %vm5660, %v5477
  %5666 = vst.msk [vmem:[#allocation3 + $0x14] sm:$0xf] %vm5660, %v5479
  %5667 = vst.msk [vmem:[#allocation3 + $0x18] sm:$0xf] %vm5660, %v5481
  %5668 = vst.msk [vmem:[#allocation3 + $0x1c] sm:$0xf] %vm5660, %v5483
  %5669 = vst.msk [vmem:[#allocation3 + $0x20] sm:$0xf] %vm5660, %v5485
  %5670 = vst.msk [vmem:[#allocation3 + $0x24] sm:$0xf] %vm5660, %v5487
  %5671 = vst.msk [vmem:[#allocation3 + $0x28] sm:$0xf] %vm5660, %v5489
  %5672 = vst.msk [vmem:[#allocation3 + $0x2c] sm:$0xf] %vm5660, %v5491
  %5673 = vst.msk [vmem:[#allocation3 + $0x30] sm:$0xf] %vm5660, %v5493
  %5674 = vst.msk [vmem:[#allocation3 + $0x34] sm:$0xf] %vm5660, %v5495
  %5675 = vst.msk [vmem:[#allocation3 + $0x38] sm:$0xf] %vm5660, %v5497
  %5676 = vst.msk [vmem:[#allocation3 + $0x3c] sm:$0xf] %vm5660, %v5499
  %5677 = vst.msk [vmem:[#allocation3 + $0x40] sm:$0xf] %vm5660, %v5501
  %5678 = vst.msk [vmem:[#allocation3 + $0x44] sm:$0xf] %vm5660, %v5503
  %5679 = vst.msk [vmem:[#allocation3 + $0x48] sm:$0xf] %vm5660, %v5505
  %5680 = vst.msk [vmem:[#allocation3 + $0x4c] sm:$0xf] %vm5660, %v5507
  %5681 = vst.msk [vmem:[#allocation3 + $0x50] sm:$0xf] %vm5660, %v5509
  %5682 = vst.msk [vmem:[#allocation3 + $0x54] sm:$0xf] %vm5660, %v5511
  %5683 = vst.msk [vmem:[#allocation3 + $0x58] sm:$0xf] %vm5660, %v5513
  %5684 = vst.msk [vmem:[#allocation3 + $0x5c] sm:$0xf] %vm5660, %v5515
  %5685 = vst.msk [vmem:[#allocation3 + $0x60] sm:$0xf] %vm5660, %v5517
  %5686 = vst.msk [vmem:[#allocation3 + $0x64] sm:$0xf] %vm5660, %v5519
  %5687 = vst.msk [vmem:[#allocation3 + $0x68] sm:$0xf] %vm5660, %v5521
  %5688 = vst.msk [vmem:[#allocation3 + $0x6c] sm:$0xf] %vm5660, %v5523
  %5689 = vst.msk [vmem:[#allocation3 + $0x70] sm:$0xf] %vm5660, %v5525
  %5690 = vst.msk [vmem:[#allocation3 + $0x74] sm:$0xf] %vm5660, %v5527
  %5691 = vst.msk [vmem:[#allocation3 + $0x78] sm:$0xf] %vm5660, %v5529
  %5692 = vst.msk [vmem:[#allocation3 + $0x7c] sm:$0xf] %vm5660, %v5531
  %5693 = vst.msk [vmem:[#allocation3 + $0x80] sm:$0xf] %vm5660, %v5533
  %5694 = vst.msk [vmem:[#allocation3 + $0x84] sm:$0xf] %vm5660, %v5535
  %5695 = vst.msk [vmem:[#allocation3 + $0x88] sm:$0xf] %vm5660, %v5537
  %5696 = vst.msk [vmem:[#allocation3 + $0x8c] sm:$0xf] %vm5660, %v5539
  %5697 = vst.msk [vmem:[#allocation3 + $0x90] sm:$0xf] %vm5660, %v5541
  %5698 = vst.msk [vmem:[#allocation3 + $0x94] sm:$0xf] %vm5660, %v5543
  %5699 = vst.msk [vmem:[#allocation3 + $0x98] sm:$0xf] %vm5660, %v5545
  %5700 = vst.msk [vmem:[#allocation3 + $0x9c] sm:$0xf] %vm5660, %v5547
  %5701 = vst.msk [vmem:[#allocation3 + $0xa0] sm:$0xf] %vm5660, %v5549
  %5702 = vst.msk [vmem:[#allocation3 + $0xa4] sm:$0xf] %vm5660, %v5551
  %5703 = vst.msk [vmem:[#allocation3 + $0xa8] sm:$0xf] %vm5660, %v5553
  %5704 = vst.msk [vmem:[#allocation3 + $0xac] sm:$0xf] %vm5660, %v5555
  %5705 = vst.msk [vmem:[#allocation3 + $0xb0] sm:$0xf] %vm5660, %v5557
  %5706 = vst.msk [vmem:[#allocation3 + $0xb4] sm:$0xf] %vm5660, %v5559
  %5707 = vst.msk [vmem:[#allocation3 + $0xb8] sm:$0xf] %vm5660, %v5561
  %5708 = vst.msk [vmem:[#allocation3 + $0xbc] sm:$0xf] %vm5660, %v5563
  %5709 = vst.msk [vmem:[#allocation3 + $0xc0] sm:$0xf] %vm5660, %v5565
  %5710 = vst.msk [vmem:[#allocation3 + $0xc4] sm:$0xf] %vm5660, %v5567
  %5711 = vst.msk [vmem:[#allocation3 + $0xc8] sm:$0xf] %vm5660, %v5569
  %5712 = vst.msk [vmem:[#allocation3 + $0xcc] sm:$0xf] %vm5660, %v5571
  %5713 = vst.msk [vmem:[#allocation3 + $0xd0] sm:$0xf] %vm5660, %v5573
  %5714 = vst.msk [vmem:[#allocation3 + $0xd4] sm:$0xf] %vm5660, %v5575
  %5715 = vst.msk [vmem:[#allocation3 + $0xd8] sm:$0xf] %vm5660, %v5577
  %5716 = vst.msk [vmem:[#allocation3 + $0xdc] sm:$0xf] %vm5660, %v5579
  %5717 = vst.msk [vmem:[#allocation3 + $0xe0] sm:$0xf] %vm5660, %v5581
  %5718 = vst.msk [vmem:[#allocation3 + $0xe4] sm:$0xf] %vm5660, %v5583
  %5719 = vst.msk [vmem:[#allocation3 + $0xe8] sm:$0xf] %vm5660, %v5585
  %5720 = vst.msk [vmem:[#allocation3 + $0xec] sm:$0xf] %vm5660, %v5587
  %5721 = vst.msk [vmem:[#allocation3 + $0xf0] sm:$0xf] %vm5660, %v5589
  %5722 = vst.msk [vmem:[#allocation3 + $0xf4] sm:$0xf] %vm5660, %v5591
  %5723 = vst.msk [vmem:[#allocation3 + $0xf8] sm:$0xf] %vm5660, %v5593
  %5724 = vst.msk [vmem:[#allocation3 + $0xfc] sm:$0xf] %vm5660, %v5595
  %v5725 = vld [vmem:[%s1] sm:$0xf]
  %v5726 = vld [vmem:[#allocation3] sm:$0xf]
  %v5727 = vld [vmem:[#allocation3 + $0x4] sm:$0xf]
  %v5728 = vld [vmem:[#allocation3 + $0x8] sm:$0xf]
  %v5729 = vld [vmem:[#allocation3 + $0xc] sm:$0xf]
  %v5730 = vld [vmem:[#allocation3 + $0x10] sm:$0xf]
  %v5731 = vld [vmem:[#allocation3 + $0x14] sm:$0xf]
  %v5732 = vld [vmem:[#allocation3 + $0x18] sm:$0xf]
  %v5733 = vld [vmem:[#allocation3 + $0x1c] sm:$0xf]
  %v5734 = vld [vmem:[#allocation3 + $0x20] sm:$0xf]
  %v5735 = vld [vmem:[#allocation3 + $0x24] sm:$0xf]
  %v5736 = vld [vmem:[#allocation3 + $0x28] sm:$0xf]
  %v5737 = vld [vmem:[#allocation3 + $0x2c] sm:$0xf]
  %v5738 = vld [vmem:[#allocation3 + $0x30] sm:$0xf]
  %v5739 = vld [vmem:[#allocation3 + $0x34] sm:$0xf]
  %v5740 = vld [vmem:[#allocation3 + $0x38] sm:$0xf]
  %v5741 = vld [vmem:[#allocation3 + $0x3c] sm:$0xf]
  %v5742 = vld [vmem:[#allocation3 + $0x40] sm:$0xf]
  %v5743 = vld [vmem:[#allocation3 + $0x44] sm:$0xf]
  %v5744 = vld [vmem:[#allocation3 + $0x48] sm:$0xf]
  %v5745 = vld [vmem:[#allocation3 + $0x4c] sm:$0xf]
  %v5746 = vld [vmem:[#allocation3 + $0x50] sm:$0xf]
  %v5747 = vld [vmem:[#allocation3 + $0x54] sm:$0xf]
  %v5748 = vld [vmem:[#allocation3 + $0x58] sm:$0xf]
  %v5749 = vld [vmem:[#allocation3 + $0x5c] sm:$0xf]
  %v5750 = vld [vmem:[#allocation3 + $0x60] sm:$0xf]
  %v5751 = vld [vmem:[#allocation3 + $0x64] sm:$0xf]
  %v5752 = vld [vmem:[#allocation3 + $0x68] sm:$0xf]
  %v5753 = vld [vmem:[#allocation3 + $0x6c] sm:$0xf]
  %v5754 = vld [vmem:[#allocation3 + $0x70] sm:$0xf]
  %v5755 = vld [vmem:[#allocation3 + $0x74] sm:$0xf]
  %v5756 = vld [vmem:[#allocation3 + $0x78] sm:$0xf]
  %v5757 = vld [vmem:[#allocation3 + $0x7c] sm:$0xf]
  %v5790 = vunpack.c.l.b16 %v5726
  %v5791 = vunpack.c.l.b16 %v5727
  %v5792 = vunpack.c.l.b16 %v5728
  %v5793 = vunpack.c.l.b16 %v5729
  %v5794 = vunpack.c.l.b16 %v5730
  %v5795 = vunpack.c.l.b16 %v5731
  %v5796 = vunpack.c.l.b16 %v5732
  %v5797 = vunpack.c.l.b16 %v5733
  %v5798 = vunpack.c.l.b16 %v5734
  %v5799 = vunpack.c.l.b16 %v5735
  %v5800 = vunpack.c.l.b16 %v5736
  %v5801 = vunpack.c.l.b16 %v5737
  %v5802 = vunpack.c.l.b16 %v5738
  %v5803 = vunpack.c.l.b16 %v5739
  %v5804 = vunpack.c.l.b16 %v5740
  %v5805 = vunpack.c.l.b16 %v5741
  %v5806 = vunpack.c.l.b16 %v5742
  %v5807 = vunpack.c.l.b16 %v5743
  %v5808 = vunpack.c.l.b16 %v5744
  %v5809 = vunpack.c.l.b16 %v5745
  %v5810 = vunpack.c.l.b16 %v5746
  %v5811 = vunpack.c.l.b16 %v5747
  %v5812 = vunpack.c.l.b16 %v5748
  %v5813 = vunpack.c.l.b16 %v5749
  %v5814 = vunpack.c.l.b16 %v5750
  %v5815 = vunpack.c.l.b16 %v5751
  %v5816 = vunpack.c.l.b16 %v5752
  %v5817 = vunpack.c.l.b16 %v5753
  %v5818 = vunpack.c.l.b16 %v5754
  %v5819 = vunpack.c.l.b16 %v5755
  %v5820 = vunpack.c.l.b16 %v5756
  %v5821 = vunpack.c.l.b16 %v5757
  %v5822 = vpack.c.b16 %v5791, %v5790
  %v5823 = vpack.c.b16 %v5793, %v5792
  %v5824 = vpack.c.b16 %v5795, %v5794
  %v5825 = vpack.c.b16 %v5797, %v5796
  %v5826 = vpack.c.b16 %v5799, %v5798
  %v5827 = vpack.c.b16 %v5801, %v5800
  %v5828 = vpack.c.b16 %v5803, %v5802
  %v5829 = vpack.c.b16 %v5805, %v5804
  %v5830 = vpack.c.b16 %v5807, %v5806
  %v5831 = vpack.c.b16 %v5809, %v5808
  %v5832 = vpack.c.b16 %v5811, %v5810
  %v5833 = vpack.c.b16 %v5813, %v5812
  %v5834 = vpack.c.b16 %v5815, %v5814
  %v5835 = vpack.c.b16 %v5817, %v5816
  %v5836 = vpack.c.b16 %v5819, %v5818
  %v5837 = vpack.c.b16 %v5821, %v5820
  %vm5838 = vcmask 293888
  %v5840 = vsel %vm5838, %v5725, 0
  %v5843 = vsel %vm5838, %v5822, 0
  %v5846 = vsel %vm5838, %v5823, 0
  %v5849 = vsel %vm5838, %v5824, 0
  %v5852 = vsel %vm5838, %v5825, 0
  %v5855 = vsel %vm5838, %v5826, 0
  %v5858 = vsel %vm5838, %v5827, 0
  %v5861 = vsel %vm5838, %v5828, 0
  %v5864 = vsel %vm5838, %v5829, 0
  %v5867 = vsel %vm5838, %v5830, 0
  %v5870 = vsel %vm5838, %v5831, 0
  %v5873 = vsel %vm5838, %v5832, 0
  %v5876 = vsel %vm5838, %v5833, 0
  %v5879 = vsel %vm5838, %v5834, 0
  %v5882 = vsel %vm5838, %v5835, 0
  %v5885 = vsel %vm5838, %v5836, 0
  %v5888 = vsel %vm5838, %v5837, 0
  %5890 = vmatprep.subr.bf16.mxu0 0
  %5891 = vmatpush1.bf16.xpose.msra.mxu0 %v5864
  %5892 = vmatprep.subr.bf16.mxu0 0
  %5893 = vmatpush1.bf16.xpose.msra.mxu0 %v5861
  %5894 = vmatprep.subr.bf16.mxu0 0
  %5895 = vmatpush1.bf16.xpose.msra.mxu0 %v5858
  %5896 = vmatprep.subr.bf16.mxu0 0
  %5897 = vmatpush1.bf16.xpose.msra.mxu0 %v5855
  %5898 = vmatprep.subr.bf16.mxu0 0
  %5899 = vmatpush1.bf16.xpose.msra.mxu0 %v5852
  %5900 = vmatprep.subr.bf16.mxu0 0
  %5901 = vmatpush1.bf16.xpose.msra.mxu0 %v5849
  %5902 = vmatprep.subr.bf16.mxu0 0
  %5903 = vmatpush1.bf16.xpose.msra.mxu0 %v5846
  %5904 = vmatprep.subr.bf16.mxu0 0
  %5905 = vmatpush1.bf16.xpose.msra.mxu0 %v5843
  %5906 = vmatprep.subr.bf16.mxu0 0
  %5907 = vmatpush2.bf16.xpose.msra.mxu0 %v5888
  %5908 = vmatprep.subr.bf16.mxu0 0
  %5909 = vmatpush2.bf16.xpose.msra.mxu0 %v5885
  %5910 = vmatprep.subr.bf16.mxu0 0
  %5911 = vmatpush2.bf16.xpose.msra.mxu0 %v5882
  %5912 = vmatprep.subr.bf16.mxu0 0
  %5913 = vmatpush2.bf16.xpose.msra.mxu0 %v5879
  %5914 = vmatprep.subr.bf16.mxu0 0
  %5915 = vmatpush2.bf16.xpose.msra.mxu0 %v5876
  %5916 = vmatprep.subr.bf16.mxu0 0
  %5917 = vmatpush2.bf16.xpose.msra.mxu0 %v5873
  %5918 = vmatprep.subr.bf16.mxu0 0
  %5919 = vmatpush2.bf16.xpose.msra.mxu0 %v5870
  %5920 = vmatprep.subr.bf16.mxu0 0
  %5921 = vmatpush2.bf16.xpose.msra.mxu0 %v5867
  %5922 = vmatprep.mubr.bf16.mxu0 0
  %5923 = vmatmul.mubr.bf16.gmra.mxu0 %v5840
  %v5924 = vpop.f32.mrf.mxu0
  %v5925 = vadd.f32 0.0, %v5924
  %v5926 = vpop.f32.mrf.mxu0
  %v5927 = vadd.f32 0.0, %v5926
  %v5928 = vpop.f32.mrf.mxu0
  %v5929 = vpop.f32.mrf.mxu0
  %5930 = vdwg.mxu0
  %v5931 = vadd.f32 %v5925, %v5927
  %5932 = vadd.xlane.f32.xlu0 %v5931
  %v5933 = vpop.xlane.xlu0 %5932
  %v5934 = vadd.f32 %v5933, 0.0
  %v5935 = vmul.f32 %v5925, %v5925
  %v5936 = vmul.f32 %v5927, %v5927
  %v5937 = vadd.f32 %v5935, %v5936
  %5938 = vadd.xlane.f32.xlu0 %v5937
  %v5939 = vpop.xlane.xlu0 %5938
  %v5940 = vadd.f32 %v5939, 0.0
  %s5941 = scalar_lea.vmem [#allocation3], 128
  %v5942 = vld [vmem:[%s5941] sm:$0xf]
  %v5943 = vld [vmem:[%s5941 + $0x4] sm:$0xf]
  %v5944 = vld [vmem:[%s5941 + $0x8] sm:$0xf]
  %v5945 = vld [vmem:[%s5941 + $0xc] sm:$0xf]
  %v5946 = vld [vmem:[%s5941 + $0x10] sm:$0xf]
  %v5947 = vld [vmem:[%s5941 + $0x14] sm:$0xf]
  %v5948 = vld [vmem:[%s5941 + $0x18] sm:$0xf]
  %v5949 = vld [vmem:[%s5941 + $0x1c] sm:$0xf]
  %v5950 = vld [vmem:[%s5941 + $0x20] sm:$0xf]
  %v5951 = vld [vmem:[%s5941 + $0x24] sm:$0xf]
  %v5952 = vld [vmem:[%s5941 + $0x28] sm:$0xf]
  %v5953 = vld [vmem:[%s5941 + $0x2c] sm:$0xf]
  %v5954 = vld [vmem:[%s5941 + $0x30] sm:$0xf]
  %v5955 = vld [vmem:[%s5941 + $0x34] sm:$0xf]
  %v5956 = vld [vmem:[%s5941 + $0x38] sm:$0xf]
  %v5957 = vld [vmem:[%s5941 + $0x3c] sm:$0xf]
  %v5958 = vld [vmem:[%s5941 + $0x40] sm:$0xf]
  %v5959 = vld [vmem:[%s5941 + $0x44] sm:$0xf]
  %v5960 = vld [vmem:[%s5941 + $0x48] sm:$0xf]
  %v5961 = vld [vmem:[%s5941 + $0x4c] sm:$0xf]
  %v5962 = vld [vmem:[%s5941 + $0x50] sm:$0xf]
  %v5963 = vld [vmem:[%s5941 + $0x54] sm:$0xf]
  %v5964 = vld [vmem:[%s5941 + $0x58] sm:$0xf]
  %v5965 = vld [vmem:[%s5941 + $0x5c] sm:$0xf]
  %v5966 = vld [vmem:[%s5941 + $0x60] sm:$0xf]
  %v5967 = vld [vmem:[%s5941 + $0x64] sm:$0xf]
  %v5968 = vld [vmem:[%s5941 + $0x68] sm:$0xf]
  %v5969 = vld [vmem:[%s5941 + $0x6c] sm:$0xf]
  %v5970 = vld [vmem:[%s5941 + $0x70] sm:$0xf]
  %v5971 = vld [vmem:[%s5941 + $0x74] sm:$0xf]
  %v5972 = vld [vmem:[%s5941 + $0x78] sm:$0xf]
  %v5973 = vld [vmem:[%s5941 + $0x7c] sm:$0xf]
  %v6006 = vunpack.c.l.b16 %v5942
  %v6007 = vunpack.c.l.b16 %v5943
  %v6008 = vunpack.c.l.b16 %v5944
  %v6009 = vunpack.c.l.b16 %v5945
  %v6010 = vunpack.c.l.b16 %v5946
  %v6011 = vunpack.c.l.b16 %v5947
  %v6012 = vunpack.c.l.b16 %v5948
  %v6013 = vunpack.c.l.b16 %v5949
  %v6014 = vunpack.c.l.b16 %v5950
  %v6015 = vunpack.c.l.b16 %v5951
  %v6016 = vunpack.c.l.b16 %v5952
  %v6017 = vunpack.c.l.b16 %v5953
  %v6018 = vunpack.c.l.b16 %v5954
  %v6019 = vunpack.c.l.b16 %v5955
  %v6020 = vunpack.c.l.b16 %v5956
  %v6021 = vunpack.c.l.b16 %v5957
  %v6022 = vunpack.c.l.b16 %v5958
  %v6023 = vunpack.c.l.b16 %v5959
  %v6024 = vunpack.c.l.b16 %v5960
  %v6025 = vunpack.c.l.b16 %v5961
  %v6026 = vunpack.c.l.b16 %v5962
  %v6027 = vunpack.c.l.b16 %v5963
  %v6028 = vunpack.c.l.b16 %v5964
  %v6029 = vunpack.c.l.b16 %v5965
  %v6030 = vunpack.c.l.b16 %v5966
  %v6031 = vunpack.c.l.b16 %v5967
  %v6032 = vunpack.c.l.b16 %v5968
  %v6033 = vunpack.c.l.b16 %v5969
  %v6034 = vunpack.c.l.b16 %v5970
  %v6035 = vunpack.c.l.b16 %v5971
  %v6036 = vunpack.c.l.b16 %v5972
  %v6037 = vunpack.c.l.b16 %v5973
  %v6038 = vpack.c.b16 %v6007, %v6006
  %v6039 = vpack.c.b16 %v6009, %v6008
  %v6040 = vpack.c.b16 %v6011, %v6010
  %v6041 = vpack.c.b16 %v6013, %v6012
  %v6042 = vpack.c.b16 %v6015, %v6014
  %v6043 = vpack.c.b16 %v6017, %v6016
  %v6044 = vpack.c.b16 %v6019, %v6018
  %v6045 = vpack.c.b16 %v6021, %v6020
  %v6046 = vpack.c.b16 %v6023, %v6022
  %v6047 = vpack.c.b16 %v6025, %v6024
  %v6048 = vpack.c.b16 %v6027, %v6026
  %v6049 = vpack.c.b16 %v6029, %v6028
  %v6050 = vpack.c.b16 %v6031, %v6030
  %v6051 = vpack.c.b16 %v6033, %v6032
  %v6052 = vpack.c.b16 %v6035, %v6034
  %v6053 = vpack.c.b16 %v6037, %v6036
  %v6055 = vsel %vm5838, %v6038, 0
  %v6058 = vsel %vm5838, %v6039, 0
  %v6061 = vsel %vm5838, %v6040, 0
  %v6064 = vsel %vm5838, %v6041, 0
  %v6067 = vsel %vm5838, %v6042, 0
  %v6070 = vsel %vm5838, %v6043, 0
  %v6073 = vsel %vm5838, %v6044, 0
  %v6076 = vsel %vm5838, %v6045, 0
  %v6079 = vsel %vm5838, %v6046, 0
  %v6082 = vsel %vm5838, %v6047, 0
  %v6085 = vsel %vm5838, %v6048, 0
  %v6088 = vsel %vm5838, %v6049, 0
  %v6091 = vsel %vm5838, %v6050, 0
  %v6094 = vsel %vm5838, %v6051, 0
  %v6097 = vsel %vm5838, %v6052, 0
  %v6100 = vsel %vm5838, %v6053, 0
  %6102 = vmatprep.subr.bf16.mxu0 0
  %6103 = vmatpush1.bf16.xpose.msra.mxu0 %v6076
  %6104 = vmatprep.subr.bf16.mxu0 0
  %6105 = vmatpush1.bf16.xpose.msra.mxu0 %v6073
  %6106 = vmatprep.subr.bf16.mxu0 0
  %6107 = vmatpush1.bf16.xpose.msra.mxu0 %v6070
  %6108 = vmatprep.subr.bf16.mxu0 0
  %6109 = vmatpush1.bf16.xpose.msra.mxu0 %v6067
  %6110 = vmatprep.subr.bf16.mxu0 0
  %6111 = vmatpush1.bf16.xpose.msra.mxu0 %v6064
  %6112 = vmatprep.subr.bf16.mxu0 0
  %6113 = vmatpush1.bf16.xpose.msra.mxu0 %v6061
  %6114 = vmatprep.subr.bf16.mxu0 0
  %6115 = vmatpush1.bf16.xpose.msra.mxu0 %v6058
  %6116 = vmatprep.subr.bf16.mxu0 0
  %6117 = vmatpush1.bf16.xpose.msra.mxu0 %v6055
  %6118 = vmatprep.subr.bf16.mxu0 0
  %6119 = vmatpush2.bf16.xpose.msra.mxu0 %v6100
  %6120 = vmatprep.subr.bf16.mxu0 0
  %6121 = vmatpush2.bf16.xpose.msra.mxu0 %v6097
  %6122 = vmatprep.subr.bf16.mxu0 0
  %6123 = vmatpush2.bf16.xpose.msra.mxu0 %v6094
  %6124 = vmatprep.subr.bf16.mxu0 0
  %6125 = vmatpush2.bf16.xpose.msra.mxu0 %v6091
  %6126 = vmatprep.subr.bf16.mxu0 0
  %6127 = vmatpush2.bf16.xpose.msra.mxu0 %v6088
  %6128 = vmatprep.subr.bf16.mxu0 0
  %6129 = vmatpush2.bf16.xpose.msra.mxu0 %v6085
  %6130 = vmatprep.subr.bf16.mxu0 0
  %6131 = vmatpush2.bf16.xpose.msra.mxu0 %v6082
  %6132 = vmatprep.subr.bf16.mxu0 0
  %6133 = vmatpush2.bf16.xpose.msra.mxu0 %v6079
  %6134 = vmatprep.mubr.bf16.mxu0 0
  %6135 = vmatmul.mubr.bf16.gmra.mxu0 %v5840
  %v6136 = vpop.f32.mrf.mxu0
  %v6137 = vadd.f32 0.0, %v6136
  %v6138 = vpop.f32.mrf.mxu0
  %v6139 = vadd.f32 0.0, %v6138
  %v6140 = vpop.f32.mrf.mxu0
  %v6141 = vpop.f32.mrf.mxu0
  %6142 = vdwg.mxu0
  %v6143 = vadd.f32 %v6137, %v6139
  %6144 = vadd.xlane.f32.xlu0 %v6143
  %v6145 = vpop.xlane.xlu0 %6144
  %v6146 = vadd.f32 %v5934, %v6145
  %v6147 = vmul.f32 %v6137, %v6137
  %v6148 = vmul.f32 %v6139, %v6139
  %v6149 = vadd.f32 %v6147, %v6148
  %6150 = vadd.xlane.f32.xlu0 %v6149
  %v6151 = vpop.xlane.xlu0 %6150
  %v6152 = vadd.f32 %v5940, %v6151
  %vm6153 = vcmask 7168
  %6154 = vst.msk [vmem:[%s2] sm:$0xff] %vm6153, %v6146
  %vm6155 = vcmask 15368
  %6156 = vst.msk [vmem:[%s2] sm:$0xff] %vm6155, %v6152
  // Predicated region
  $region10: #{tpu_custom_call.1} parent=0 // pred_check
    _
  $region11: #{tpu_custom_call.1} parent=0 // pred_check_branch
    %6158 = sbr.rel (0) target = $region13
  $region12: #{tpu_custom_call.1} parent=0 // pred_region
    _
  $region13: #{tpu_custom_call.1} parent=0 // pred_fallthru
    _
  // Predicated region
  $region14: #{tpu_custom_call.1} parent=0 // pred_check
    _
  $region15: #{tpu_custom_call.1} parent=0 // pred_check_branch
    %6160 = sbr.rel (0) target = $region17
  $region16: #{tpu_custom_call.1} parent=0 // pred_region
    _
  $region17: #{tpu_custom_call.1} parent=0 // pred_fallthru
    _

</llo_original>
